<compile_context>
chip_gen: v5e
topology: v5e:2x2
jax: 0.10.0
libtpu: 0.0.40
codegen_flags: <defaults>
</compile_context>

<pallas_src>
import math
from functools import partial

import numpy as np
import jax
import jax.numpy as jnp
from jax.experimental import pallas as pl
from jax.experimental.pallas import tpu as pltpu


# ----------------------------------------------------------------------------
# host-side glue: 2D sincos positional embedding (numpy, same as reference)
# ----------------------------------------------------------------------------
def get_1d_sincos_pos_embed_from_grid(embed_dim, pos):
    assert embed_dim % 2 == 0
    omega = np.arange(embed_dim // 2, dtype=np.float32)
    omega /= embed_dim / 2.0
    omega = 1.0 / 10000 ** omega
    pos = pos.reshape(-1)
    out = np.einsum("m,d->md", pos, omega)
    emb_sin = np.sin(out)
    emb_cos = np.cos(out)
    return np.concatenate([emb_sin, emb_cos], axis=1)


def get_2d_sincos_pos_embed_from_grid(embed_dim, grid):
    assert embed_dim % 2 == 0
    emb_h = get_1d_sincos_pos_embed_from_grid(embed_dim // 2, grid[0])
    emb_w = get_1d_sincos_pos_embed_from_grid(embed_dim // 2, grid[1])
    return np.concatenate([emb_h, emb_w], axis=1)


def get_2d_sincos_pos_embed(embed_dim, grid_size):
    if isinstance(grid_size, int):
        gh, gw = grid_size, grid_size
    else:
        gh, gw = grid_size
    grid_h = np.arange(gh, dtype=np.float32)
    grid_w = np.arange(gw, dtype=np.float32)
    grid = np.meshgrid(grid_w, grid_h)
    grid = np.stack(grid, axis=0).reshape([2, 1, gh, gw])
    return get_2d_sincos_pos_embed_from_grid(embed_dim, grid)


def get_abs_pos_jax(abs_pos, tgt_size):
    """JAX version of get_abs_pos (host-side glue)."""
    src = int(math.sqrt(abs_pos.shape[0]))
    if (int(tgt_size[0]), int(tgt_size[1])) == (src, src):
        return abs_pos
    # TODO(synk): PyTorch F.interpolate bicubic uses a=-0.75 cubic kernel;
    # jax.image.resize 'bicubic' uses Keys a=-0.5 (slight numeric difference).
    g = abs_pos.reshape(src, src, -1)
    g = jax.image.resize(
        g, (int(tgt_size[0]), int(tgt_size[1]), abs_pos.shape[-1]), method="bicubic"
    )
    return g.reshape(int(tgt_size[0]) * int(tgt_size[1]), -1)


# ----------------------------------------------------------------------------
# shared math helper (pure jnp, usable inside the kernel and in the reference)
# ----------------------------------------------------------------------------
def _layernorm(x, w, b, eps=1e-6):
    # The Resampler's default_norm_layer is nn.LayerNorm(eps=1e-6).
    mean = jnp.mean(x, axis=-1, keepdims=True)
    xc = x - mean
    var = jnp.mean(xc * xc, axis=-1, keepdims=True)
    return xc * jax.lax.rsqrt(var + eps) * w + b


# ----------------------------------------------------------------------------
# Pallas kernel: grid = (batch, num_kv_blocks); flash-style online softmax
# ----------------------------------------------------------------------------
def resampler_kernel(
    x_ref,                       # (1, Lb, kv_dim) bf16 (streamed, unpadded)
    qh_ref,                      # (H, Q, hd)      bf16 hoisted, scaled query heads
    poswk_ref,                   # (Lb, E)         bf16 hoisted pos_kv @ Wk + bk
    wkv_ref,                     # (kv_dim, E)     bf16 kv_proj.weight.T
    lnkv_w_ref, lnkv_b_ref,      # (1, E)          f32
    wkv2_ref,                    # (E, 2E)         bf16 fused [Wk | Wv]
    bv_ref,                      # (1, E)          f32  (added in epilogue)
    wo_ref, bo_ref,              # (E, E) bf16, (1, E) f32   out_proj
    lnpost_w_ref, lnpost_b_ref,  # (1, E)          f32
    proj_ref,                    # (E, E)          bf16
    o_ref,                       # (1, Q, E)       f32
    m_scr, l_scr, acc_scr,       # (H,Q,1) f32, (H,Q,1) f32, (H,Q,hd) f32
    *, num_heads,
):
    f32 = jnp.float32
    bf16 = jnp.bfloat16
    kv_idx = pl.program_id(1)
    nkv = pl.num_programs(1)

    @pl.when(kv_idx == 0)
    def _init():
        m_scr[...] = jnp.full(m_scr.shape, -jnp.inf, dtype=f32)
        l_scr[...] = jnp.zeros(l_scr.shape, dtype=f32)
        acc_scr[...] = jnp.zeros(acc_scr.shape, dtype=f32)

    # ---- KV path for this L-block (bf16 matmuls, f32 accumulation) ----
    x = x_ref[0]                                                    # (Lb, kv_dim)
    kv = jnp.dot(x, wkv_ref[...], preferred_element_type=f32)       # (Lb, E) f32
    kv = _layernorm(kv, lnkv_w_ref[...], lnkv_b_ref[...])
    kv_bf = kv.astype(bf16)

    # fused K/V projection: one (Lb, E) @ (E, 2E) matmul (256-wide MXU output)
    kv2 = jnp.dot(kv_bf, wkv2_ref[...], preferred_element_type=f32)  # (Lb, 2E)
    E = kv2.shape[-1] // 2
    hd = E // num_heads
    kp = kv2[:, :E] + poswk_ref[...]          # pos@Wk + bk hoisted to host
    vp = kv2[:, E:]                           # V bias folded into epilogue

    kp_bf = kp.astype(bf16)
    vp_bf = vp.astype(bf16)
    # head-major (H, Lb, hd) via 128-aligned static lane slices + leading stack
    k3 = jnp.stack([kp_bf[:, h * hd:(h + 1) * hd] for h in range(num_heads)], axis=0)
    v3 = jnp.stack([vp_bf[:, h * hd:(h + 1) * hd] for h in range(num_heads)], axis=0)

    # ---- scores for all heads at once (scale already folded into qh) ----
    s = jnp.einsum("hqd,hkd->hqk", qh_ref[...], k3,
                   preferred_element_type=f32)                      # (H, Q, Lb)

    # ---- online softmax update across KV blocks ----
    m_prev = m_scr[...]
    m_new = jnp.maximum(m_prev, jnp.max(s, axis=-1, keepdims=True))
    alpha = jnp.exp(m_prev - m_new)
    p = jnp.exp(s - m_new)
    l_scr[...] = alpha * l_scr[...] + jnp.sum(p, axis=-1, keepdims=True)
    acc_scr[...] = alpha * acc_scr[...] + jnp.einsum(
        "hqk,hkd->hqd", p.astype(bf16), v3, preferred_element_type=f32)
    m_scr[...] = m_new

    # ---- epilogue: out_proj + ln_post + final proj (once per batch element) ----
    @pl.when(kv_idx == nkv - 1)
    def _finalize():
        o = acc_scr[...] * pl.reciprocal(l_scr[...], approx=True)   # (H, Q, hd)
        # lane-concat heads -> lane-dense (Q, E); softmax weights sum to 1, so
        # the V bias is added once here instead of per KV block.
        o_full = jnp.concatenate([o[h] for h in range(num_heads)], axis=-1) \
            + bv_ref[...]
        # single full-depth (Q,E)@(E,E) out-projection (no split-K loop)
        attn = jnp.dot(o_full.astype(bf16), wo_ref[...],
                       preferred_element_type=f32) + bo_ref[...]
        y = _layernorm(attn, lnpost_w_ref[...], lnpost_b_ref[...])
        out = jnp.dot(y.astype(bf16), proj_ref[...], preferred_element_type=f32)
        o_ref[0] = out.astype(o_ref.dtype)


@partial(jax.jit, static_argnames=("tgt_size", "num_heads", "kv_block"))
def resampler_forward(x, params, *, tgt_size, num_heads, kv_block=None):
    """x: (B, L, kv_dim) float32 -> (B, num_queries, embed_dim) float32."""
    B, L, kv_dim = x.shape
    Q, E = params["query"].shape
    assert E % num_heads == 0
    hd = E // num_heads
    f32, bf16 = jnp.float32, jnp.bfloat16

    pos_kv = get_abs_pos_jax(params["pos_embed"], tgt_size).astype(f32)   # (L, E)
    assert pos_kv.shape[0] == L

    # ---- batch-invariant query path hoisted out of the kernel (runs once) ----
    q_in = _layernorm(params["query"], params["lnq_w"], params["lnq_b"]) \
        + params["pos_embed"]
    qp = (q_in @ params["wq_t"] + params["bq"]) * (1.0 / math.sqrt(hd))
    qh = jnp.transpose(qp.reshape(Q, num_heads, hd), (1, 0, 2)).astype(bf16)

    # ---- hoisted additive term for K: (kv+pos)@Wk + bk == kv@Wk + (pos@Wk+bk)
    poswk = (pos_kv @ params["wk_t"] + params["bk"]).astype(bf16)          # (L, E)

    # ---- fused K/V projection weight: one (E, 2E) matmul per block ----------
    wkv2 = jnp.concatenate([params["wk_t"], params["wv_t"]], axis=1).astype(bf16)

    # ---- KV-length tiling (flash-style online softmax over L blocks) --------
    # Default: single block for short sequences, 512-wide blocks beyond that.
    # TODO(synk): on v7x (64 MiB VMEM) cap the block sweep around 512-1024.
    if kv_block is None:
        kv_block = L if L <= 512 else 512
    assert L % kv_block == 0
    assert kv_block == L or kv_block % 128 == 0, \
        "kv_block must be lane-dense (a multiple of 128) when tiling"
    nkv = L // kv_block

    # x streamed at its true kv_dim (block dim == array dim): no zero-pad copy.
    x_bf = x.astype(bf16)

    def const_spec(shape):
        nd = len(shape)
        return pl.BlockSpec(shape, lambda b, k, _nd=nd: (0,) * _nd)

    in_specs = [
        pl.BlockSpec((1, kv_block, kv_dim), lambda b, k: (b, k, 0)),   # x
        const_spec((num_heads, Q, hd)),                                # qh
        pl.BlockSpec((kv_block, E), lambda b, k: (k, 0)),              # pos@Wk+bk
        const_spec((kv_dim, E)),                                       # kv_proj.T
        const_spec((1, E)), const_spec((1, E)),                        # ln_kv w,b
        const_spec((E, 2 * E)),                                        # [Wk|Wv]
        const_spec((1, E)),                                            # bv
        const_spec((E, E)), const_spec((1, E)),                        # Wo.T, bo
        const_spec((1, E)), const_spec((1, E)),                        # ln_post w,b
        const_spec((E, E)),                                            # proj
    ]
    out_spec = pl.BlockSpec((1, Q, E), lambda b, k: (b, 0, 0))

    kern = partial(resampler_kernel, num_heads=num_heads)
    return pl.pallas_call(
        kern,
        out_shape=jax.ShapeDtypeStruct((B, Q, E), jnp.float32),
        grid=(B, nkv),
        in_specs=in_specs,
        out_specs=out_spec,
        scratch_shapes=[
            pltpu.VMEM((num_heads, Q, 1), jnp.float32),    # running max m
            pltpu.VMEM((num_heads, Q, 1), jnp.float32),    # running denom l
            pltpu.VMEM((num_heads, Q, hd), jnp.float32),   # output accumulator
        ],
        compiler_params=pltpu.CompilerParams(
            dimension_semantics=("parallel", "arbitrary"),
            vmem_limit_bytes=32 * 1024 * 1024),
    )(
        x_bf, qh, poswk,
        params["wkv_t"].astype(bf16),
        params["lnkv_w"], params["lnkv_b"],
        wkv2, params["bv"],
        params["wo_t"].astype(bf16), params["bo"],
        params["lnpost_w"], params["lnpost_b"],
        params["proj"].astype(bf16),
    )


# ----------------------------------------------------------------------------
# pure-JAX f32 reference (same math, no Pallas) for a correctness check
# ----------------------------------------------------------------------------
def reference_forward(x, params, tgt_size, num_heads):
    pos_kv = get_abs_pos_jax(params["pos_embed"], tgt_size)
    Q, E = params["query"].shape
    hd = E // num_heads
    scale = 1.0 / math.sqrt(hd)
    outs = []
    for bi in range(x.shape[0]):
        kv = x[bi] @ params["wkv_t"]
        kv = _layernorm(kv, params["lnkv_w"], params["lnkv_b"])
        k_in = kv + pos_kv
        v_in = kv
        q_in = _layernorm(params["query"], params["lnq_w"], params["lnq_b"]) \
            + params["pos_embed"]
        qp = q_in @ params["wq_t"] + params["bq"]
        kp = k_in @ params["wk_t"] + params["bk"]
        vp = v_in @ params["wv_t"] + params["bv"]
        heads = []
        for h in range(num_heads):
            qh = qp[:, h * hd:(h + 1) * hd] * scale
            kh = kp[:, h * hd:(h + 1) * hd]
            vh = vp[:, h * hd:(h + 1) * hd]
            s = qh @ kh.T
            p = jax.nn.softmax(s, axis=-1)
            heads.append(p @ vh)
        o = jnp.concatenate(heads, axis=-1)
        attn_out = o @ params["wo_t"] + params["bo"]
        y = _layernorm(attn_out, params["lnpost_w"], params["lnpost_b"])
        outs.append(y @ params["proj"])
    return jnp.stack(outs, axis=0)


# ----------------------------------------------------------------------------
# main
# ----------------------------------------------------------------------------
if __name__ == "__main__":
    # module hyper-params (small, synthetic; head_dim=128 as in real MiniCPM)
    grid_size = 8            # -> num_queries = 64
    embed_dim = 256          # E (multiple of 128, full 256-wide v6e/v7x MXU tile)
    num_heads = 2            # head_dim = 128 -> MXU-dense score / PV matmuls
    kv_dim = 96              # != embed_dim -> kv_proj Linear present (unpadded stream)
    batch = 2                # keeps both v7x TensorCores busy on the parallel axis
    tgt_size = (16, 16)      # L = 256 -> two 128-wide KV blocks (flash path)
    L = tgt_size[0] * tgt_size[1]
    Q = grid_size ** 2
    E = embed_dim

    key = jax.random.PRNGKey(0)
    ks = jax.random.split(key, 10)

    pos_embed = jnp.asarray(get_2d_sincos_pos_embed(E, grid_size), dtype=jnp.float32)

    in_proj_w = 0.02 * jax.random.normal(ks[2], (3 * E, E), jnp.float32)
    in_proj_b = 0.02 * jax.random.normal(ks[3], (3 * E,), jnp.float32)

    params = dict(
        pos_embed=pos_embed,                                              # (Q, E)
        query=0.02 * jax.random.normal(ks[0], (Q, E), jnp.float32),
        wkv_t=(0.02 * jax.random.normal(ks[1], (E, kv_dim), jnp.float32)).T,
        lnkv_w=jnp.ones((1, E), jnp.float32), lnkv_b=jnp.zeros((1, E), jnp.float32),
        lnq_w=jnp.ones((1, E), jnp.float32), lnq_b=jnp.zeros((1, E), jnp.float32),
        wq_t=in_proj_w[:E].T, wk_t=in_proj_w[E:2 * E].T, wv_t=in_proj_w[2 * E:].T,
        bq=in_proj_b[:E].reshape(1, E),
        bk=in_proj_b[E:2 * E].reshape(1, E),
        bv=in_proj_b[2 * E:].reshape(1, E),
        wo_t=(0.02 * jax.random.normal(ks[4], (E, E), jnp.float32)).T,
        bo=0.01 * jax.random.normal(ks[5], (1, E), jnp.float32),
        lnpost_w=jnp.ones((1, E), jnp.float32), lnpost_b=jnp.zeros((1, E), jnp.float32),
        proj=(E ** -0.5) * jax.random.normal(ks[6], (E, E), jnp.float32),
    )

    x = jax.random.normal(ks[7], (batch, L, kv_dim), jnp.float32)

    # kv_block=128: lane-dense blocks (>=128) AND exercises the multi-block
    # online-softmax path (nkv=2).  Default (None) would use a single L=256 block.
    out = resampler_forward(x, params, tgt_size=tgt_size, num_heads=num_heads,
                            kv_block=128)
    out = jax.block_until_ready(out)

    ref = jax.block_until_ready(reference_forward(x, params, tgt_size, num_heads))
    # bf16 MXU matmuls (f32 accumulation) inside the kernel vs. an f32 reference
    # -> bf16-level tolerance.
    np.testing.assert_allclose(np.asarray(out), np.asarray(ref), rtol=5e-2, atol=5e-2)

    assert out.shape == (batch, Q, E)
    print("KERNEL_OK")
</pallas_src>

<mosaic_0001>
module attributes {stable_mosaic.version = 11 : i64} {
  func.func @resampler_kernel(%arg0: i32, %arg1: i32, %arg2: memref<1x128x96xbf16, #tpu.memory_space<vmem>>, %arg3: memref<2x64x128xbf16, #tpu.memory_space<vmem>>, %arg4: memref<128x256xbf16, #tpu.memory_space<vmem>>, %arg5: memref<96x256xbf16, #tpu.memory_space<vmem>>, %arg6: memref<1x256xf32, #tpu.memory_space<vmem>>, %arg7: memref<1x256xf32, #tpu.memory_space<vmem>>, %arg8: memref<256x512xbf16, #tpu.memory_space<vmem>>, %arg9: memref<1x256xf32, #tpu.memory_space<vmem>>, %arg10: memref<256x256xbf16, #tpu.memory_space<vmem>>, %arg11: memref<1x256xf32, #tpu.memory_space<vmem>>, %arg12: memref<1x256xf32, #tpu.memory_space<vmem>>, %arg13: memref<1x256xf32, #tpu.memory_space<vmem>>, %arg14: memref<256x256xbf16, #tpu.memory_space<vmem>>, %arg15: memref<1x64x256xf32, #tpu.memory_space<vmem>>, %arg16: memref<2x64x1xf32, #tpu.memory_space<vmem>>, %arg17: memref<2x64x1xf32, #tpu.memory_space<vmem>>, %arg18: memref<2x64x128xf32, #tpu.memory_space<vmem>>) attributes {dimension_semantics = [#tpu.dimension_semantics<parallel>, #tpu.dimension_semantics<arbitrary>], iteration_bounds = array<i64: 2, 2>, scalar_prefetch = 0 : i64, scratch_operands = 3 : i64, tpu.core_type = #tpu.core_type<tc>, window_params = [{transform_indices = @transform_0, window_bounds = array<i64: 1, 128, 96>}, {pipeline_mode = #tpu.pipeline_mode<synchronous>, transform_indices = @transform_1, window_bounds = array<i64: 2, 64, 128>}, {transform_indices = @transform_2, window_bounds = array<i64: 128, 256>}, {pipeline_mode = #tpu.pipeline_mode<synchronous>, transform_indices = @transform_3, window_bounds = array<i64: 96, 256>}, {pipeline_mode = #tpu.pipeline_mode<synchronous>, transform_indices = @transform_4, window_bounds = array<i64: 1, 256>}, {pipeline_mode = #tpu.pipeline_mode<synchronous>, transform_indices = @transform_5, window_bounds = array<i64: 1, 256>}, {pipeline_mode = #tpu.pipeline_mode<synchronous>, transform_indices = @transform_6, window_bounds = array<i64: 256, 512>}, {pipeline_mode = #tpu.pipeline_mode<synchronous>, transform_indices = @transform_7, window_bounds = array<i64: 1, 256>}, {pipeline_mode = #tpu.pipeline_mode<synchronous>, transform_indices = @transform_8, window_bounds = array<i64: 256, 256>}, {pipeline_mode = #tpu.pipeline_mode<synchronous>, transform_indices = @transform_9, window_bounds = array<i64: 1, 256>}, {pipeline_mode = #tpu.pipeline_mode<synchronous>, transform_indices = @transform_10, window_bounds = array<i64: 1, 256>}, {pipeline_mode = #tpu.pipeline_mode<synchronous>, transform_indices = @transform_11, window_bounds = array<i64: 1, 256>}, {pipeline_mode = #tpu.pipeline_mode<synchronous>, transform_indices = @transform_12, window_bounds = array<i64: 256, 256>}, {transform_indices = @transform_13, window_bounds = array<i64: 1, 64, 256>}]} {
    %c0_i32 = arith.constant 0 : i32
    %0 = arith.cmpi eq, %arg1, %c0_i32 : i32
    %1 = arith.extui %0 : i1 to i32
    %c0_i32_0 = arith.constant 0 : i32
    %2 = arith.cmpi ne, %1, %c0_i32_0 : i32
    scf.if %2 {
      %cst_45 = arith.constant 0xFF800000 : f32
      %77 = vector.broadcast %cst_45 : f32 to vector<2x64x1xf32>
      %c0_46 = arith.constant 0 : index
      %c0_47 = arith.constant 0 : index
      %c0_48 = arith.constant 0 : index
      %78 = vector.load %arg16[%c0_46, %c0_47, %c0_48] : memref<2x64x1xf32, #tpu.memory_space<vmem>>, vector<2x64x1xf32>
      tpu.vector_store %arg16[%c0_46, %c0_47, %c0_48], %77 {strides = array<i32>} : memref<2x64x1xf32, #tpu.memory_space<vmem>>, vector<2x64x1xf32>,
      %cst_49 = arith.constant 0.000000e+00 : f32
      %79 = vector.broadcast %cst_49 : f32 to vector<2x64x1xf32>
      %c0_50 = arith.constant 0 : index
      %c0_51 = arith.constant 0 : index
      %c0_52 = arith.constant 0 : index
      %80 = vector.load %arg17[%c0_50, %c0_51, %c0_52] : memref<2x64x1xf32, #tpu.memory_space<vmem>>, vector<2x64x1xf32>
      tpu.vector_store %arg17[%c0_50, %c0_51, %c0_52], %79 {strides = array<i32>} : memref<2x64x1xf32, #tpu.memory_space<vmem>>, vector<2x64x1xf32>,
      %cst_53 = arith.constant 0.000000e+00 : f32
      %81 = vector.broadcast %cst_53 : f32 to vector<2x64x128xf32>
      %c0_54 = arith.constant 0 : index
      %c0_55 = arith.constant 0 : index
      %c0_56 = arith.constant 0 : index
      %82 = vector.load %arg18[%c0_54, %c0_55, %c0_56] : memref<2x64x128xf32, #tpu.memory_space<vmem>>, vector<2x64x128xf32>
      tpu.vector_store %arg18[%c0_54, %c0_55, %c0_56], %81 {strides = array<i32>} : memref<2x64x128xf32, #tpu.memory_space<vmem>>, vector<2x64x128xf32>,
    } else {
    }
    %c0 = arith.constant 0 : index
    %c0_1 = arith.constant 0 : index
    %c0_2 = arith.constant 0 : index
    %3 = vector.load %arg2[%c0, %c0_1, %c0_2] : memref<1x128x96xbf16, #tpu.memory_space<vmem>>, vector<1x128x96xbf16>
    %4 = vector.shape_cast %3 : vector<1x128x96xbf16> to vector<128x96xbf16>
    %c0_3 = arith.constant 0 : index
    %c0_4 = arith.constant 0 : index
    %5 = vector.load %arg5[%c0_3, %c0_4] : memref<96x256xbf16, #tpu.memory_space<vmem>>, vector<96x256xbf16>
    %cst = arith.constant dense<0.000000e+00> : vector<128x256xf32>
    %6 = tpu.matmul %4, %5, %cst {dimension_numbers = #tpu.dot_dimension_numbers<[1], [0], [0], [1], [0, 0, 1, 1], [], []>} : vector<128x96xbf16>, vector<96x256xbf16>, vector<128x256xf32> -> vector<128x256xf32>
    %c0_5 = arith.constant 0 : index
    %c0_6 = arith.constant 0 : index
    %7 = vector.load %arg6[%c0_5, %c0_6] : memref<1x256xf32, #tpu.memory_space<vmem>>, vector<1x256xf32>
    %c0_7 = arith.constant 0 : index
    %c0_8 = arith.constant 0 : index
    %8 = vector.load %arg7[%c0_7, %c0_8] : memref<1x256xf32, #tpu.memory_space<vmem>>, vector<1x256xf32>
    %cst_9 = arith.constant dense<0.000000e+00> : vector<128xf32>
    %9 = vector.multi_reduction <add>, %6, %cst_9 [1] : vector<128x256xf32> to vector<128xf32>
    %10 = vector.shape_cast %9 : vector<128xf32> to vector<128x1xf32>
    %cst_10 = arith.constant 2.560000e+02 : f32
    %11 = vector.broadcast %cst_10 : f32 to vector<128x1xf32>
    %12 = arith.divf %10, %11 : vector<128x1xf32>
    %13 = vector.broadcast %12 : vector<128x1xf32> to vector<128x256xf32>
    %14 = arith.subf %6, %13 : vector<128x256xf32>
    %15 = arith.mulf %14, %14 : vector<128x256xf32>
    %cst_11 = arith.constant dense<0.000000e+00> : vector<128xf32>
    %16 = vector.multi_reduction <add>, %15, %cst_11 [1] : vector<128x256xf32> to vector<128xf32>
    %17 = vector.shape_cast %16 : vector<128xf32> to vector<128x1xf32>
    %cst_12 = arith.constant 2.560000e+02 : f32
    %18 = vector.broadcast %cst_12 : f32 to vector<128x1xf32>
    %19 = arith.divf %17, %18 : vector<128x1xf32>
    %cst_13 = arith.constant 9.99999997E-7 : f32
    %20 = vector.broadcast %cst_13 : f32 to vector<128x1xf32>
    %21 = arith.addf %19, %20 : vector<128x1xf32>
    %22 = math.rsqrt %21 : vector<128x1xf32>
    %23 = vector.broadcast %22 : vector<128x1xf32> to vector<128x256xf32>
    %24 = arith.mulf %14, %23 : vector<128x256xf32>
    %25 = vector.broadcast %7 : vector<1x256xf32> to vector<128x256xf32>
    %26 = arith.mulf %24, %25 : vector<128x256xf32>
    %27 = vector.broadcast %8 : vector<1x256xf32> to vector<128x256xf32>
    %28 = arith.addf %26, %27 : vector<128x256xf32>
    %29 = arith.truncf %28 : vector<128x256xf32> to vector<128x256xbf16>
    %c0_14 = arith.constant 0 : index
    %c0_15 = arith.constant 0 : index
    %30 = vector.load %arg8[%c0_14, %c0_15] : memref<256x512xbf16, #tpu.memory_space<vmem>>, vector<256x512xbf16>
    %cst_16 = arith.constant dense<0.000000e+00> : vector<128x512xf32>
    %31 = tpu.matmul %29, %30, %cst_16 {dimension_numbers = #tpu.dot_dimension_numbers<[1], [0], [0], [1], [0, 0, 1, 1], [], []>} : vector<128x256xbf16>, vector<256x512xbf16>, vector<128x512xf32> -> vector<128x512xf32>
    %32 = vector.extract_strided_slice %31 {offsets = [0, 0], sizes = [128, 256], strides = [1, 1]} : vector<128x512xf32> to vector<128x256xf32>
    %c0_17 = arith.constant 0 : index
    %c0_18 = arith.constant 0 : index
    %33 = vector.load %arg4[%c0_17, %c0_18] : memref<128x256xbf16, #tpu.memory_space<vmem>>, vector<128x256xbf16>
    %34 = arith.extf %33 : vector<128x256xbf16> to vector<128x256xf32>
    %35 = arith.addf %32, %34 : vector<128x256xf32>
    %36 = vector.extract_strided_slice %31 {offsets = [0, 256], sizes = [128, 256], strides = [1, 1]} : vector<128x512xf32> to vector<128x256xf32>
    %37 = arith.truncf %35 : vector<128x256xf32> to vector<128x256xbf16>
    %38 = arith.truncf %36 : vector<128x256xf32> to vector<128x256xbf16>
    %39 = vector.extract_strided_slice %37 {offsets = [0, 0], sizes = [128, 128], strides = [1, 1]} : vector<128x256xbf16> to vector<128x128xbf16>
    %40 = vector.extract_strided_slice %37 {offsets = [0, 128], sizes = [128, 128], strides = [1, 1]} : vector<128x256xbf16> to vector<128x128xbf16>
    %41 = vector.shape_cast %39 : vector<128x128xbf16> to vector<1x128x128xbf16>
    %42 = vector.shape_cast %40 : vector<128x128xbf16> to vector<1x128x128xbf16>
    %43 = tpu.concatenate %41, %42 in 0 : vector<1x128x128xbf16>, vector<1x128x128xbf16> -> vector<2x128x128xbf16>
    %44 = vector.extract_strided_slice %38 {offsets = [0, 0], sizes = [128, 128], strides = [1, 1]} : vector<128x256xbf16> to vector<128x128xbf16>
    %45 = vector.extract_strided_slice %38 {offsets = [0, 128], sizes = [128, 128], strides = [1, 1]} : vector<128x256xbf16> to vector<128x128xbf16>
    %46 = vector.shape_cast %44 : vector<128x128xbf16> to vector<1x128x128xbf16>
    %47 = vector.shape_cast %45 : vector<128x128xbf16> to vector<1x128x128xbf16>
    %48 = tpu.concatenate %46, %47 in 0 : vector<1x128x128xbf16>, vector<1x128x128xbf16> -> vector<2x128x128xbf16>
    %c0_19 = arith.constant 0 : index
    %c0_20 = arith.constant 0 : index
    %c0_21 = arith.constant 0 : index
    %49 = vector.load %arg3[%c0_19, %c0_20, %c0_21] : memref<2x64x128xbf16, #tpu.memory_space<vmem>>, vector<2x64x128xbf16>
    "tpu.trace_start"() <{level = 10 : i32, message = "hqd,hkd->hqk"}> : () -> ()
    %cst_22 = arith.constant dense<0.000000e+00> : vector<2x64x128xf32>
    %50 = tpu.matmul %49, %43, %cst_22 {dimension_numbers = #tpu.dot_dimension_numbers<[2], [2], [1], [1], [0, 0, 0, 1, 1, 1], [0], [0]>} : vector<2x64x128xbf16>, vector<2x128x128xbf16>, vector<2x64x128xf32> -> vector<2x64x128xf32>
    "tpu.trace_stop"() : () -> ()
    %c0_23 = arith.constant 0 : index
    %c0_24 = arith.constant 0 : index
    %c0_25 = arith.constant 0 : index
    %51 = vector.load %arg16[%c0_23, %c0_24, %c0_25] : memref<2x64x1xf32, #tpu.memory_space<vmem>>, vector<2x64x1xf32>
    %cst_26 = arith.constant dense<0xFF800000> : vector<2x64xf32>
    %52 = vector.multi_reduction <maximumf>, %50, %cst_26 [2] : vector<2x64x128xf32> to vector<2x64xf32>
    %53 = vector.shape_cast %52 : vector<2x64xf32> to vector<2x64x1xf32>
    %54 = arith.maximumf %51, %53 : vector<2x64x1xf32>
    %55 = arith.subf %51, %54 : vector<2x64x1xf32>
    %56 = math.exp %55 : vector<2x64x1xf32>
    %57 = vector.broadcast %54 : vector<2x64x1xf32> to vector<2x64x128xf32>
    %58 = arith.subf %50, %57 : vector<2x64x128xf32>
    %59 = math.exp %58 : vector<2x64x128xf32>
    %c0_27 = arith.constant 0 : index
    %c0_28 = arith.constant 0 : index
    %c0_29 = arith.constant 0 : index
    %60 = vector.load %arg17[%c0_27, %c0_28, %c0_29] : memref<2x64x1xf32, #tpu.memory_space<vmem>>, vector<2x64x1xf32>
    %61 = arith.mulf %56, %60 : vector<2x64x1xf32>
    %cst_30 = arith.constant dense<0.000000e+00> : vector<2x64xf32>
    %62 = vector.multi_reduction <add>, %59, %cst_30 [2] : vector<2x64x128xf32> to vector<2x64xf32>
    %63 = vector.shape_cast %62 : vector<2x64xf32> to vector<2x64x1xf32>
    %64 = arith.addf %61, %63 : vector<2x64x1xf32>
    %c0_31 = arith.constant 0 : index
    %c0_32 = arith.constant 0 : index
    %c0_33 = arith.constant 0 : index
    %65 = vector.load %arg17[%c0_31, %c0_32, %c0_33] : memref<2x64x1xf32, #tpu.memory_space<vmem>>, vector<2x64x1xf32>
    tpu.vector_store %arg17[%c0_31, %c0_32, %c0_33], %64 {strides = array<i32>} : memref<2x64x1xf32, #tpu.memory_space<vmem>>, vector<2x64x1xf32>,
    %c0_34 = arith.constant 0 : index
    %c0_35 = arith.constant 0 : index
    %c0_36 = arith.constant 0 : index
    %66 = vector.load %arg18[%c0_34, %c0_35, %c0_36] : memref<2x64x128xf32, #tpu.memory_space<vmem>>, vector<2x64x128xf32>
    %67 = vector.broadcast %56 : vector<2x64x1xf32> to vector<2x64x128xf32>
    %68 = arith.mulf %67, %66 : vector<2x64x128xf32>
    %69 = arith.truncf %59 : vector<2x64x128xf32> to vector<2x64x128xbf16>
    "tpu.trace_start"() <{level = 10 : i32, message = "hqk,hkd->hqd"}> : () -> ()
    %cst_37 = arith.constant dense<0.000000e+00> : vector<2x64x128xf32>
    %70 = tpu.matmul %69, %48, %cst_37 {dimension_numbers = #tpu.dot_dimension_numbers<[2], [1], [1], [2], [0, 0, 0, 1, 1, 2], [0], [0]>} : vector<2x64x128xbf16>, vector<2x128x128xbf16>, vector<2x64x128xf32> -> vector<2x64x128xf32>
    "tpu.trace_stop"() : () -> ()
    %71 = arith.addf %68, %70 : vector<2x64x128xf32>
    %c0_38 = arith.constant 0 : index
    %c0_39 = arith.constant 0 : index
    %c0_40 = arith.constant 0 : index
    %72 = vector.load %arg18[%c0_38, %c0_39, %c0_40] : memref<2x64x128xf32, #tpu.memory_space<vmem>>, vector<2x64x128xf32>
    tpu.vector_store %arg18[%c0_38, %c0_39, %c0_40], %71 {strides = array<i32>} : memref<2x64x128xf32, #tpu.memory_space<vmem>>, vector<2x64x128xf32>,
    %c0_41 = arith.constant 0 : index
    %c0_42 = arith.constant 0 : index
    %c0_43 = arith.constant 0 : index
    %73 = vector.load %arg16[%c0_41, %c0_42, %c0_43] : memref<2x64x1xf32, #tpu.memory_space<vmem>>, vector<2x64x1xf32>
    tpu.vector_store %arg16[%c0_41, %c0_42, %c0_43], %54 {strides = array<i32>} : memref<2x64x1xf32, #tpu.memory_space<vmem>>, vector<2x64x1xf32>,
    %c1_i32 = arith.constant 1 : i32
    %74 = arith.cmpi eq, %arg1, %c1_i32 : i32
    %75 = arith.extui %74 : i1 to i32
    %c0_i32_44 = arith.constant 0 : i32
    %76 = arith.cmpi ne, %75, %c0_i32_44 : i32
    scf.if %76 {
      %c0_45 = arith.constant 0 : index
      %c0_46 = arith.constant 0 : index
      %c0_47 = arith.constant 0 : index
      %77 = vector.load %arg18[%c0_45, %c0_46, %c0_47] : memref<2x64x128xf32, #tpu.memory_space<vmem>>, vector<2x64x128xf32>
      %c0_48 = arith.constant 0 : index
      %c0_49 = arith.constant 0 : index
      %c0_50 = arith.constant 0 : index
      %78 = vector.load %arg17[%c0_48, %c0_49, %c0_50] : memref<2x64x1xf32, #tpu.memory_space<vmem>>, vector<2x64x1xf32>
      %79 = tpu.reciprocal %78 {approx = true} : vector<2x64x1xf32> -> vector<2x64x1xf32>
      %80 = vector.broadcast %79 : vector<2x64x1xf32> to vector<2x64x128xf32>
      %81 = arith.mulf %77, %80 : vector<2x64x128xf32>
      %82 = vector.extract_strided_slice %81 {offsets = [0, 0, 0], sizes = [1, 64, 128], strides = [1, 1, 1]} : vector<2x64x128xf32> to vector<1x64x128xf32>
      %83 = vector.shape_cast %82 : vector<1x64x128xf32> to vector<64x128xf32>
      %84 = vector.extract_strided_slice %81 {offsets = [1, 0, 0], sizes = [1, 64, 128], strides = [1, 1, 1]} : vector<2x64x128xf32> to vector<1x64x128xf32>
      %85 = vector.shape_cast %84 : vector<1x64x128xf32> to vector<64x128xf32>
      %86 = tpu.concatenate %83, %85 in 1 : vector<64x128xf32>, vector<64x128xf32> -> vector<64x256xf32>
      %c0_51 = arith.constant 0 : index
      %c0_52 = arith.constant 0 : index
      %87 = vector.load %arg9[%c0_51, %c0_52] : memref<1x256xf32, #tpu.memory_space<vmem>>, vector<1x256xf32>
      %88 = vector.broadcast %87 : vector<1x256xf32> to vector<64x256xf32>
      %89 = arith.addf %86, %88 : vector<64x256xf32>
      %90 = arith.truncf %89 : vector<64x256xf32> to vector<64x256xbf16>
      %c0_53 = arith.constant 0 : index
      %c0_54 = arith.constant 0 : index
      %91 = vector.load %arg10[%c0_53, %c0_54] : memref<256x256xbf16, #tpu.memory_space<vmem>>, vector<256x256xbf16>
      %cst_55 = arith.constant dense<0.000000e+00> : vector<64x256xf32>
      %92 = tpu.matmul %90, %91, %cst_55 {dimension_numbers = #tpu.dot_dimension_numbers<[1], [0], [0], [1], [0, 0, 1, 1], [], []>} : vector<64x256xbf16>, vector<256x256xbf16>, vector<64x256xf32> -> vector<64x256xf32>
      %c0_56 = arith.constant 0 : index
      %c0_57 = arith.constant 0 : index
      %93 = vector.load %arg11[%c0_56, %c0_57] : memref<1x256xf32, #tpu.memory_space<vmem>>, vector<1x256xf32>
      %94 = vector.broadcast %93 : vector<1x256xf32> to vector<64x256xf32>
      %95 = arith.addf %92, %94 : vector<64x256xf32>
      %c0_58 = arith.constant 0 : index
      %c0_59 = arith.constant 0 : index
      %96 = vector.load %arg12[%c0_58, %c0_59] : memref<1x256xf32, #tpu.memory_space<vmem>>, vector<1x256xf32>
      %c0_60 = arith.constant 0 : index
      %c0_61 = arith.constant 0 : index
      %97 = vector.load %arg13[%c0_60, %c0_61] : memref<1x256xf32, #tpu.memory_space<vmem>>, vector<1x256xf32>
      %cst_62 = arith.constant dense<0.000000e+00> : vector<64xf32>
      %98 = vector.multi_reduction <add>, %95, %cst_62 [1] : vector<64x256xf32> to vector<64xf32>
      %99 = vector.shape_cast %98 : vector<64xf32> to vector<64x1xf32>
      %cst_63 = arith.constant 2.560000e+02 : f32
      %100 = vector.broadcast %cst_63 : f32 to vector<64x1xf32>
      %101 = arith.divf %99, %100 : vector<64x1xf32>
      %102 = vector.broadcast %101 : vector<64x1xf32> to vector<64x256xf32>
      %103 = arith.subf %95, %102 : vector<64x256xf32>
      %104 = arith.mulf %103, %103 : vector<64x256xf32>
      %cst_64 = arith.constant dense<0.000000e+00> : vector<64xf32>
      %105 = vector.multi_reduction <add>, %104, %cst_64 [1] : vector<64x256xf32> to vector<64xf32>
      %106 = vector.shape_cast %105 : vector<64xf32> to vector<64x1xf32>
      %cst_65 = arith.constant 2.560000e+02 : f32
      %107 = vector.broadcast %cst_65 : f32 to vector<64x1xf32>
      %108 = arith.divf %106, %107 : vector<64x1xf32>
      %cst_66 = arith.constant 9.99999997E-7 : f32
      %109 = vector.broadcast %cst_66 : f32 to vector<64x1xf32>
      %110 = arith.addf %108, %109 : vector<64x1xf32>
      %111 = math.rsqrt %110 : vector<64x1xf32>
      %112 = vector.broadcast %111 : vector<64x1xf32> to vector<64x256xf32>
      %113 = arith.mulf %103, %112 : vector<64x256xf32>
      %114 = vector.broadcast %96 : vector<1x256xf32> to vector<64x256xf32>
      %115 = arith.mulf %113, %114 : vector<64x256xf32>
      %116 = vector.broadcast %97 : vector<1x256xf32> to vector<64x256xf32>
      %117 = arith.addf %115, %116 : vector<64x256xf32>
      %118 = arith.truncf %117 : vector<64x256xf32> to vector<64x256xbf16>
      %c0_67 = arith.constant 0 : index
      %c0_68 = arith.constant 0 : index
      %119 = vector.load %arg14[%c0_67, %c0_68] : memref<256x256xbf16, #tpu.memory_space<vmem>>, vector<256x256xbf16>
      %cst_69 = arith.constant dense<0.000000e+00> : vector<64x256xf32>
      %120 = tpu.matmul %118, %119, %cst_69 {dimension_numbers = #tpu.dot_dimension_numbers<[1], [0], [0], [1], [0, 0, 1, 1], [], []>} : vector<64x256xbf16>, vector<256x256xbf16>, vector<64x256xf32> -> vector<64x256xf32>
      %c0_70 = arith.constant 0 : index
      %c0_71 = arith.constant 0 : index
      %c0_72 = arith.constant 0 : index
      %121 = vector.load %arg15[%c0_70, %c0_71, %c0_72] : memref<1x64x256xf32, #tpu.memory_space<vmem>>, vector<1x64x256xf32>
      %122 = vector.shape_cast %121 : vector<1x64x256xf32> to vector<64x256xf32>
      %123 = vector.shape_cast %120 : vector<64x256xf32> to vector<1x64x256xf32>
      tpu.vector_store %arg15[%c0_70, %c0_71, %c0_72], %123 {strides = array<i32>} : memref<1x64x256xf32, #tpu.memory_space<vmem>>, vector<1x64x256xf32>,
    } else {
    }
    return
  }
  func.func @transform_0(%arg0: i32, %arg1: i32) -> (i32, i32, i32) {
    %c0_i32 = arith.constant 0 : i32
    %c0_i32_0 = arith.constant 0 : i32
    return %arg0, %arg1, %c0_i32 : i32, i32, i32
  }
  func.func @transform_1(%arg0: i32, %arg1: i32) -> (i32, i32, i32) {
    %c0_i32 = arith.constant 0 : i32
    %c0_i32_0 = arith.constant 0 : i32
    %c0_i32_1 = arith.constant 0 : i32
    %c0_i32_2 = arith.constant 0 : i32
    return %c0_i32, %c0_i32_0, %c0_i32_1 : i32, i32, i32
  }
  func.func @transform_2(%arg0: i32, %arg1: i32) -> (i32, i32) {
    %c0_i32 = arith.constant 0 : i32
    %c0_i32_0 = arith.constant 0 : i32
    return %arg1, %c0_i32 : i32, i32
  }
  func.func @transform_3(%arg0: i32, %arg1: i32) -> (i32, i32) {
    %c0_i32 = arith.constant 0 : i32
    %c0_i32_0 = arith.constant 0 : i32
    %c0_i32_1 = arith.constant 0 : i32
    return %c0_i32, %c0_i32_0 : i32, i32
  }
  func.func @transform_4(%arg0: i32, %arg1: i32) -> (i32, i32) {
    %c0_i32 = arith.constant 0 : i32
    %c0_i32_0 = arith.constant 0 : i32
    %c0_i32_1 = arith.constant 0 : i32
    return %c0_i32, %c0_i32_0 : i32, i32
  }
  func.func @transform_5(%arg0: i32, %arg1: i32) -> (i32, i32) {
    %c0_i32 = arith.constant 0 : i32
    %c0_i32_0 = arith.constant 0 : i32
    %c0_i32_1 = arith.constant 0 : i32
    return %c0_i32, %c0_i32_0 : i32, i32
  }
  func.func @transform_6(%arg0: i32, %arg1: i32) -> (i32, i32) {
    %c0_i32 = arith.constant 0 : i32
    %c0_i32_0 = arith.constant 0 : i32
    %c0_i32_1 = arith.constant 0 : i32
    return %c0_i32, %c0_i32_0 : i32, i32
  }
  func.func @transform_7(%arg0: i32, %arg1: i32) -> (i32, i32) {
    %c0_i32 = arith.constant 0 : i32
    %c0_i32_0 = arith.constant 0 : i32
    %c0_i32_1 = arith.constant 0 : i32
    return %c0_i32, %c0_i32_0 : i32, i32
  }
  func.func @transform_8(%arg0: i32, %arg1: i32) -> (i32, i32) {
    %c0_i32 = arith.constant 0 : i32
    %c0_i32_0 = arith.constant 0 : i32
    %c0_i32_1 = arith.constant 0 : i32
    return %c0_i32, %c0_i32_0 : i32, i32
  }
  func.func @transform_9(%arg0: i32, %arg1: i32) -> (i32, i32) {
    %c0_i32 = arith.constant 0 : i32
    %c0_i32_0 = arith.constant 0 : i32
    %c0_i32_1 = arith.constant 0 : i32
    return %c0_i32, %c0_i32_0 : i32, i32
  }
  func.func @transform_10(%arg0: i32, %arg1: i32) -> (i32, i32) {
    %c0_i32 = arith.constant 0 : i32
    %c0_i32_0 = arith.constant 0 : i32
    %c0_i32_1 = arith.constant 0 : i32
    return %c0_i32, %c0_i32_0 : i32, i32
  }
  func.func @transform_11(%arg0: i32, %arg1: i32) -> (i32, i32) {
    %c0_i32 = arith.constant 0 : i32
    %c0_i32_0 = arith.constant 0 : i32
    %c0_i32_1 = arith.constant 0 : i32
    return %c0_i32, %c0_i32_0 : i32, i32
  }
  func.func @transform_12(%arg0: i32, %arg1: i32) -> (i32, i32) {
    %c0_i32 = arith.constant 0 : i32
    %c0_i32_0 = arith.constant 0 : i32
    %c0_i32_1 = arith.constant 0 : i32
    return %c0_i32, %c0_i32_0 : i32, i32
  }
  func.func @transform_13(%arg0: i32, %arg1: i32) -> (i32, i32, i32) {
    %c0_i32 = arith.constant 0 : i32
    %c0_i32_0 = arith.constant 0 : i32
    %c0_i32_1 = arith.constant 0 : i32
    return %arg0, %c0_i32, %c0_i32_0 : i32, i32, i32
  }
}

</mosaic_0001>

<llo_original>
// kernel: resampler_forward.1
$region0: #{resampler_forward.1}
  #allocation0 [shape = 'u32[]', space=smem, size = 0x4, offset = 0x4, fixed_abs, tag = 'smem constant byte address 0x4 - core index']
  #allocation1 [shape = 'u32[72,128]{1,0:T(1,128)}', space=vmem, size = 0x9000, scoped, tag = 'internal scratch']
  #allocation2 [shape = 'f32[2,64,1]{2,1,0:T(8,128)}', space=vmem, size = 0x10000, scoped, tag = 'scratch operand']
  #allocation3 [shape = 'f32[2,64,1]{2,1,0:T(8,128)}', space=vmem, size = 0x10000, scoped, tag = 'scratch operand']
  #allocation4 [shape = 'f32[2,64,128]{2,1,0:T(8,128)}', space=vmem, size = 0x10000, scoped, tag = 'scratch operand']
  %s0 = inlined_call_operand.vmem [shape: bf16[2,256,96], index: 0, kind: input, shape index: {}]
  %s1 = inlined_call_operand.vmem [shape: bf16[2,64,128], index: 1, kind: input, shape index: {}]
  %s2 = inlined_call_operand.vmem [shape: bf16[256,256], index: 2, kind: input, shape index: {}]
  %s3 = inlined_call_operand.vmem [shape: bf16[96,256], index: 3, kind: input, shape index: {}]
  %s4 = inlined_call_operand.vmem [shape: f32[1,256], index: 4, kind: input, shape index: {}]
  %s5 = inlined_call_operand.vmem [shape: f32[1,256], index: 5, kind: input, shape index: {}]
  %s6 = inlined_call_operand.vmem [shape: bf16[256,512], index: 6, kind: input, shape index: {}]
  %s7 = inlined_call_operand.vmem [shape: f32[1,256], index: 7, kind: input, shape index: {}]
  %s8 = inlined_call_operand.vmem [shape: bf16[256,256], index: 8, kind: input, shape index: {}]
  %s9 = inlined_call_operand.vmem [shape: f32[1,256], index: 9, kind: input, shape index: {}]
  %s10 = inlined_call_operand.vmem [shape: f32[1,256], index: 10, kind: input, shape index: {}]
  %s11 = inlined_call_operand.vmem [shape: f32[1,256], index: 11, kind: input, shape index: {}]
  %s12 = inlined_call_operand.vmem [shape: bf16[256,256], index: 12, kind: input, shape index: {}]
  %s13 = inlined_call_operand.hbm [shape: f32[2,64,256], index: 13, kind: output, shape index: {}]
  %s14 = sld [smem:[#allocation0]]
  $region93: #{resampler_forward.1} parent=0
    _
  %s16 = ssub.s32 1, %s14
  %s17 = scalar_select 0, %s16, %s14
  $region1: #{resampler_forward.1} parent=0
    #allocation5 [shape = 'u8[131072]{0}', space=vmem, size = 0x20000, scoped, tag = 'output window, operand 0']
    #allocation6 [shape = 's32[2]{0}', space=sflag, size = 0x8, scoped, tag = 'scoped memory for resampler_forward.1']
    %18 = vsyncpa [#allocation6], 0
    %s19 = scalar_lea.sflag [#allocation6], 1
    %20 = vsyncpa %s19, 0
    loop: start=0, step=1, limit=6
    $region2: #{resampler_forward.1} parent=1 // loop_pre_header
      _
    $region3: #{resampler_forward.1} parent=1 // loop_header
      %s22 = sphi 0, %s26
      %p23 = scmp.ge.s32.totalorder %s22, 6
      %s29 = sphi 0, %s41
      %s30 = sphi 0, %s37
      %s31 = sphi 0, %s29
      %s32 = sphi 0, %s30
      %s33 = sphi 0, %s31
      %s34 = sphi 0, %s32
      %s46 = sphi 0, %s48
      %s49 = sphi 0, %s46
      %s50 = sphi 0, %s49
      %s66 = sphi 0, %s50
      %s70 = sphi 0, %s70
      %s72 = sphi 0, %s70
      %s73 = sphi 0, %s72
      %s87 = sphi 0, %s73
      %s93 = sphi 0, %s95
      %s96 = sphi 0, %s93
      %s97 = sphi 0, %s96
      %s113 = sphi 0, %s97
      %s117 = sphi 0, %s117
      %s119 = sphi 0, %s117
      %s120 = sphi 0, %s119
      %s134 = sphi 0, %s120
      %s138 = sphi 0, %s138
      %s140 = sphi 0, %s138
      %s141 = sphi 0, %s140
      %s155 = sphi 0, %s141
      %s159 = sphi 0, %s159
      %s161 = sphi 0, %s159
      %s162 = sphi 0, %s161
      %s176 = sphi 0, %s162
      %s180 = sphi 0, %s180
      %s182 = sphi 0, %s180
      %s183 = sphi 0, %s182
      %s197 = sphi 0, %s183
      %s201 = sphi 0, %s201
      %s203 = sphi 0, %s201
      %s204 = sphi 0, %s203
      %s218 = sphi 0, %s204
      %s222 = sphi 0, %s222
      %s224 = sphi 0, %s222
      %s225 = sphi 0, %s224
      %s239 = sphi 0, %s225
      %s243 = sphi 0, %s243
      %s245 = sphi 0, %s243
      %s246 = sphi 0, %s245
      %s260 = sphi 0, %s246
      %s264 = sphi 0, %s264
      %s266 = sphi 0, %s264
      %s267 = sphi 0, %s266
      %s281 = sphi 0, %s267
      %s285 = sphi 0, %s285
      %s287 = sphi 0, %s285
      %s288 = sphi 0, %s287
      %s302 = sphi 0, %s288
      %s306 = sphi 0, %s306
      %s308 = sphi 0, %s306
      %s309 = sphi 0, %s308
      %s323 = sphi 0, %s309
      %s329 = sphi 0, %s331
      %s332 = sphi 0, %s329
      %s333 = sphi 0, %s332
      %s349 = sphi 0, %s333
    $region4: #{resampler_forward.1} parent=1 // loop_header_branch
      %25 = sbr.rel (%p23) target = $region8
    $region5: #{resampler_forward.1} parent=1 // loop_body
      %s27 = ssub.s32 %s22, 1
      %s28 = ssub.s32 %s22, 2
      %s35 = sadd.s32 1, %s30
      %p36 = scmp.ge.s32.totalorder %s35, 2
      %s37 = scalar_select %p36, 0, %s35
      %s38 = sadd.s32 1, %s29
      %s39 = scalar_select %p36, %s38, %s29
      %p40 = scmp.ge.s32.totalorder %s39, 2
      %s41 = scalar_select %p40, 0, %s39
      %s42 = ssub.s32 %s29, %s41
      %s43 = ssub.s32 %s30, %s37
      %s44 = sor.u32 %s42, %s43
      %p45 = scmp.eq.s32.totalorder %s44, 0
      %s47 = sadd.s32 %s46, 1
      %s48 = scalar_select %p45, %s46, %s47
      %p51 = pneg %p45
      %p52 = scmp.eq.s32.totalorder %s22, 3
      %p53 = por %p51, %p52
      %p54 = scmp.ne.s32.totalorder %s46, %s49
      %p55 = scmp.eq.s32.totalorder %s22, 0
      %p56 = por %p54, %p55
      %p57 = scmp.ne.s32.totalorder %s46, %s49
      %p58 = scmp.eq.s32.totalorder %s27, 3
      %p59 = por %p57, %p58
      %p60 = scmp.ne.s32.totalorder %s49, %s50
      %p61 = scmp.eq.s32.totalorder %s27, 0
      %p62 = por %p60, %p61
      %p63 = scmp.ne.s32.totalorder %s49, %s50
      %p64 = scmp.eq.s32.totalorder %s28, 3
      %p65 = por %p63, %p64
      %p67 = scmp.ne.s32.totalorder %s50, %s66
      %p68 = scmp.eq.s32.totalorder %s28, 0
      %p69 = por %p67, %p68
      %s71 = sadd.s32 %s70, 1
      %p74 = scmp.eq.s32.totalorder %s22, 3
      %p75 = scmp.ne.s32.totalorder %s70, %s72
      %p76 = scmp.eq.s32.totalorder %s22, 0
      %p77 = por %p75, %p76
      %p78 = scmp.ne.s32.totalorder %s70, %s72
      %p79 = scmp.eq.s32.totalorder %s27, 3
      %p80 = por %p78, %p79
      %p81 = scmp.ne.s32.totalorder %s72, %s73
      %p82 = scmp.eq.s32.totalorder %s27, 0
      %p83 = por %p81, %p82
      %p84 = scmp.ne.s32.totalorder %s72, %s73
      %p85 = scmp.eq.s32.totalorder %s28, 3
      %p86 = por %p84, %p85
      %p88 = scmp.ne.s32.totalorder %s73, %s87
      %p89 = scmp.eq.s32.totalorder %s28, 0
      %p90 = por %p88, %p89
      %s91 = ssub.s32 %s30, %s37
      %p92 = scmp.eq.s32.totalorder %s91, 0
      %s94 = sadd.s32 %s93, 1
      %s95 = scalar_select %p92, %s93, %s94
      %p98 = pneg %p92
      %p99 = scmp.eq.s32.totalorder %s22, 3
      %p100 = por %p98, %p99
      %p101 = scmp.ne.s32.totalorder %s93, %s96
      %p102 = scmp.eq.s32.totalorder %s22, 0
      %p103 = por %p101, %p102
      %p104 = scmp.ne.s32.totalorder %s93, %s96
      %p105 = scmp.eq.s32.totalorder %s27, 3
      %p106 = por %p104, %p105
      %p107 = scmp.ne.s32.totalorder %s96, %s97
      %p108 = scmp.eq.s32.totalorder %s27, 0
      %p109 = por %p107, %p108
      %p110 = scmp.ne.s32.totalorder %s96, %s97
      %p111 = scmp.eq.s32.totalorder %s28, 3
      %p112 = por %p110, %p111
      %p114 = scmp.ne.s32.totalorder %s97, %s113
      %p115 = scmp.eq.s32.totalorder %s28, 0
      %p116 = por %p114, %p115
      %s118 = sadd.s32 %s117, 1
      %p121 = scmp.eq.s32.totalorder %s22, 3
      %p122 = scmp.ne.s32.totalorder %s117, %s119
      %p123 = scmp.eq.s32.totalorder %s22, 0
      %p124 = por %p122, %p123
      %p125 = scmp.ne.s32.totalorder %s117, %s119
      %p126 = scmp.eq.s32.totalorder %s27, 3
      %p127 = por %p125, %p126
      %p128 = scmp.ne.s32.totalorder %s119, %s120
      %p129 = scmp.eq.s32.totalorder %s27, 0
      %p130 = por %p128, %p129
      %p131 = scmp.ne.s32.totalorder %s119, %s120
      %p132 = scmp.eq.s32.totalorder %s28, 3
      %p133 = por %p131, %p132
      %p135 = scmp.ne.s32.totalorder %s120, %s134
      %p136 = scmp.eq.s32.totalorder %s28, 0
      %p137 = por %p135, %p136
      %s139 = sadd.s32 %s138, 1
      %p142 = scmp.eq.s32.totalorder %s22, 3
      %p143 = scmp.ne.s32.totalorder %s138, %s140
      %p144 = scmp.eq.s32.totalorder %s22, 0
      %p145 = por %p143, %p144
      %p146 = scmp.ne.s32.totalorder %s138, %s140
      %p147 = scmp.eq.s32.totalorder %s27, 3
      %p148 = por %p146, %p147
      %p149 = scmp.ne.s32.totalorder %s140, %s141
      %p150 = scmp.eq.s32.totalorder %s27, 0
      %p151 = por %p149, %p150
      %p152 = scmp.ne.s32.totalorder %s140, %s141
      %p153 = scmp.eq.s32.totalorder %s28, 3
      %p154 = por %p152, %p153
      %p156 = scmp.ne.s32.totalorder %s141, %s155
      %p157 = scmp.eq.s32.totalorder %s28, 0
      %p158 = por %p156, %p157
      %s160 = sadd.s32 %s159, 1
      %p163 = scmp.eq.s32.totalorder %s22, 3
      %p164 = scmp.ne.s32.totalorder %s159, %s161
      %p165 = scmp.eq.s32.totalorder %s22, 0
      %p166 = por %p164, %p165
      %p167 = scmp.ne.s32.totalorder %s159, %s161
      %p168 = scmp.eq.s32.totalorder %s27, 3
      %p169 = por %p167, %p168
      %p170 = scmp.ne.s32.totalorder %s161, %s162
      %p171 = scmp.eq.s32.totalorder %s27, 0
      %p172 = por %p170, %p171
      %p173 = scmp.ne.s32.totalorder %s161, %s162
      %p174 = scmp.eq.s32.totalorder %s28, 3
      %p175 = por %p173, %p174
      %p177 = scmp.ne.s32.totalorder %s162, %s176
      %p178 = scmp.eq.s32.totalorder %s28, 0
      %p179 = por %p177, %p178
      %s181 = sadd.s32 %s180, 1
      %p184 = scmp.eq.s32.totalorder %s22, 3
      %p185 = scmp.ne.s32.totalorder %s180, %s182
      %p186 = scmp.eq.s32.totalorder %s22, 0
      %p187 = por %p185, %p186
      %p188 = scmp.ne.s32.totalorder %s180, %s182
      %p189 = scmp.eq.s32.totalorder %s27, 3
      %p190 = por %p188, %p189
      %p191 = scmp.ne.s32.totalorder %s182, %s183
      %p192 = scmp.eq.s32.totalorder %s27, 0
      %p193 = por %p191, %p192
      %p194 = scmp.ne.s32.totalorder %s182, %s183
      %p195 = scmp.eq.s32.totalorder %s28, 3
      %p196 = por %p194, %p195
      %p198 = scmp.ne.s32.totalorder %s183, %s197
      %p199 = scmp.eq.s32.totalorder %s28, 0
      %p200 = por %p198, %p199
      %s202 = sadd.s32 %s201, 1
      %p205 = scmp.eq.s32.totalorder %s22, 3
      %p206 = scmp.ne.s32.totalorder %s201, %s203
      %p207 = scmp.eq.s32.totalorder %s22, 0
      %p208 = por %p206, %p207
      %p209 = scmp.ne.s32.totalorder %s201, %s203
      %p210 = scmp.eq.s32.totalorder %s27, 3
      %p211 = por %p209, %p210
      %p212 = scmp.ne.s32.totalorder %s203, %s204
      %p213 = scmp.eq.s32.totalorder %s27, 0
      %p214 = por %p212, %p213
      %p215 = scmp.ne.s32.totalorder %s203, %s204
      %p216 = scmp.eq.s32.totalorder %s28, 3
      %p217 = por %p215, %p216
      %p219 = scmp.ne.s32.totalorder %s204, %s218
      %p220 = scmp.eq.s32.totalorder %s28, 0
      %p221 = por %p219, %p220
      %s223 = sadd.s32 %s222, 1
      %p226 = scmp.eq.s32.totalorder %s22, 3
      %p227 = scmp.ne.s32.totalorder %s222, %s224
      %p228 = scmp.eq.s32.totalorder %s22, 0
      %p229 = por %p227, %p228
      %p230 = scmp.ne.s32.totalorder %s222, %s224
      %p231 = scmp.eq.s32.totalorder %s27, 3
      %p232 = por %p230, %p231
      %p233 = scmp.ne.s32.totalorder %s224, %s225
      %p234 = scmp.eq.s32.totalorder %s27, 0
      %p235 = por %p233, %p234
      %p236 = scmp.ne.s32.totalorder %s224, %s225
      %p237 = scmp.eq.s32.totalorder %s28, 3
      %p238 = por %p236, %p237
      %p240 = scmp.ne.s32.totalorder %s225, %s239
      %p241 = scmp.eq.s32.totalorder %s28, 0
      %p242 = por %p240, %p241
      %s244 = sadd.s32 %s243, 1
      %p247 = scmp.eq.s32.totalorder %s22, 3
      %p248 = scmp.ne.s32.totalorder %s243, %s245
      %p249 = scmp.eq.s32.totalorder %s22, 0
      %p250 = por %p248, %p249
      %p251 = scmp.ne.s32.totalorder %s243, %s245
      %p252 = scmp.eq.s32.totalorder %s27, 3
      %p253 = por %p251, %p252
      %p254 = scmp.ne.s32.totalorder %s245, %s246
      %p255 = scmp.eq.s32.totalorder %s27, 0
      %p256 = por %p254, %p255
      %p257 = scmp.ne.s32.totalorder %s245, %s246
      %p258 = scmp.eq.s32.totalorder %s28, 3
      %p259 = por %p257, %p258
      %p261 = scmp.ne.s32.totalorder %s246, %s260
      %p262 = scmp.eq.s32.totalorder %s28, 0
      %p263 = por %p261, %p262
      %s265 = sadd.s32 %s264, 1
      %p268 = scmp.eq.s32.totalorder %s22, 3
      %p269 = scmp.ne.s32.totalorder %s264, %s266
      %p270 = scmp.eq.s32.totalorder %s22, 0
      %p271 = por %p269, %p270
      %p272 = scmp.ne.s32.totalorder %s264, %s266
      %p273 = scmp.eq.s32.totalorder %s27, 3
      %p274 = por %p272, %p273
      %p275 = scmp.ne.s32.totalorder %s266, %s267
      %p276 = scmp.eq.s32.totalorder %s27, 0
      %p277 = por %p275, %p276
      %p278 = scmp.ne.s32.totalorder %s266, %s267
      %p279 = scmp.eq.s32.totalorder %s28, 3
      %p280 = por %p278, %p279
      %p282 = scmp.ne.s32.totalorder %s267, %s281
      %p283 = scmp.eq.s32.totalorder %s28, 0
      %p284 = por %p282, %p283
      %s286 = sadd.s32 %s285, 1
      %p289 = scmp.eq.s32.totalorder %s22, 3
      %p290 = scmp.ne.s32.totalorder %s285, %s287
      %p291 = scmp.eq.s32.totalorder %s22, 0
      %p292 = por %p290, %p291
      %p293 = scmp.ne.s32.totalorder %s285, %s287
      %p294 = scmp.eq.s32.totalorder %s27, 3
      %p295 = por %p293, %p294
      %p296 = scmp.ne.s32.totalorder %s287, %s288
      %p297 = scmp.eq.s32.totalorder %s27, 0
      %p298 = por %p296, %p297
      %p299 = scmp.ne.s32.totalorder %s287, %s288
      %p300 = scmp.eq.s32.totalorder %s28, 3
      %p301 = por %p299, %p300
      %p303 = scmp.ne.s32.totalorder %s288, %s302
      %p304 = scmp.eq.s32.totalorder %s28, 0
      %p305 = por %p303, %p304
      %s307 = sadd.s32 %s306, 1
      %p310 = scmp.eq.s32.totalorder %s22, 3
      %p311 = scmp.ne.s32.totalorder %s306, %s308
      %p312 = scmp.eq.s32.totalorder %s22, 0
      %p313 = por %p311, %p312
      %p314 = scmp.ne.s32.totalorder %s306, %s308
      %p315 = scmp.eq.s32.totalorder %s27, 3
      %p316 = por %p314, %p315
      %p317 = scmp.ne.s32.totalorder %s308, %s309
      %p318 = scmp.eq.s32.totalorder %s27, 0
      %p319 = por %p317, %p318
      %p320 = scmp.ne.s32.totalorder %s308, %s309
      %p321 = scmp.eq.s32.totalorder %s28, 3
      %p322 = por %p320, %p321
      %p324 = scmp.ne.s32.totalorder %s309, %s323
      %p325 = scmp.eq.s32.totalorder %s28, 0
      %p326 = por %p324, %p325
      %s327 = ssub.s32 %s29, %s41
      %p328 = scmp.eq.s32.totalorder %s327, 0
      %s330 = sadd.s32 %s329, 1
      %s331 = scalar_select %p328, %s329, %s330
      %p334 = pneg %p328
      %p335 = scmp.eq.s32.totalorder %s22, 3
      %p336 = por %p334, %p335
      %p337 = scmp.ne.s32.totalorder %s329, %s332
      %p338 = scmp.eq.s32.totalorder %s22, 0
      %p339 = por %p337, %p338
      %p340 = scmp.ne.s32.totalorder %s329, %s332
      %p341 = scmp.eq.s32.totalorder %s27, 3
      %p342 = por %p340, %p341
      %p343 = scmp.ne.s32.totalorder %s332, %s333
      %p344 = scmp.eq.s32.totalorder %s27, 0
      %p345 = por %p343, %p344
      %p346 = scmp.ne.s32.totalorder %s332, %s333
      %p347 = scmp.eq.s32.totalorder %s28, 3
      %p348 = por %p346, %p347
      %p350 = scmp.ne.s32.totalorder %s333, %s349
      %p351 = scmp.eq.s32.totalorder %s28, 0
      %p352 = por %p350, %p351
      %p353 = scmp.le.s32.totalorder 1, %s22
      %p354 = scmp.lt.s32.totalorder %s22, 5
      %p355 = pnand %p353, %p354
      %p356 = pneg %p355
      // Predicated region
      $region9: #{resampler_forward.1} parent=5 // pred_check
        _
      $region10: #{resampler_forward.1} parent=5 // pred_check_branch
        %358 = sbr.rel (%p355) target = $region12
      $region11: #{resampler_forward.1} parent=5 // pred_region
        %s359 = ssub.s32 %s22, 1
        // Predicated region
        $region13: #{resampler_forward.1} parent=11 // pred_check
          %p360 = pneg %p83
        $region14: #{resampler_forward.1} parent=11 // pred_check_branch
          %362 = sbr.rel (%p360) target = $region16
        $region15: #{resampler_forward.1} parent=11 // pred_region
          _
        $region16: #{resampler_forward.1} parent=11 // pred_fallthru
          _
        // Predicated region
        $region17: #{resampler_forward.1} parent=11 // pred_check
          %p363 = pneg %p130
        $region18: #{resampler_forward.1} parent=11 // pred_check_branch
          %365 = sbr.rel (%p363) target = $region20
        $region19: #{resampler_forward.1} parent=11 // pred_region
          _
        $region20: #{resampler_forward.1} parent=11 // pred_fallthru
          _
        // Predicated region
        $region21: #{resampler_forward.1} parent=11 // pred_check
          %p366 = pneg %p151
        $region22: #{resampler_forward.1} parent=11 // pred_check_branch
          %368 = sbr.rel (%p366) target = $region24
        $region23: #{resampler_forward.1} parent=11 // pred_region
          _
        $region24: #{resampler_forward.1} parent=11 // pred_fallthru
          _
        // Predicated region
        $region25: #{resampler_forward.1} parent=11 // pred_check
          %p369 = pneg %p172
        $region26: #{resampler_forward.1} parent=11 // pred_check_branch
          %371 = sbr.rel (%p369) target = $region28
        $region27: #{resampler_forward.1} parent=11 // pred_region
          _
        $region28: #{resampler_forward.1} parent=11 // pred_fallthru
          _
        // Predicated region
        $region29: #{resampler_forward.1} parent=11 // pred_check
          %p372 = pneg %p193
        $region30: #{resampler_forward.1} parent=11 // pred_check_branch
          %374 = sbr.rel (%p372) target = $region32
        $region31: #{resampler_forward.1} parent=11 // pred_region
          _
        $region32: #{resampler_forward.1} parent=11 // pred_fallthru
          _
        // Predicated region
        $region33: #{resampler_forward.1} parent=11 // pred_check
          %p375 = pneg %p214
        $region34: #{resampler_forward.1} parent=11 // pred_check_branch
          %377 = sbr.rel (%p375) target = $region36
        $region35: #{resampler_forward.1} parent=11 // pred_region
          _
        $region36: #{resampler_forward.1} parent=11 // pred_fallthru
          _
        // Predicated region
        $region37: #{resampler_forward.1} parent=11 // pred_check
          %p378 = pneg %p235
        $region38: #{resampler_forward.1} parent=11 // pred_check_branch
          %380 = sbr.rel (%p378) target = $region40
        $region39: #{resampler_forward.1} parent=11 // pred_region
          _
        $region40: #{resampler_forward.1} parent=11 // pred_fallthru
          _
        // Predicated region
        $region41: #{resampler_forward.1} parent=11 // pred_check
          %p381 = pneg %p256
        $region42: #{resampler_forward.1} parent=11 // pred_check_branch
          %383 = sbr.rel (%p381) target = $region44
        $region43: #{resampler_forward.1} parent=11 // pred_region
          _
        $region44: #{resampler_forward.1} parent=11 // pred_fallthru
          _
        // Predicated region
        $region45: #{resampler_forward.1} parent=11 // pred_check
          %p384 = pneg %p277
        $region46: #{resampler_forward.1} parent=11 // pred_check_branch
          %386 = sbr.rel (%p384) target = $region48
        $region47: #{resampler_forward.1} parent=11 // pred_region
          _
        $region48: #{resampler_forward.1} parent=11 // pred_fallthru
          _
        // Predicated region
        $region49: #{resampler_forward.1} parent=11 // pred_check
          %p387 = pneg %p298
        $region50: #{resampler_forward.1} parent=11 // pred_check_branch
          %389 = sbr.rel (%p387) target = $region52
        $region51: #{resampler_forward.1} parent=11 // pred_region
          _
        $region52: #{resampler_forward.1} parent=11 // pred_fallthru
          _
        // Predicated region
        $region53: #{resampler_forward.1} parent=11 // pred_check
          %p390 = pneg %p319
        $region54: #{resampler_forward.1} parent=11 // pred_check_branch
          %392 = sbr.rel (%p390) target = $region56
        $region55: #{resampler_forward.1} parent=11 // pred_region
          _
        $region56: #{resampler_forward.1} parent=11 // pred_fallthru
          _
      $region12: #{resampler_forward.1} parent=5 // pred_fallthru
        _
      %p393 = scmp.lt.s32.totalorder %s22, 4
      // Predicated region
      $region57: #{resampler_forward.1} parent=5 // pred_check
        %p394 = pneg %p393
      $region58: #{resampler_forward.1} parent=5 // pred_check_branch
        %396 = sbr.rel (%p394) target = $region60
      $region59: #{resampler_forward.1} parent=5 // pred_region
        // Predicated region
        $region61: #{resampler_forward.1} parent=59 // pred_check
          %p397 = pneg %p56
        $region62: #{resampler_forward.1} parent=59 // pred_check_branch
          %399 = sbr.rel (%p397) target = $region64
        $region63: #{resampler_forward.1} parent=59 // pred_region
          %s400 = smul.u32 16, %s30
          %p401 = scmp.lt.s32.totalorder %s29, 1
          %s402 = scalar_select %p401, %s29, 1
          %p403 = scmp.lt.s32.totalorder %s400, 31
          %s404 = scalar_select %p403, %s400, 31
          %s405 = smul.addr %s402, 32
          %s406 = sadd.s32 %s404, %s405
          %s407 = smul.addr %s406, 4
          %s408 = scalar_lea.vmem %s0, %s407
          %s409 = smul.u32 16, %s30
        $region64: #{resampler_forward.1} parent=59 // pred_fallthru
          _
        // Predicated region
        $region65: #{resampler_forward.1} parent=59 // pred_check
          %p410 = pneg %p103
        $region66: #{resampler_forward.1} parent=59 // pred_check_branch
          %412 = sbr.rel (%p410) target = $region68
        $region67: #{resampler_forward.1} parent=59 // pred_region
          %s413 = smul.u32 16, %s30
          %p414 = scmp.lt.s32.totalorder %s413, 31
          %s415 = scalar_select %p414, %s413, 31
          %s416 = smul.addr %s415, 2
          %s417 = smul.addr %s416, 4
          %s418 = scalar_lea.vmem %s2, %s417
          %s419 = smul.u32 16, %s30
        $region68: #{resampler_forward.1} parent=59 // pred_fallthru
          _
      $region60: #{resampler_forward.1} parent=5 // pred_fallthru
        _
      %p420 = scmp.le.s32.totalorder 1, %s22
      %p421 = scmp.lt.s32.totalorder %s22, 5
      %p422 = pnand %p420, %p421
      %p423 = pneg %p422
      // Predicated region
      $region69: #{resampler_forward.1} parent=5 // pred_check
        _
      $region70: #{resampler_forward.1} parent=5 // pred_check_branch
        %425 = sbr.rel (%p422) target = $region72
      $region71: #{resampler_forward.1} parent=5 // pred_region
        %s426 = ssub.s32 %s22, 1
        %s427 = smul.u32 16, %s32
        %p428 = scmp.lt.s32.totalorder %s31, 1
        %s429 = scalar_select %p428, %s31, 1
        %p430 = scmp.lt.s32.totalorder %s427, 31
        %s431 = scalar_select %p430, %s427, 31
        %s432 = smul.addr %s429, 32
        %s433 = sadd.s32 %s431, %s432
        %s434 = smul.addr %s433, 4
        %s435 = scalar_lea.vmem %s0, %s434
        %p436 = pneg %p62
        %p437 = pneg %p59
        %p438 = pneg %p83
        %p439 = pneg %p80
        %s440 = smul.u32 16, %s32
        %p441 = scmp.lt.s32.totalorder %s440, 31
        %s442 = scalar_select %p441, %s440, 31
        %s443 = smul.addr %s442, 2
        %s444 = smul.addr %s443, 4
        %s445 = scalar_lea.vmem %s2, %s444
        %p446 = pneg %p109
        %p447 = pneg %p106
        %p448 = pneg %p130
        %p449 = pneg %p127
        %p450 = pneg %p151
        %p451 = pneg %p148
        %p452 = pneg %p172
        %p453 = pneg %p169
        %p454 = pneg %p193
        %p455 = pneg %p190
        %p456 = pneg %p214
        %p457 = pneg %p211
        %p458 = pneg %p235
        %p459 = pneg %p232
        %p460 = pneg %p256
        %p461 = pneg %p253
        %p462 = pneg %p277
        %p463 = pneg %p274
        %p464 = pneg %p298
        %p465 = pneg %p295
        %p466 = pneg %p319
        %p467 = pneg %p316
        %p468 = pneg %p345
        %p469 = pneg %p342
        %s470 = sand.u32 %s332, 1
        %s471 = scalar_lea.sflag [#allocation6], %s470
        %s472 = sand.u32 %s332, 1
        %s473 = smul.addr %s472, 128
        %s474 = scalar_lea.vmem [#allocation5], %s473
        %s475 = smul.u32 16, %s32
        %p476 = scmp.lt.s32.totalorder %s31, 1
        %s477 = scalar_select %p476, %s31, 1
        %p478 = scmp.lt.s32.totalorder %s475, 31
        %s479 = scalar_select %p478, %s475, 31
        %s480 = smul.addr %s477, 32
        %s481 = sadd.s32 %s479, %s480
        %s482 = smul.addr %s481, 4
        %s483 = scalar_lea.vmem %s0, %s482
        %s484 = smul.u32 16, %s32
        %s485 = smul.u32 16, %s32
        %p486 = scmp.lt.s32.totalorder %s485, 31
        %s487 = scalar_select %p486, %s485, 31
        %s488 = smul.addr %s487, 2
        %s489 = smul.addr %s488, 4
        %s490 = scalar_lea.vmem %s2, %s489
        %s491 = smul.u32 16, %s32
        %p493 = scmp.eq.s32.totalorder %s32, 0
        // Predicated region
        $region73: #{resampler_forward.1} parent=71 // pred_check
          %p494 = pneg %p493
        $region74: #{resampler_forward.1} parent=71 // pred_check_branch
          %496 = sbr.rel (%p494) target = $region76
        $region75: #{resampler_forward.1} parent=71 // pred_region
          %vm497 = vcmask 7168
          %498 = vst.msk [vmem:[#allocation2] sm:$0xff] %vm497, -inf
          %499 = vst.msk [vmem:[#allocation2 + $0x8] sm:$0xff] %vm497, -inf
          %500 = vst.msk [vmem:[#allocation2 + $0x10] sm:$0xff] %vm497, -inf
          %501 = vst.msk [vmem:[#allocation2 + $0x18] sm:$0xff] %vm497, -inf
          %502 = vst.msk [vmem:[#allocation2 + $0x20] sm:$0xff] %vm497, -inf
          %503 = vst.msk [vmem:[#allocation2 + $0x28] sm:$0xff] %vm497, -inf
          %504 = vst.msk [vmem:[#allocation2 + $0x30] sm:$0xff] %vm497, -inf
          %505 = vst.msk [vmem:[#allocation2 + $0x38] sm:$0xff] %vm497, -inf
          %506 = vst.msk [vmem:[#allocation2 + $0x40] sm:$0xff] %vm497, -inf
          %507 = vst.msk [vmem:[#allocation2 + $0x48] sm:$0xff] %vm497, -inf
          %508 = vst.msk [vmem:[#allocation2 + $0x50] sm:$0xff] %vm497, -inf
          %509 = vst.msk [vmem:[#allocation2 + $0x58] sm:$0xff] %vm497, -inf
          %510 = vst.msk [vmem:[#allocation2 + $0x60] sm:$0xff] %vm497, -inf
          %511 = vst.msk [vmem:[#allocation2 + $0x68] sm:$0xff] %vm497, -inf
          %512 = vst.msk [vmem:[#allocation2 + $0x70] sm:$0xff] %vm497, -inf
          %513 = vst.msk [vmem:[#allocation2 + $0x78] sm:$0xff] %vm497, -inf
          %514 = vst.msk [vmem:[#allocation3] sm:$0xff] %vm497, 0.0
          %515 = vst.msk [vmem:[#allocation3 + $0x8] sm:$0xff] %vm497, 0.0
          %516 = vst.msk [vmem:[#allocation3 + $0x10] sm:$0xff] %vm497, 0.0
          %517 = vst.msk [vmem:[#allocation3 + $0x18] sm:$0xff] %vm497, 0.0
          %518 = vst.msk [vmem:[#allocation3 + $0x20] sm:$0xff] %vm497, 0.0
          %519 = vst.msk [vmem:[#allocation3 + $0x28] sm:$0xff] %vm497, 0.0
          %520 = vst.msk [vmem:[#allocation3 + $0x30] sm:$0xff] %vm497, 0.0
          %521 = vst.msk [vmem:[#allocation3 + $0x38] sm:$0xff] %vm497, 0.0
          %522 = vst.msk [vmem:[#allocation3 + $0x40] sm:$0xff] %vm497, 0.0
          %523 = vst.msk [vmem:[#allocation3 + $0x48] sm:$0xff] %vm497, 0.0
          %524 = vst.msk [vmem:[#allocation3 + $0x50] sm:$0xff] %vm497, 0.0
          %525 = vst.msk [vmem:[#allocation3 + $0x58] sm:$0xff] %vm497, 0.0
          %526 = vst.msk [vmem:[#allocation3 + $0x60] sm:$0xff] %vm497, 0.0
          %527 = vst.msk [vmem:[#allocation3 + $0x68] sm:$0xff] %vm497, 0.0
          %528 = vst.msk [vmem:[#allocation3 + $0x70] sm:$0xff] %vm497, 0.0
          %529 = vst.msk [vmem:[#allocation3 + $0x78] sm:$0xff] %vm497, 0.0
          %530 = vst [vmem:[#allocation4] sm:$0xff] 0.0
          %531 = vst [vmem:[#allocation4 + $0x8] sm:$0xff] 0.0
          %532 = vst [vmem:[#allocation4 + $0x10] sm:$0xff] 0.0
          %533 = vst [vmem:[#allocation4 + $0x18] sm:$0xff] 0.0
          %534 = vst [vmem:[#allocation4 + $0x20] sm:$0xff] 0.0
          %535 = vst [vmem:[#allocation4 + $0x28] sm:$0xff] 0.0
          %536 = vst [vmem:[#allocation4 + $0x30] sm:$0xff] 0.0
          %537 = vst [vmem:[#allocation4 + $0x38] sm:$0xff] 0.0
          %538 = vst [vmem:[#allocation4 + $0x40] sm:$0xff] 0.0
          %539 = vst [vmem:[#allocation4 + $0x48] sm:$0xff] 0.0
          %540 = vst [vmem:[#allocation4 + $0x50] sm:$0xff] 0.0
          %541 = vst [vmem:[#allocation4 + $0x58] sm:$0xff] 0.0
          %542 = vst [vmem:[#allocation4 + $0x60] sm:$0xff] 0.0
          %543 = vst [vmem:[#allocation4 + $0x68] sm:$0xff] 0.0
          %544 = vst [vmem:[#allocation4 + $0x70] sm:$0xff] 0.0
          %545 = vst [vmem:[#allocation4 + $0x78] sm:$0xff] 0.0
        $region76: #{resampler_forward.1} parent=71 // pred_fallthru
          _
        %v546 = vld [vmem:[%s483] sm:$0xf]
        %v547 = vld [vmem:[%s483 + $0x4] sm:$0xf]
        %v548 = vld [vmem:[%s483 + $0x8] sm:$0xf]
        %v549 = vld [vmem:[%s483 + $0xc] sm:$0xf]
        %v550 = vld [vmem:[%s483 + $0x10] sm:$0xf]
        %v551 = vld [vmem:[%s483 + $0x14] sm:$0xf]
        %v552 = vld [vmem:[%s483 + $0x18] sm:$0xf]
        %v553 = vld [vmem:[%s483 + $0x1c] sm:$0xf]
        %v554 = vld [vmem:[%s483 + $0x20] sm:$0xf]
        %v555 = vld [vmem:[%s483 + $0x24] sm:$0xf]
        %v556 = vld [vmem:[%s483 + $0x28] sm:$0xf]
        %v557 = vld [vmem:[%s483 + $0x2c] sm:$0xf]
        %v558 = vld [vmem:[%s483 + $0x30] sm:$0xf]
        %v559 = vld [vmem:[%s483 + $0x34] sm:$0xf]
        %v560 = vld [vmem:[%s483 + $0x38] sm:$0xf]
        %v561 = vld [vmem:[%s483 + $0x3c] sm:$0xf]
        %v562 = vld [vmem:[%s3] sm:$0xff]
        %v563 = vld [vmem:[%s3 + $0x8] sm:$0xff]
        %v564 = vld [vmem:[%s3 + $0x10] sm:$0xff]
        %v565 = vld [vmem:[%s3 + $0x18] sm:$0xff]
        %v566 = vld [vmem:[%s3 + $0x20] sm:$0xff]
        %v567 = vld [vmem:[%s3 + $0x28] sm:$0xff]
        %v568 = vld [vmem:[%s3 + $0x30] sm:$0xff]
        %v569 = vld [vmem:[%s3 + $0x38] sm:$0xff]
        %v570 = vld [vmem:[%s3 + $0x40] sm:$0xff]
        %v571 = vld [vmem:[%s3 + $0x48] sm:$0xff]
        %v572 = vld [vmem:[%s3 + $0x50] sm:$0xff]
        %v573 = vld [vmem:[%s3 + $0x58] sm:$0xff]
        %v590 = vunpack.c.l.b16 %v546
        %v591 = vunpack.c.l.b16 %v547
        %v592 = vunpack.c.l.b16 %v548
        %v593 = vunpack.c.l.b16 %v549
        %v594 = vunpack.c.l.b16 %v550
        %v595 = vunpack.c.l.b16 %v551
        %v596 = vunpack.c.l.b16 %v552
        %v597 = vunpack.c.l.b16 %v553
        %v598 = vunpack.c.l.b16 %v554
        %v599 = vunpack.c.l.b16 %v555
        %v600 = vunpack.c.l.b16 %v556
        %v601 = vunpack.c.l.b16 %v557
        %v602 = vunpack.c.l.b16 %v558
        %v603 = vunpack.c.l.b16 %v559
        %v604 = vunpack.c.l.b16 %v560
        %v605 = vunpack.c.l.b16 %v561
        %v606 = vpack.c.b16 %v591, %v590
        %v607 = vpack.c.b16 %v593, %v592
        %v608 = vpack.c.b16 %v595, %v594
        %v609 = vpack.c.b16 %v597, %v596
        %v610 = vpack.c.b16 %v599, %v598
        %v611 = vpack.c.b16 %v601, %v600
        %v612 = vpack.c.b16 %v603, %v602
        %v613 = vpack.c.b16 %v605, %v604
        %v626 = vunpack.c.l.b16 %v562
        %v627 = vunpack.c.h.b16 %v562
        %v628 = vunpack.c.l.b16 %v563
        %v629 = vunpack.c.h.b16 %v563
        %v630 = vunpack.c.l.b16 %v564
        %v631 = vunpack.c.h.b16 %v564
        %v632 = vunpack.c.l.b16 %v565
        %v633 = vunpack.c.h.b16 %v565
        %v634 = vunpack.c.l.b16 %v566
        %v635 = vunpack.c.h.b16 %v566
        %v636 = vunpack.c.l.b16 %v567
        %v637 = vunpack.c.h.b16 %v567
        %v638 = vunpack.c.l.b16 %v568
        %v639 = vunpack.c.h.b16 %v568
        %v640 = vunpack.c.l.b16 %v569
        %v641 = vunpack.c.h.b16 %v569
        %v642 = vunpack.c.l.b16 %v570
        %v643 = vunpack.c.h.b16 %v570
        %v644 = vunpack.c.l.b16 %v571
        %v645 = vunpack.c.h.b16 %v571
        %v646 = vunpack.c.l.b16 %v572
        %v647 = vunpack.c.h.b16 %v572
        %v648 = vunpack.c.l.b16 %v573
        %v649 = vunpack.c.h.b16 %v573
        %v650 = vpack.c.b16 %v628, %v626
        %v651 = vpack.c.b16 %v629, %v627
        %v652 = vpack.c.b16 %v632, %v630
        %v653 = vpack.c.b16 %v633, %v631
        %v654 = vpack.c.b16 %v636, %v634
        %v655 = vpack.c.b16 %v637, %v635
        %v656 = vpack.c.b16 %v640, %v638
        %v657 = vpack.c.b16 %v641, %v639
        %v658 = vpack.c.b16 %v644, %v642
        %v659 = vpack.c.b16 %v645, %v643
        %v660 = vpack.c.b16 %v648, %v646
        %v661 = vpack.c.b16 %v649, %v647
        %vm674 = vcmask 785408
        %v676 = vsel %vm674, %v606, 0
        %v679 = vsel %vm674, %v607, 0
        %v682 = vsel %vm674, %v608, 0
        %v685 = vsel %vm674, %v609, 0
        %v688 = vsel %vm674, %v610, 0
        %v691 = vsel %vm674, %v611, 0
        %v694 = vsel %vm674, %v612, 0
        %v697 = vsel %vm674, %v613, 0
        %699 = vmatpush.bf16.msra.mxu0 0
        %700 = vmatpush.bf16.msra.mxu0 0
        %701 = vmatpush.bf16.msra.mxu0 %v660
        %702 = vmatpush.bf16.msra.mxu0 %v658
        %703 = vmatpush.bf16.msra.mxu0 %v656
        %704 = vmatpush.bf16.msra.mxu0 %v654
        %705 = vmatpush.bf16.msra.mxu0 %v652
        %706 = vmatpush.bf16.msra.mxu0 %v650
        %707 = vmatmul.bf16.gmra.mxu0 %v676
        %v708 = vpop.f32.mrf.mxu0
        %v709 = vadd.f32 0.0, %v708
        %v710 = vpop.f32.mrf.mxu0
        %v711 = vadd.f32 0.0, %v710
        %712 = vmatmul.bf16.gmra.mxu0 %v679
        %v713 = vpop.f32.mrf.mxu0
        %v714 = vadd.f32 0.0, %v713
        %v715 = vpop.f32.mrf.mxu0
        %v716 = vadd.f32 0.0, %v715
        %717 = vmatmul.bf16.gmra.mxu0 %v682
        %v718 = vpop.f32.mrf.mxu0
        %v719 = vadd.f32 0.0, %v718
        %v720 = vpop.f32.mrf.mxu0
        %v721 = vadd.f32 0.0, %v720
        %722 = vmatmul.bf16.gmra.mxu0 %v685
        %v723 = vpop.f32.mrf.mxu0
        %v724 = vadd.f32 0.0, %v723
        %v725 = vpop.f32.mrf.mxu0
        %v726 = vadd.f32 0.0, %v725
        %727 = vmatmul.bf16.gmra.mxu0 %v688
        %v728 = vpop.f32.mrf.mxu0
        %v729 = vadd.f32 0.0, %v728
        %v730 = vpop.f32.mrf.mxu0
        %v731 = vadd.f32 0.0, %v730
        %732 = vmatmul.bf16.gmra.mxu0 %v691
        %v733 = vpop.f32.mrf.mxu0
        %v734 = vadd.f32 0.0, %v733
        %v735 = vpop.f32.mrf.mxu0
        %v736 = vadd.f32 0.0, %v735
        %737 = vmatmul.bf16.gmra.mxu0 %v694
        %v738 = vpop.f32.mrf.mxu0
        %v739 = vadd.f32 0.0, %v738
        %v740 = vpop.f32.mrf.mxu0
        %v741 = vadd.f32 0.0, %v740
        %742 = vmatmul.bf16.gmra.mxu0 %v697
        %v743 = vpop.f32.mrf.mxu0
        %v744 = vadd.f32 0.0, %v743
        %v745 = vpop.f32.mrf.mxu0
        %v746 = vadd.f32 0.0, %v745
        %747 = vdwg.mxu0
        %748 = vmatpush.bf16.msra.mxu0 0
        %749 = vmatpush.bf16.msra.mxu0 0
        %750 = vmatpush.bf16.msra.mxu0 %v661
        %751 = vmatpush.bf16.msra.mxu0 %v659
        %752 = vmatpush.bf16.msra.mxu0 %v657
        %753 = vmatpush.bf16.msra.mxu0 %v655
        %754 = vmatpush.bf16.msra.mxu0 %v653
        %755 = vmatpush.bf16.msra.mxu0 %v651
        %756 = vmatmul.bf16.gmra.mxu0 %v676
        %v757 = vpop.f32.mrf.mxu0
        %v758 = vadd.f32 0.0, %v757
        %v759 = vpop.f32.mrf.mxu0
        %v760 = vadd.f32 0.0, %v759
        %761 = vmatmul.bf16.gmra.mxu0 %v679
        %v762 = vpop.f32.mrf.mxu0
        %v763 = vadd.f32 0.0, %v762
        %v764 = vpop.f32.mrf.mxu0
        %v765 = vadd.f32 0.0, %v764
        %766 = vmatmul.bf16.gmra.mxu0 %v682
        %v767 = vpop.f32.mrf.mxu0
        %v768 = vadd.f32 0.0, %v767
        %v769 = vpop.f32.mrf.mxu0
        %v770 = vadd.f32 0.0, %v769
        %771 = vmatmul.bf16.gmra.mxu0 %v685
        %v772 = vpop.f32.mrf.mxu0
        %v773 = vadd.f32 0.0, %v772
        %v774 = vpop.f32.mrf.mxu0
        %v775 = vadd.f32 0.0, %v774
        %776 = vmatmul.bf16.gmra.mxu0 %v688
        %v777 = vpop.f32.mrf.mxu0
        %v778 = vadd.f32 0.0, %v777
        %v779 = vpop.f32.mrf.mxu0
        %v780 = vadd.f32 0.0, %v779
        %781 = vmatmul.bf16.gmra.mxu0 %v691
        %v782 = vpop.f32.mrf.mxu0
        %v783 = vadd.f32 0.0, %v782
        %v784 = vpop.f32.mrf.mxu0
        %v785 = vadd.f32 0.0, %v784
        %786 = vmatmul.bf16.gmra.mxu0 %v694
        %v787 = vpop.f32.mrf.mxu0
        %v788 = vadd.f32 0.0, %v787
        %v789 = vpop.f32.mrf.mxu0
        %v790 = vadd.f32 0.0, %v789
        %791 = vmatmul.bf16.gmra.mxu0 %v697
        %v792 = vpop.f32.mrf.mxu0
        %v793 = vadd.f32 0.0, %v792
        %v794 = vpop.f32.mrf.mxu0
        %v795 = vadd.f32 0.0, %v794
        %796 = vdwg.mxu0
        %v797 = vld [vmem:[%s4] sm:$0x3]
        %v798 = vld [vmem:[%s5] sm:$0x3]
        %v799 = vadd.f32 %v709, %v758
        %800 = vadd.xlane.f32.xlu0 %v799
        %v801 = vpop.xlane.xlu0 %800
        %v802 = vadd.f32 %v711, %v760
        %803 = vadd.xlane.f32.xlu0 %v802
        %v804 = vpop.xlane.xlu0 %803
        %v805 = vadd.f32 %v714, %v763
        %806 = vadd.xlane.f32.xlu0 %v805
        %v807 = vpop.xlane.xlu0 %806
        %v808 = vadd.f32 %v716, %v765
        %809 = vadd.xlane.f32.xlu0 %v808
        %v810 = vpop.xlane.xlu0 %809
        %v811 = vadd.f32 %v719, %v768
        %812 = vadd.xlane.f32.xlu0 %v811
        %v813 = vpop.xlane.xlu0 %812
        %v814 = vadd.f32 %v721, %v770
        %815 = vadd.xlane.f32.xlu0 %v814
        %v816 = vpop.xlane.xlu0 %815
        %v817 = vadd.f32 %v724, %v773
        %818 = vadd.xlane.f32.xlu0 %v817
        %v819 = vpop.xlane.xlu0 %818
        %v820 = vadd.f32 %v726, %v775
        %821 = vadd.xlane.f32.xlu0 %v820
        %v822 = vpop.xlane.xlu0 %821
        %v823 = vadd.f32 %v729, %v778
        %824 = vadd.xlane.f32.xlu0 %v823
        %v825 = vpop.xlane.xlu0 %824
        %v826 = vadd.f32 %v731, %v780
        %827 = vadd.xlane.f32.xlu0 %v826
        %v828 = vpop.xlane.xlu0 %827
        %v829 = vadd.f32 %v734, %v783
        %830 = vadd.xlane.f32.xlu0 %v829
        %v831 = vpop.xlane.xlu0 %830
        %v832 = vadd.f32 %v736, %v785
        %833 = vadd.xlane.f32.xlu0 %v832
        %v834 = vpop.xlane.xlu0 %833
        %v835 = vadd.f32 %v739, %v788
        %836 = vadd.xlane.f32.xlu0 %v835
        %v837 = vpop.xlane.xlu0 %836
        %v838 = vadd.f32 %v741, %v790
        %839 = vadd.xlane.f32.xlu0 %v838
        %v840 = vpop.xlane.xlu0 %839
        %v841 = vadd.f32 %v744, %v793
        %842 = vadd.xlane.f32.xlu0 %v841
        %v843 = vpop.xlane.xlu0 %842
        %v844 = vadd.f32 %v746, %v795
        %845 = vadd.xlane.f32.xlu0 %v844
        %v846 = vpop.xlane.xlu0 %845
        %v847 = vrcp.pop 256.0
        %v848 = vmul.f32 256.0, %v847
        %v849 = vsub.f32 1.0, %v848
        %v850 = vmul.f32 %v847, %v849
        %v851 = vadd.f32 %v847, %v850
        %vm852 = vweird.f32 %v847
        %v853 = vsel %vm852, %v847, %v851
        %v854 = vmul.f32 %v801, %v853
        %v855 = vmul.f32 %v804, %v853
        %v856 = vmul.f32 %v807, %v853
        %v857 = vmul.f32 %v810, %v853
        %v858 = vmul.f32 %v813, %v853
        %v859 = vmul.f32 %v816, %v853
        %v860 = vmul.f32 %v819, %v853
        %v861 = vmul.f32 %v822, %v853
        %v862 = vmul.f32 %v825, %v853
        %v863 = vmul.f32 %v828, %v853
        %v864 = vmul.f32 %v831, %v853
        %v865 = vmul.f32 %v834, %v853
        %v866 = vmul.f32 %v837, %v853
        %v867 = vmul.f32 %v840, %v853
        %v868 = vmul.f32 %v843, %v853
        %v869 = vmul.f32 %v846, %v853
        %v870 = vsub.f32 %v709, %v854
        %v871 = vsub.f32 %v758, %v854
        %v872 = vsub.f32 %v711, %v855
        %v873 = vsub.f32 %v760, %v855
        %v874 = vsub.f32 %v714, %v856
        %v875 = vsub.f32 %v763, %v856
        %v876 = vsub.f32 %v716, %v857
        %v877 = vsub.f32 %v765, %v857
        %v878 = vsub.f32 %v719, %v858
        %v879 = vsub.f32 %v768, %v858
        %v880 = vsub.f32 %v721, %v859
        %v881 = vsub.f32 %v770, %v859
        %v882 = vsub.f32 %v724, %v860
        %v883 = vsub.f32 %v773, %v860
        %v884 = vsub.f32 %v726, %v861
        %v885 = vsub.f32 %v775, %v861
        %v886 = vsub.f32 %v729, %v862
        %v887 = vsub.f32 %v778, %v862
        %v888 = vsub.f32 %v731, %v863
        %v889 = vsub.f32 %v780, %v863
        %v890 = vsub.f32 %v734, %v864
        %v891 = vsub.f32 %v783, %v864
        %v892 = vsub.f32 %v736, %v865
        %v893 = vsub.f32 %v785, %v865
        %v894 = vsub.f32 %v739, %v866
        %v895 = vsub.f32 %v788, %v866
        %v896 = vsub.f32 %v741, %v867
        %v897 = vsub.f32 %v790, %v867
        %v898 = vsub.f32 %v744, %v868
        %v899 = vsub.f32 %v793, %v868
        %v900 = vsub.f32 %v746, %v869
        %v901 = vsub.f32 %v795, %v869
        %v902 = vmul.f32 %v870, %v870
        %v903 = vmul.f32 %v871, %v871
        %v904 = vmul.f32 %v872, %v872
        %v905 = vmul.f32 %v873, %v873
        %v906 = vmul.f32 %v874, %v874
        %v907 = vmul.f32 %v875, %v875
        %v908 = vmul.f32 %v876, %v876
        %v909 = vmul.f32 %v877, %v877
        %v910 = vmul.f32 %v878, %v878
        %v911 = vmul.f32 %v879, %v879
        %v912 = vmul.f32 %v880, %v880
        %v913 = vmul.f32 %v881, %v881
        %v914 = vmul.f32 %v882, %v882
        %v915 = vmul.f32 %v883, %v883
        %v916 = vmul.f32 %v884, %v884
        %v917 = vmul.f32 %v885, %v885
        %v918 = vmul.f32 %v886, %v886
        %v919 = vmul.f32 %v887, %v887
        %v920 = vmul.f32 %v888, %v888
        %v921 = vmul.f32 %v889, %v889
        %v922 = vmul.f32 %v890, %v890
        %v923 = vmul.f32 %v891, %v891
        %v924 = vmul.f32 %v892, %v892
        %v925 = vmul.f32 %v893, %v893
        %v926 = vmul.f32 %v894, %v894
        %v927 = vmul.f32 %v895, %v895
        %v928 = vmul.f32 %v896, %v896
        %v929 = vmul.f32 %v897, %v897
        %v930 = vmul.f32 %v898, %v898
        %v931 = vmul.f32 %v899, %v899
        %v932 = vmul.f32 %v900, %v900
        %v933 = vmul.f32 %v901, %v901
        %v934 = vadd.f32 %v902, %v903
        %935 = vadd.xlane.f32.xlu0 %v934
        %v936 = vpop.xlane.xlu0 %935
        %v937 = vadd.f32 %v904, %v905
        %938 = vadd.xlane.f32.xlu0 %v937
        %v939 = vpop.xlane.xlu0 %938
        %v940 = vadd.f32 %v906, %v907
        %941 = vadd.xlane.f32.xlu0 %v940
        %v942 = vpop.xlane.xlu0 %941
        %v943 = vadd.f32 %v908, %v909
        %944 = vadd.xlane.f32.xlu0 %v943
        %v945 = vpop.xlane.xlu0 %944
        %v946 = vadd.f32 %v910, %v911
        %947 = vadd.xlane.f32.xlu0 %v946
        %v948 = vpop.xlane.xlu0 %947
        %v949 = vadd.f32 %v912, %v913
        %950 = vadd.xlane.f32.xlu0 %v949
        %v951 = vpop.xlane.xlu0 %950
        %v952 = vadd.f32 %v914, %v915
        %953 = vadd.xlane.f32.xlu0 %v952
        %v954 = vpop.xlane.xlu0 %953
        %v955 = vadd.f32 %v916, %v917
        %956 = vadd.xlane.f32.xlu0 %v955
        %v957 = vpop.xlane.xlu0 %956
        %v958 = vadd.f32 %v918, %v919
        %959 = vadd.xlane.f32.xlu0 %v958
        %v960 = vpop.xlane.xlu0 %959
        %v961 = vadd.f32 %v920, %v921
        %962 = vadd.xlane.f32.xlu0 %v961
        %v963 = vpop.xlane.xlu0 %962
        %v964 = vadd.f32 %v922, %v923
        %965 = vadd.xlane.f32.xlu0 %v964
        %v966 = vpop.xlane.xlu0 %965
        %v967 = vadd.f32 %v924, %v925
        %968 = vadd.xlane.f32.xlu0 %v967
        %v969 = vpop.xlane.xlu0 %968
        %v970 = vadd.f32 %v926, %v927
        %971 = vadd.xlane.f32.xlu0 %v970
        %v972 = vpop.xlane.xlu0 %971
        %v973 = vadd.f32 %v928, %v929
        %974 = vadd.xlane.f32.xlu0 %v973
        %v975 = vpop.xlane.xlu0 %974
        %v976 = vadd.f32 %v930, %v931
        %977 = vadd.xlane.f32.xlu0 %v976
        %v978 = vpop.xlane.xlu0 %977
        %v979 = vadd.f32 %v932, %v933
        %980 = vadd.xlane.f32.xlu0 %v979
        %v981 = vpop.xlane.xlu0 %980
        %v982 = vmul.f32 %v936, %v853
        %v983 = vmul.f32 %v939, %v853
        %v984 = vmul.f32 %v942, %v853
        %v985 = vmul.f32 %v945, %v853
        %v986 = vmul.f32 %v948, %v853
        %v987 = vmul.f32 %v951, %v853
        %v988 = vmul.f32 %v954, %v853
        %v989 = vmul.f32 %v957, %v853
        %v990 = vmul.f32 %v960, %v853
        %v991 = vmul.f32 %v963, %v853
        %v992 = vmul.f32 %v966, %v853
        %v993 = vmul.f32 %v969, %v853
        %v994 = vmul.f32 %v972, %v853
        %v995 = vmul.f32 %v975, %v853
        %v996 = vmul.f32 %v978, %v853
        %v997 = vmul.f32 %v981, %v853
        %v998 = vadd.f32 %v982, 1e-06
        %v999 = vadd.f32 %v983, 1e-06
        %v1000 = vadd.f32 %v984, 1e-06
        %v1001 = vadd.f32 %v985, 1e-06
        %v1002 = vadd.f32 %v986, 1e-06
        %v1003 = vadd.f32 %v987, 1e-06
        %v1004 = vadd.f32 %v988, 1e-06
        %v1005 = vadd.f32 %v989, 1e-06
        %v1006 = vadd.f32 %v990, 1e-06
        %v1007 = vadd.f32 %v991, 1e-06
        %v1008 = vadd.f32 %v992, 1e-06
        %v1009 = vadd.f32 %v993, 1e-06
        %v1010 = vadd.f32 %v994, 1e-06
        %v1011 = vadd.f32 %v995, 1e-06
        %v1012 = vadd.f32 %v996, 1e-06
        %v1013 = vadd.f32 %v997, 1e-06
        %v1014 = vrsqrt.pop %v998
        %v1015 = vmul.f32 %v1014, %v998
        %v1016 = vmul.f32 %v1015, %v1014
        %v1017 = vmul.f32 0.5, %v1016
        %v1018 = vsub.f32 1.5, %v1017
        %v1019 = vmul.f32 %v1014, %v1018
        %vm1020 = vweird.f32 %v998
        %vm1021 = vweird.f32 %v1014
        %vm1022 = vmor %vm1020, %vm1021
        %v1023 = vsel %vm1022, %v1014, %v1019
        %v1024 = vrsqrt.pop %v999
        %v1025 = vmul.f32 %v1024, %v999
        %v1026 = vmul.f32 %v1025, %v1024
        %v1027 = vmul.f32 0.5, %v1026
        %v1028 = vsub.f32 1.5, %v1027
        %v1029 = vmul.f32 %v1024, %v1028
        %vm1030 = vweird.f32 %v999
        %vm1031 = vweird.f32 %v1024
        %vm1032 = vmor %vm1030, %vm1031
        %v1033 = vsel %vm1032, %v1024, %v1029
        %v1034 = vrsqrt.pop %v1000
        %v1035 = vmul.f32 %v1034, %v1000
        %v1036 = vmul.f32 %v1035, %v1034
        %v1037 = vmul.f32 0.5, %v1036
        %v1038 = vsub.f32 1.5, %v1037
        %v1039 = vmul.f32 %v1034, %v1038
        %vm1040 = vweird.f32 %v1000
        %vm1041 = vweird.f32 %v1034
        %vm1042 = vmor %vm1040, %vm1041
        %v1043 = vsel %vm1042, %v1034, %v1039
        %v1044 = vrsqrt.pop %v1001
        %v1045 = vmul.f32 %v1044, %v1001
        %v1046 = vmul.f32 %v1045, %v1044
        %v1047 = vmul.f32 0.5, %v1046
        %v1048 = vsub.f32 1.5, %v1047
        %v1049 = vmul.f32 %v1044, %v1048
        %vm1050 = vweird.f32 %v1001
        %vm1051 = vweird.f32 %v1044
        %vm1052 = vmor %vm1050, %vm1051
        %v1053 = vsel %vm1052, %v1044, %v1049
        %v1054 = vrsqrt.pop %v1002
        %v1055 = vmul.f32 %v1054, %v1002
        %v1056 = vmul.f32 %v1055, %v1054
        %v1057 = vmul.f32 0.5, %v1056
        %v1058 = vsub.f32 1.5, %v1057
        %v1059 = vmul.f32 %v1054, %v1058
        %vm1060 = vweird.f32 %v1002
        %vm1061 = vweird.f32 %v1054
        %vm1062 = vmor %vm1060, %vm1061
        %v1063 = vsel %vm1062, %v1054, %v1059
        %v1064 = vrsqrt.pop %v1003
        %v1065 = vmul.f32 %v1064, %v1003
        %v1066 = vmul.f32 %v1065, %v1064
        %v1067 = vmul.f32 0.5, %v1066
        %v1068 = vsub.f32 1.5, %v1067
        %v1069 = vmul.f32 %v1064, %v1068
        %vm1070 = vweird.f32 %v1003
        %vm1071 = vweird.f32 %v1064
        %vm1072 = vmor %vm1070, %vm1071
        %v1073 = vsel %vm1072, %v1064, %v1069
        %v1074 = vrsqrt.pop %v1004
        %v1075 = vmul.f32 %v1074, %v1004
        %v1076 = vmul.f32 %v1075, %v1074
        %v1077 = vmul.f32 0.5, %v1076
        %v1078 = vsub.f32 1.5, %v1077
        %v1079 = vmul.f32 %v1074, %v1078
        %vm1080 = vweird.f32 %v1004
        %vm1081 = vweird.f32 %v1074
        %vm1082 = vmor %vm1080, %vm1081
        %v1083 = vsel %vm1082, %v1074, %v1079
        %v1084 = vrsqrt.pop %v1005
        %v1085 = vmul.f32 %v1084, %v1005
        %v1086 = vmul.f32 %v1085, %v1084
        %v1087 = vmul.f32 0.5, %v1086
        %v1088 = vsub.f32 1.5, %v1087
        %v1089 = vmul.f32 %v1084, %v1088
        %vm1090 = vweird.f32 %v1005
        %vm1091 = vweird.f32 %v1084
        %vm1092 = vmor %vm1090, %vm1091
        %v1093 = vsel %vm1092, %v1084, %v1089
        %v1094 = vrsqrt.pop %v1006
        %v1095 = vmul.f32 %v1094, %v1006
        %v1096 = vmul.f32 %v1095, %v1094
        %v1097 = vmul.f32 0.5, %v1096
        %v1098 = vsub.f32 1.5, %v1097
        %v1099 = vmul.f32 %v1094, %v1098
        %vm1100 = vweird.f32 %v1006
        %vm1101 = vweird.f32 %v1094
        %vm1102 = vmor %vm1100, %vm1101
        %v1103 = vsel %vm1102, %v1094, %v1099
        %v1104 = vrsqrt.pop %v1007
        %v1105 = vmul.f32 %v1104, %v1007
        %v1106 = vmul.f32 %v1105, %v1104
        %v1107 = vmul.f32 0.5, %v1106
        %v1108 = vsub.f32 1.5, %v1107
        %v1109 = vmul.f32 %v1104, %v1108
        %vm1110 = vweird.f32 %v1007
        %vm1111 = vweird.f32 %v1104
        %vm1112 = vmor %vm1110, %vm1111
        %v1113 = vsel %vm1112, %v1104, %v1109
        %v1114 = vrsqrt.pop %v1008
        %v1115 = vmul.f32 %v1114, %v1008
        %v1116 = vmul.f32 %v1115, %v1114
        %v1117 = vmul.f32 0.5, %v1116
        %v1118 = vsub.f32 1.5, %v1117
        %v1119 = vmul.f32 %v1114, %v1118
        %vm1120 = vweird.f32 %v1008
        %vm1121 = vweird.f32 %v1114
        %vm1122 = vmor %vm1120, %vm1121
        %v1123 = vsel %vm1122, %v1114, %v1119
        %v1124 = vrsqrt.pop %v1009
        %v1125 = vmul.f32 %v1124, %v1009
        %v1126 = vmul.f32 %v1125, %v1124
        %v1127 = vmul.f32 0.5, %v1126
        %v1128 = vsub.f32 1.5, %v1127
        %v1129 = vmul.f32 %v1124, %v1128
        %vm1130 = vweird.f32 %v1009
        %vm1131 = vweird.f32 %v1124
        %vm1132 = vmor %vm1130, %vm1131
        %v1133 = vsel %vm1132, %v1124, %v1129
        %v1134 = vrsqrt.pop %v1010
        %v1135 = vmul.f32 %v1134, %v1010
        %v1136 = vmul.f32 %v1135, %v1134
        %v1137 = vmul.f32 0.5, %v1136
        %v1138 = vsub.f32 1.5, %v1137
        %v1139 = vmul.f32 %v1134, %v1138
        %vm1140 = vweird.f32 %v1010
        %vm1141 = vweird.f32 %v1134
        %vm1142 = vmor %vm1140, %vm1141
        %v1143 = vsel %vm1142, %v1134, %v1139
        %v1144 = vrsqrt.pop %v1011
        %v1145 = vmul.f32 %v1144, %v1011
        %v1146 = vmul.f32 %v1145, %v1144
        %v1147 = vmul.f32 0.5, %v1146
        %v1148 = vsub.f32 1.5, %v1147
        %v1149 = vmul.f32 %v1144, %v1148
        %vm1150 = vweird.f32 %v1011
        %vm1151 = vweird.f32 %v1144
        %vm1152 = vmor %vm1150, %vm1151
        %v1153 = vsel %vm1152, %v1144, %v1149
        %v1154 = vrsqrt.pop %v1012
        %v1155 = vmul.f32 %v1154, %v1012
        %v1156 = vmul.f32 %v1155, %v1154
        %v1157 = vmul.f32 0.5, %v1156
        %v1158 = vsub.f32 1.5, %v1157
        %v1159 = vmul.f32 %v1154, %v1158
        %vm1160 = vweird.f32 %v1012
        %vm1161 = vweird.f32 %v1154
        %vm1162 = vmor %vm1160, %vm1161
        %v1163 = vsel %vm1162, %v1154, %v1159
        %v1164 = vrsqrt.pop %v1013
        %v1165 = vmul.f32 %v1164, %v1013
        %v1166 = vmul.f32 %v1165, %v1164
        %v1167 = vmul.f32 0.5, %v1166
        %v1168 = vsub.f32 1.5, %v1167
        %v1169 = vmul.f32 %v1164, %v1168
        %vm1170 = vweird.f32 %v1013
        %vm1171 = vweird.f32 %v1164
        %vm1172 = vmor %vm1170, %vm1171
        %v1173 = vsel %vm1172, %v1164, %v1169
        %v1174 = vmul.f32 %v870, %v1023
        %v1175 = vmul.f32 %v871, %v1023
        %v1176 = vmul.f32 %v872, %v1033
        %v1177 = vmul.f32 %v873, %v1033
        %v1178 = vmul.f32 %v874, %v1043
        %v1179 = vmul.f32 %v875, %v1043
        %v1180 = vmul.f32 %v876, %v1053
        %v1181 = vmul.f32 %v877, %v1053
        %v1182 = vmul.f32 %v878, %v1063
        %v1183 = vmul.f32 %v879, %v1063
        %v1184 = vmul.f32 %v880, %v1073
        %v1185 = vmul.f32 %v881, %v1073
        %v1186 = vmul.f32 %v882, %v1083
        %v1187 = vmul.f32 %v883, %v1083
        %v1188 = vmul.f32 %v884, %v1093
        %v1189 = vmul.f32 %v885, %v1093
        %v1190 = vmul.f32 %v886, %v1103
        %v1191 = vmul.f32 %v887, %v1103
        %v1192 = vmul.f32 %v888, %v1113
        %v1193 = vmul.f32 %v889, %v1113
        %v1194 = vmul.f32 %v890, %v1123
        %v1195 = vmul.f32 %v891, %v1123
        %v1196 = vmul.f32 %v892, %v1133
        %v1197 = vmul.f32 %v893, %v1133
        %v1198 = vmul.f32 %v894, %v1143
        %v1199 = vmul.f32 %v895, %v1143
        %v1200 = vmul.f32 %v896, %v1153
        %v1201 = vmul.f32 %v897, %v1153
        %v1202 = vmul.f32 %v898, %v1163
        %v1203 = vmul.f32 %v899, %v1163
        %v1204 = vmul.f32 %v900, %v1173
        %v1205 = vmul.f32 %v901, %v1173
        %v1207 = vperm.slane %v797, 0
        %v1208 = vperm.slane %v797, 1
        %v1211 = vmul.f32 %v1174, %v1207
        %v1212 = vmul.f32 %v1175, %v1208
        %v1213 = vmul.f32 %v1176, %v1207
        %v1214 = vmul.f32 %v1177, %v1208
        %v1215 = vmul.f32 %v1178, %v1207
        %v1216 = vmul.f32 %v1179, %v1208
        %v1217 = vmul.f32 %v1180, %v1207
        %v1218 = vmul.f32 %v1181, %v1208
        %v1219 = vmul.f32 %v1182, %v1207
        %v1220 = vmul.f32 %v1183, %v1208
        %v1221 = vmul.f32 %v1184, %v1207
        %v1222 = vmul.f32 %v1185, %v1208
        %v1223 = vmul.f32 %v1186, %v1207
        %v1224 = vmul.f32 %v1187, %v1208
        %v1225 = vmul.f32 %v1188, %v1207
        %v1226 = vmul.f32 %v1189, %v1208
        %v1227 = vmul.f32 %v1190, %v1207
        %v1228 = vmul.f32 %v1191, %v1208
        %v1229 = vmul.f32 %v1192, %v1207
        %v1230 = vmul.f32 %v1193, %v1208
        %v1231 = vmul.f32 %v1194, %v1207
        %v1232 = vmul.f32 %v1195, %v1208
        %v1233 = vmul.f32 %v1196, %v1207
        %v1234 = vmul.f32 %v1197, %v1208
        %v1235 = vmul.f32 %v1198, %v1207
        %v1236 = vmul.f32 %v1199, %v1208
        %v1237 = vmul.f32 %v1200, %v1207
        %v1238 = vmul.f32 %v1201, %v1208
        %v1239 = vmul.f32 %v1202, %v1207
        %v1240 = vmul.f32 %v1203, %v1208
        %v1241 = vmul.f32 %v1204, %v1207
        %v1242 = vmul.f32 %v1205, %v1208
        %v1244 = vperm.slane %v798, 0
        %v1245 = vperm.slane %v798, 1
        %v1248 = vadd.f32 %v1211, %v1244
        %v1249 = vadd.f32 %v1212, %v1245
        %v1250 = vadd.f32 %v1213, %v1244
        %v1251 = vadd.f32 %v1214, %v1245
        %v1252 = vadd.f32 %v1215, %v1244
        %v1253 = vadd.f32 %v1216, %v1245
        %v1254 = vadd.f32 %v1217, %v1244
        %v1255 = vadd.f32 %v1218, %v1245
        %v1256 = vadd.f32 %v1219, %v1244
        %v1257 = vadd.f32 %v1220, %v1245
        %v1258 = vadd.f32 %v1221, %v1244
        %v1259 = vadd.f32 %v1222, %v1245
        %v1260 = vadd.f32 %v1223, %v1244
        %v1261 = vadd.f32 %v1224, %v1245
        %v1262 = vadd.f32 %v1225, %v1244
        %v1263 = vadd.f32 %v1226, %v1245
        %v1264 = vadd.f32 %v1227, %v1244
        %v1265 = vadd.f32 %v1228, %v1245
        %v1266 = vadd.f32 %v1229, %v1244
        %v1267 = vadd.f32 %v1230, %v1245
        %v1268 = vadd.f32 %v1231, %v1244
        %v1269 = vadd.f32 %v1232, %v1245
        %v1270 = vadd.f32 %v1233, %v1244
        %v1271 = vadd.f32 %v1234, %v1245
        %v1272 = vadd.f32 %v1235, %v1244
        %v1273 = vadd.f32 %v1236, %v1245
        %v1274 = vadd.f32 %v1237, %v1244
        %v1275 = vadd.f32 %v1238, %v1245
        %v1276 = vadd.f32 %v1239, %v1244
        %v1277 = vadd.f32 %v1240, %v1245
        %v1278 = vadd.f32 %v1241, %v1244
        %v1279 = vadd.f32 %v1242, %v1245
        %v1280 = vpack.c.bf16 %v1250, %v1248
        %v1281 = vpack.c.bf16 %v1251, %v1249
        %v1282 = vpack.c.bf16 %v1254, %v1252
        %v1283 = vpack.c.bf16 %v1255, %v1253
        %v1284 = vpack.c.bf16 %v1258, %v1256
        %v1285 = vpack.c.bf16 %v1259, %v1257
        %v1286 = vpack.c.bf16 %v1262, %v1260
        %v1287 = vpack.c.bf16 %v1263, %v1261
        %v1288 = vpack.c.bf16 %v1266, %v1264
        %v1289 = vpack.c.bf16 %v1267, %v1265
        %v1290 = vpack.c.bf16 %v1270, %v1268
        %v1291 = vpack.c.bf16 %v1271, %v1269
        %v1292 = vpack.c.bf16 %v1274, %v1272
        %v1293 = vpack.c.bf16 %v1275, %v1273
        %v1294 = vpack.c.bf16 %v1278, %v1276
        %v1295 = vpack.c.bf16 %v1279, %v1277
        %v1296 = vld [vmem:[%s6] sm:$0xff]
        %v1297 = vld [vmem:[%s6 + $0x8] sm:$0xff]
        %v1298 = vld [vmem:[%s6 + $0x10] sm:$0xff]
        %v1299 = vld [vmem:[%s6 + $0x18] sm:$0xff]
        %v1300 = vld [vmem:[%s6 + $0x20] sm:$0xff]
        %v1301 = vld [vmem:[%s6 + $0x28] sm:$0xff]
        %v1302 = vld [vmem:[%s6 + $0x30] sm:$0xff]
        %v1303 = vld [vmem:[%s6 + $0x38] sm:$0xff]
        %v1304 = vld [vmem:[%s6 + $0x40] sm:$0xff]
        %v1305 = vld [vmem:[%s6 + $0x48] sm:$0xff]
        %v1306 = vld [vmem:[%s6 + $0x50] sm:$0xff]
        %v1307 = vld [vmem:[%s6 + $0x58] sm:$0xff]
        %v1308 = vld [vmem:[%s6 + $0x60] sm:$0xff]
        %v1309 = vld [vmem:[%s6 + $0x68] sm:$0xff]
        %v1310 = vld [vmem:[%s6 + $0x70] sm:$0xff]
        %v1311 = vld [vmem:[%s6 + $0x78] sm:$0xff]
        %v1312 = vld [vmem:[%s6 + $0x80] sm:$0xff]
        %v1313 = vld [vmem:[%s6 + $0x88] sm:$0xff]
        %v1314 = vld [vmem:[%s6 + $0x90] sm:$0xff]
        %v1315 = vld [vmem:[%s6 + $0x98] sm:$0xff]
        %v1316 = vld [vmem:[%s6 + $0xa0] sm:$0xff]
        %v1317 = vld [vmem:[%s6 + $0xa8] sm:$0xff]
        %v1318 = vld [vmem:[%s6 + $0xb0] sm:$0xff]
        %v1319 = vld [vmem:[%s6 + $0xb8] sm:$0xff]
        %v1320 = vld [vmem:[%s6 + $0xc0] sm:$0xff]
        %v1321 = vld [vmem:[%s6 + $0xc8] sm:$0xff]
        %v1322 = vld [vmem:[%s6 + $0xd0] sm:$0xff]
        %v1323 = vld [vmem:[%s6 + $0xd8] sm:$0xff]
        %v1324 = vld [vmem:[%s6 + $0xe0] sm:$0xff]
        %v1325 = vld [vmem:[%s6 + $0xe8] sm:$0xff]
        %v1326 = vld [vmem:[%s6 + $0xf0] sm:$0xff]
        %v1327 = vld [vmem:[%s6 + $0xf8] sm:$0xff]
        %v1328 = vld [vmem:[%s6 + $0x100] sm:$0xff]
        %v1329 = vld [vmem:[%s6 + $0x108] sm:$0xff]
        %v1330 = vld [vmem:[%s6 + $0x110] sm:$0xff]
        %v1331 = vld [vmem:[%s6 + $0x118] sm:$0xff]
        %v1332 = vld [vmem:[%s6 + $0x120] sm:$0xff]
        %v1333 = vld [vmem:[%s6 + $0x128] sm:$0xff]
        %v1334 = vld [vmem:[%s6 + $0x130] sm:$0xff]
        %v1335 = vld [vmem:[%s6 + $0x138] sm:$0xff]
        %v1336 = vld [vmem:[%s6 + $0x140] sm:$0xff]
        %v1337 = vld [vmem:[%s6 + $0x148] sm:$0xff]
        %v1338 = vld [vmem:[%s6 + $0x150] sm:$0xff]
        %v1339 = vld [vmem:[%s6 + $0x158] sm:$0xff]
        %v1340 = vld [vmem:[%s6 + $0x160] sm:$0xff]
        %v1341 = vld [vmem:[%s6 + $0x168] sm:$0xff]
        %v1342 = vld [vmem:[%s6 + $0x170] sm:$0xff]
        %v1343 = vld [vmem:[%s6 + $0x178] sm:$0xff]
        %v1344 = vld [vmem:[%s6 + $0x180] sm:$0xff]
        %v1345 = vld [vmem:[%s6 + $0x188] sm:$0xff]
        %v1346 = vld [vmem:[%s6 + $0x190] sm:$0xff]
        %v1347 = vld [vmem:[%s6 + $0x198] sm:$0xff]
        %v1348 = vld [vmem:[%s6 + $0x1a0] sm:$0xff]
        %v1349 = vld [vmem:[%s6 + $0x1a8] sm:$0xff]
        %v1350 = vld [vmem:[%s6 + $0x1b0] sm:$0xff]
        %v1351 = vld [vmem:[%s6 + $0x1b8] sm:$0xff]
        %v1352 = vld [vmem:[%s6 + $0x1c0] sm:$0xff]
        %v1353 = vld [vmem:[%s6 + $0x1c8] sm:$0xff]
        %v1354 = vld [vmem:[%s6 + $0x1d0] sm:$0xff]
        %v1355 = vld [vmem:[%s6 + $0x1d8] sm:$0xff]
        %v1356 = vld [vmem:[%s6 + $0x1e0] sm:$0xff]
        %v1357 = vld [vmem:[%s6 + $0x1e8] sm:$0xff]
        %v1358 = vld [vmem:[%s6 + $0x1f0] sm:$0xff]
        %v1359 = vld [vmem:[%s6 + $0x1f8] sm:$0xff]
        %v1424 = vunpack.c.l.b16 %v1296
        %v1425 = vunpack.c.h.b16 %v1296
        %v1426 = vunpack.c.l.b16 %v1297
        %v1427 = vunpack.c.h.b16 %v1297
        %v1428 = vunpack.c.l.b16 %v1298
        %v1429 = vunpack.c.h.b16 %v1298
        %v1430 = vunpack.c.l.b16 %v1299
        %v1431 = vunpack.c.h.b16 %v1299
        %v1432 = vunpack.c.l.b16 %v1300
        %v1433 = vunpack.c.h.b16 %v1300
        %v1434 = vunpack.c.l.b16 %v1301
        %v1435 = vunpack.c.h.b16 %v1301
        %v1436 = vunpack.c.l.b16 %v1302
        %v1437 = vunpack.c.h.b16 %v1302
        %v1438 = vunpack.c.l.b16 %v1303
        %v1439 = vunpack.c.h.b16 %v1303
        %v1440 = vunpack.c.l.b16 %v1304
        %v1441 = vunpack.c.h.b16 %v1304
        %v1442 = vunpack.c.l.b16 %v1305
        %v1443 = vunpack.c.h.b16 %v1305
        %v1444 = vunpack.c.l.b16 %v1306
        %v1445 = vunpack.c.h.b16 %v1306
        %v1446 = vunpack.c.l.b16 %v1307
        %v1447 = vunpack.c.h.b16 %v1307
        %v1448 = vunpack.c.l.b16 %v1308
        %v1449 = vunpack.c.h.b16 %v1308
        %v1450 = vunpack.c.l.b16 %v1309
        %v1451 = vunpack.c.h.b16 %v1309
        %v1452 = vunpack.c.l.b16 %v1310
        %v1453 = vunpack.c.h.b16 %v1310
        %v1454 = vunpack.c.l.b16 %v1311
        %v1455 = vunpack.c.h.b16 %v1311
        %v1456 = vunpack.c.l.b16 %v1312
        %v1457 = vunpack.c.h.b16 %v1312
        %v1458 = vunpack.c.l.b16 %v1313
        %v1459 = vunpack.c.h.b16 %v1313
        %v1460 = vunpack.c.l.b16 %v1314
        %v1461 = vunpack.c.h.b16 %v1314
        %v1462 = vunpack.c.l.b16 %v1315
        %v1463 = vunpack.c.h.b16 %v1315
        %v1464 = vunpack.c.l.b16 %v1316
        %v1465 = vunpack.c.h.b16 %v1316
        %v1466 = vunpack.c.l.b16 %v1317
        %v1467 = vunpack.c.h.b16 %v1317
        %v1468 = vunpack.c.l.b16 %v1318
        %v1469 = vunpack.c.h.b16 %v1318
        %v1470 = vunpack.c.l.b16 %v1319
        %v1471 = vunpack.c.h.b16 %v1319
        %v1472 = vunpack.c.l.b16 %v1320
        %v1473 = vunpack.c.h.b16 %v1320
        %v1474 = vunpack.c.l.b16 %v1321
        %v1475 = vunpack.c.h.b16 %v1321
        %v1476 = vunpack.c.l.b16 %v1322
        %v1477 = vunpack.c.h.b16 %v1322
        %v1478 = vunpack.c.l.b16 %v1323
        %v1479 = vunpack.c.h.b16 %v1323
        %v1480 = vunpack.c.l.b16 %v1324
        %v1481 = vunpack.c.h.b16 %v1324
        %v1482 = vunpack.c.l.b16 %v1325
        %v1483 = vunpack.c.h.b16 %v1325
        %v1484 = vunpack.c.l.b16 %v1326
        %v1485 = vunpack.c.h.b16 %v1326
        %v1486 = vunpack.c.l.b16 %v1327
        %v1487 = vunpack.c.h.b16 %v1327
        %v1488 = vunpack.c.l.b16 %v1328
        %v1489 = vunpack.c.h.b16 %v1328
        %v1490 = vunpack.c.l.b16 %v1329
        %v1491 = vunpack.c.h.b16 %v1329
        %v1492 = vunpack.c.l.b16 %v1330
        %v1493 = vunpack.c.h.b16 %v1330
        %v1494 = vunpack.c.l.b16 %v1331
        %v1495 = vunpack.c.h.b16 %v1331
        %v1496 = vunpack.c.l.b16 %v1332
        %v1497 = vunpack.c.h.b16 %v1332
        %v1498 = vunpack.c.l.b16 %v1333
        %v1499 = vunpack.c.h.b16 %v1333
        %v1500 = vunpack.c.l.b16 %v1334
        %v1501 = vunpack.c.h.b16 %v1334
        %v1502 = vunpack.c.l.b16 %v1335
        %v1503 = vunpack.c.h.b16 %v1335
        %v1504 = vunpack.c.l.b16 %v1336
        %v1505 = vunpack.c.h.b16 %v1336
        %v1506 = vunpack.c.l.b16 %v1337
        %v1507 = vunpack.c.h.b16 %v1337
        %v1508 = vunpack.c.l.b16 %v1338
        %v1509 = vunpack.c.h.b16 %v1338
        %v1510 = vunpack.c.l.b16 %v1339
        %v1511 = vunpack.c.h.b16 %v1339
        %v1512 = vunpack.c.l.b16 %v1340
        %v1513 = vunpack.c.h.b16 %v1340
        %v1514 = vunpack.c.l.b16 %v1341
        %v1515 = vunpack.c.h.b16 %v1341
        %v1516 = vunpack.c.l.b16 %v1342
        %v1517 = vunpack.c.h.b16 %v1342
        %v1518 = vunpack.c.l.b16 %v1343
        %v1519 = vunpack.c.h.b16 %v1343
        %v1520 = vunpack.c.l.b16 %v1344
        %v1521 = vunpack.c.h.b16 %v1344
        %v1522 = vunpack.c.l.b16 %v1345
        %v1523 = vunpack.c.h.b16 %v1345
        %v1524 = vunpack.c.l.b16 %v1346
        %v1525 = vunpack.c.h.b16 %v1346
        %v1526 = vunpack.c.l.b16 %v1347
        %v1527 = vunpack.c.h.b16 %v1347
        %v1528 = vunpack.c.l.b16 %v1348
        %v1529 = vunpack.c.h.b16 %v1348
        %v1530 = vunpack.c.l.b16 %v1349
        %v1531 = vunpack.c.h.b16 %v1349
        %v1532 = vunpack.c.l.b16 %v1350
        %v1533 = vunpack.c.h.b16 %v1350
        %v1534 = vunpack.c.l.b16 %v1351
        %v1535 = vunpack.c.h.b16 %v1351
        %v1536 = vunpack.c.l.b16 %v1352
        %v1537 = vunpack.c.h.b16 %v1352
        %v1538 = vunpack.c.l.b16 %v1353
        %v1539 = vunpack.c.h.b16 %v1353
        %v1540 = vunpack.c.l.b16 %v1354
        %v1541 = vunpack.c.h.b16 %v1354
        %v1542 = vunpack.c.l.b16 %v1355
        %v1543 = vunpack.c.h.b16 %v1355
        %v1544 = vunpack.c.l.b16 %v1356
        %v1545 = vunpack.c.h.b16 %v1356
        %v1546 = vunpack.c.l.b16 %v1357
        %v1547 = vunpack.c.h.b16 %v1357
        %v1548 = vunpack.c.l.b16 %v1358
        %v1549 = vunpack.c.h.b16 %v1358
        %v1550 = vunpack.c.l.b16 %v1359
        %v1551 = vunpack.c.h.b16 %v1359
        %v1552 = vpack.c.b16 %v1428, %v1424
        %v1553 = vpack.c.b16 %v1429, %v1425
        %v1554 = vpack.c.b16 %v1430, %v1426
        %v1555 = vpack.c.b16 %v1431, %v1427
        %v1556 = vpack.c.b16 %v1436, %v1432
        %v1557 = vpack.c.b16 %v1437, %v1433
        %v1558 = vpack.c.b16 %v1438, %v1434
        %v1559 = vpack.c.b16 %v1439, %v1435
        %v1560 = vpack.c.b16 %v1444, %v1440
        %v1561 = vpack.c.b16 %v1445, %v1441
        %v1562 = vpack.c.b16 %v1446, %v1442
        %v1563 = vpack.c.b16 %v1447, %v1443
        %v1564 = vpack.c.b16 %v1452, %v1448
        %v1565 = vpack.c.b16 %v1453, %v1449
        %v1566 = vpack.c.b16 %v1454, %v1450
        %v1567 = vpack.c.b16 %v1455, %v1451
        %v1568 = vpack.c.b16 %v1460, %v1456
        %v1569 = vpack.c.b16 %v1461, %v1457
        %v1570 = vpack.c.b16 %v1462, %v1458
        %v1571 = vpack.c.b16 %v1463, %v1459
        %v1572 = vpack.c.b16 %v1468, %v1464
        %v1573 = vpack.c.b16 %v1469, %v1465
        %v1574 = vpack.c.b16 %v1470, %v1466
        %v1575 = vpack.c.b16 %v1471, %v1467
        %v1576 = vpack.c.b16 %v1476, %v1472
        %v1577 = vpack.c.b16 %v1477, %v1473
        %v1578 = vpack.c.b16 %v1478, %v1474
        %v1579 = vpack.c.b16 %v1479, %v1475
        %v1580 = vpack.c.b16 %v1484, %v1480
        %v1581 = vpack.c.b16 %v1485, %v1481
        %v1582 = vpack.c.b16 %v1486, %v1482
        %v1583 = vpack.c.b16 %v1487, %v1483
        %v1584 = vpack.c.b16 %v1492, %v1488
        %v1585 = vpack.c.b16 %v1493, %v1489
        %v1586 = vpack.c.b16 %v1494, %v1490
        %v1587 = vpack.c.b16 %v1495, %v1491
        %v1588 = vpack.c.b16 %v1500, %v1496
        %v1589 = vpack.c.b16 %v1501, %v1497
        %v1590 = vpack.c.b16 %v1502, %v1498
        %v1591 = vpack.c.b16 %v1503, %v1499
        %v1592 = vpack.c.b16 %v1508, %v1504
        %v1593 = vpack.c.b16 %v1509, %v1505
        %v1594 = vpack.c.b16 %v1510, %v1506
        %v1595 = vpack.c.b16 %v1511, %v1507
        %v1596 = vpack.c.b16 %v1516, %v1512
        %v1597 = vpack.c.b16 %v1517, %v1513
        %v1598 = vpack.c.b16 %v1518, %v1514
        %v1599 = vpack.c.b16 %v1519, %v1515
        %v1600 = vpack.c.b16 %v1524, %v1520
        %v1601 = vpack.c.b16 %v1525, %v1521
        %v1602 = vpack.c.b16 %v1526, %v1522
        %v1603 = vpack.c.b16 %v1527, %v1523
        %v1604 = vpack.c.b16 %v1532, %v1528
        %v1605 = vpack.c.b16 %v1533, %v1529
        %v1606 = vpack.c.b16 %v1534, %v1530
        %v1607 = vpack.c.b16 %v1535, %v1531
        %v1608 = vpack.c.b16 %v1540, %v1536
        %v1609 = vpack.c.b16 %v1541, %v1537
        %v1610 = vpack.c.b16 %v1542, %v1538
        %v1611 = vpack.c.b16 %v1543, %v1539
        %v1612 = vpack.c.b16 %v1548, %v1544
        %v1613 = vpack.c.b16 %v1549, %v1545
        %v1614 = vpack.c.b16 %v1550, %v1546
        %v1615 = vpack.c.b16 %v1551, %v1547
        %1680 = vmatpush.bf16.msra.mxu0 %v1580
        %1681 = vmatpush.bf16.msra.mxu0 %v1576
        %1682 = vmatpush.bf16.msra.mxu0 %v1572
        %1683 = vmatpush.bf16.msra.mxu0 %v1568
        %1684 = vmatpush.bf16.msra.mxu0 %v1564
        %1685 = vmatpush.bf16.msra.mxu0 %v1560
        %1686 = vmatpush.bf16.msra.mxu0 %v1556
        %1687 = vmatpush.bf16.msra.mxu0 %v1552
        %1688 = vmatmul.bf16.gmra.mxu0 %v1280
        %v1689 = vpop.f32.mrf.mxu0
        %v1690 = vadd.f32 0.0, %v1689
        %v1691 = vpop.f32.mrf.mxu0
        %v1692 = vadd.f32 0.0, %v1691
        %1693 = vmatmul.bf16.gmra.mxu0 %v1282
        %v1694 = vpop.f32.mrf.mxu0
        %v1695 = vadd.f32 0.0, %v1694
        %v1696 = vpop.f32.mrf.mxu0
        %v1697 = vadd.f32 0.0, %v1696
        %1698 = vmatmul.bf16.gmra.mxu0 %v1284
        %v1699 = vpop.f32.mrf.mxu0
        %v1700 = vadd.f32 0.0, %v1699
        %v1701 = vpop.f32.mrf.mxu0
        %v1702 = vadd.f32 0.0, %v1701
        %1703 = vmatmul.bf16.gmra.mxu0 %v1286
        %v1704 = vpop.f32.mrf.mxu0
        %v1705 = vadd.f32 0.0, %v1704
        %v1706 = vpop.f32.mrf.mxu0
        %v1707 = vadd.f32 0.0, %v1706
        %1708 = vmatmul.bf16.gmra.mxu0 %v1288
        %v1709 = vpop.f32.mrf.mxu0
        %v1710 = vadd.f32 0.0, %v1709
        %v1711 = vpop.f32.mrf.mxu0
        %v1712 = vadd.f32 0.0, %v1711
        %1713 = vmatmul.bf16.gmra.mxu0 %v1290
        %v1714 = vpop.f32.mrf.mxu0
        %v1715 = vadd.f32 0.0, %v1714
        %v1716 = vpop.f32.mrf.mxu0
        %v1717 = vadd.f32 0.0, %v1716
        %1718 = vmatmul.bf16.gmra.mxu0 %v1292
        %v1719 = vpop.f32.mrf.mxu0
        %v1720 = vadd.f32 0.0, %v1719
        %v1721 = vpop.f32.mrf.mxu0
        %v1722 = vadd.f32 0.0, %v1721
        %1723 = vmatmul.bf16.gmra.mxu0 %v1294
        %v1724 = vpop.f32.mrf.mxu0
        %v1725 = vadd.f32 0.0, %v1724
        %v1726 = vpop.f32.mrf.mxu0
        %v1727 = vadd.f32 0.0, %v1726
        %1728 = vdwg.mxu0
        %1729 = vmatpush.bf16.msra.mxu0 %v1612
        %1730 = vmatpush.bf16.msra.mxu0 %v1608
        %1731 = vmatpush.bf16.msra.mxu0 %v1604
        %1732 = vmatpush.bf16.msra.mxu0 %v1600
        %1733 = vmatpush.bf16.msra.mxu0 %v1596
        %1734 = vmatpush.bf16.msra.mxu0 %v1592
        %1735 = vmatpush.bf16.msra.mxu0 %v1588
        %1736 = vmatpush.bf16.msra.mxu0 %v1584
        %1737 = vmatmul.bf16.gmra.mxu0 %v1281
        %v1738 = vpop.f32.mrf.mxu0
        %v1739 = vadd.f32 %v1690, %v1738
        %v1740 = vpop.f32.mrf.mxu0
        %v1741 = vadd.f32 %v1692, %v1740
        %1742 = vmatmul.bf16.gmra.mxu0 %v1283
        %v1743 = vpop.f32.mrf.mxu0
        %v1744 = vadd.f32 %v1695, %v1743
        %v1745 = vpop.f32.mrf.mxu0
        %v1746 = vadd.f32 %v1697, %v1745
        %1747 = vmatmul.bf16.gmra.mxu0 %v1285
        %v1748 = vpop.f32.mrf.mxu0
        %v1749 = vadd.f32 %v1700, %v1748
        %v1750 = vpop.f32.mrf.mxu0
        %v1751 = vadd.f32 %v1702, %v1750
        %1752 = vmatmul.bf16.gmra.mxu0 %v1287
        %v1753 = vpop.f32.mrf.mxu0
        %v1754 = vadd.f32 %v1705, %v1753
        %v1755 = vpop.f32.mrf.mxu0
        %v1756 = vadd.f32 %v1707, %v1755
        %1757 = vmatmul.bf16.gmra.mxu0 %v1289
        %v1758 = vpop.f32.mrf.mxu0
        %v1759 = vadd.f32 %v1710, %v1758
        %v1760 = vpop.f32.mrf.mxu0
        %v1761 = vadd.f32 %v1712, %v1760
        %1762 = vmatmul.bf16.gmra.mxu0 %v1291
        %v1763 = vpop.f32.mrf.mxu0
        %v1764 = vadd.f32 %v1715, %v1763
        %v1765 = vpop.f32.mrf.mxu0
        %v1766 = vadd.f32 %v1717, %v1765
        %1767 = vmatmul.bf16.gmra.mxu0 %v1293
        %v1768 = vpop.f32.mrf.mxu0
        %v1769 = vadd.f32 %v1720, %v1768
        %v1770 = vpop.f32.mrf.mxu0
        %v1771 = vadd.f32 %v1722, %v1770
        %1772 = vmatmul.bf16.gmra.mxu0 %v1295
        %v1773 = vpop.f32.mrf.mxu0
        %v1774 = vadd.f32 %v1725, %v1773
        %v1775 = vpop.f32.mrf.mxu0
        %v1776 = vadd.f32 %v1727, %v1775
        %1777 = vdwg.mxu0
        %1778 = vmatpush.bf16.msra.mxu0 %v1581
        %1779 = vmatpush.bf16.msra.mxu0 %v1577
        %1780 = vmatpush.bf16.msra.mxu0 %v1573
        %1781 = vmatpush.bf16.msra.mxu0 %v1569
        %1782 = vmatpush.bf16.msra.mxu0 %v1565
        %1783 = vmatpush.bf16.msra.mxu0 %v1561
        %1784 = vmatpush.bf16.msra.mxu0 %v1557
        %1785 = vmatpush.bf16.msra.mxu0 %v1553
        %1786 = vmatmul.bf16.gmra.mxu0 %v1280
        %v1787 = vpop.f32.mrf.mxu0
        %v1788 = vadd.f32 0.0, %v1787
        %v1789 = vpop.f32.mrf.mxu0
        %v1790 = vadd.f32 0.0, %v1789
        %1791 = vmatmul.bf16.gmra.mxu0 %v1282
        %v1792 = vpop.f32.mrf.mxu0
        %v1793 = vadd.f32 0.0, %v1792
        %v1794 = vpop.f32.mrf.mxu0
        %v1795 = vadd.f32 0.0, %v1794
        %1796 = vmatmul.bf16.gmra.mxu0 %v1284
        %v1797 = vpop.f32.mrf.mxu0
        %v1798 = vadd.f32 0.0, %v1797
        %v1799 = vpop.f32.mrf.mxu0
        %v1800 = vadd.f32 0.0, %v1799
        %1801 = vmatmul.bf16.gmra.mxu0 %v1286
        %v1802 = vpop.f32.mrf.mxu0
        %v1803 = vadd.f32 0.0, %v1802
        %v1804 = vpop.f32.mrf.mxu0
        %v1805 = vadd.f32 0.0, %v1804
        %1806 = vmatmul.bf16.gmra.mxu0 %v1288
        %v1807 = vpop.f32.mrf.mxu0
        %v1808 = vadd.f32 0.0, %v1807
        %v1809 = vpop.f32.mrf.mxu0
        %v1810 = vadd.f32 0.0, %v1809
        %1811 = vmatmul.bf16.gmra.mxu0 %v1290
        %v1812 = vpop.f32.mrf.mxu0
        %v1813 = vadd.f32 0.0, %v1812
        %v1814 = vpop.f32.mrf.mxu0
        %v1815 = vadd.f32 0.0, %v1814
        %1816 = vmatmul.bf16.gmra.mxu0 %v1292
        %v1817 = vpop.f32.mrf.mxu0
        %v1818 = vadd.f32 0.0, %v1817
        %v1819 = vpop.f32.mrf.mxu0
        %v1820 = vadd.f32 0.0, %v1819
        %1821 = vmatmul.bf16.gmra.mxu0 %v1294
        %v1822 = vpop.f32.mrf.mxu0
        %v1823 = vadd.f32 0.0, %v1822
        %v1824 = vpop.f32.mrf.mxu0
        %v1825 = vadd.f32 0.0, %v1824
        %1826 = vdwg.mxu0
        %1827 = vmatpush.bf16.msra.mxu0 %v1613
        %1828 = vmatpush.bf16.msra.mxu0 %v1609
        %1829 = vmatpush.bf16.msra.mxu0 %v1605
        %1830 = vmatpush.bf16.msra.mxu0 %v1601
        %1831 = vmatpush.bf16.msra.mxu0 %v1597
        %1832 = vmatpush.bf16.msra.mxu0 %v1593
        %1833 = vmatpush.bf16.msra.mxu0 %v1589
        %1834 = vmatpush.bf16.msra.mxu0 %v1585
        %1835 = vmatmul.bf16.gmra.mxu0 %v1281
        %v1836 = vpop.f32.mrf.mxu0
        %v1837 = vadd.f32 %v1788, %v1836
        %v1838 = vpop.f32.mrf.mxu0
        %v1839 = vadd.f32 %v1790, %v1838
        %1840 = vmatmul.bf16.gmra.mxu0 %v1283
        %v1841 = vpop.f32.mrf.mxu0
        %v1842 = vadd.f32 %v1793, %v1841
        %v1843 = vpop.f32.mrf.mxu0
        %v1844 = vadd.f32 %v1795, %v1843
        %1845 = vmatmul.bf16.gmra.mxu0 %v1285
        %v1846 = vpop.f32.mrf.mxu0
        %v1847 = vadd.f32 %v1798, %v1846
        %v1848 = vpop.f32.mrf.mxu0
        %v1849 = vadd.f32 %v1800, %v1848
        %1850 = vmatmul.bf16.gmra.mxu0 %v1287
        %v1851 = vpop.f32.mrf.mxu0
        %v1852 = vadd.f32 %v1803, %v1851
        %v1853 = vpop.f32.mrf.mxu0
        %v1854 = vadd.f32 %v1805, %v1853
        %1855 = vmatmul.bf16.gmra.mxu0 %v1289
        %v1856 = vpop.f32.mrf.mxu0
        %v1857 = vadd.f32 %v1808, %v1856
        %v1858 = vpop.f32.mrf.mxu0
        %v1859 = vadd.f32 %v1810, %v1858
        %1860 = vmatmul.bf16.gmra.mxu0 %v1291
        %v1861 = vpop.f32.mrf.mxu0
        %v1862 = vadd.f32 %v1813, %v1861
        %v1863 = vpop.f32.mrf.mxu0
        %v1864 = vadd.f32 %v1815, %v1863
        %1865 = vmatmul.bf16.gmra.mxu0 %v1293
        %v1866 = vpop.f32.mrf.mxu0
        %v1867 = vadd.f32 %v1818, %v1866
        %v1868 = vpop.f32.mrf.mxu0
        %v1869 = vadd.f32 %v1820, %v1868
        %1870 = vmatmul.bf16.gmra.mxu0 %v1295
        %v1871 = vpop.f32.mrf.mxu0
        %v1872 = vadd.f32 %v1823, %v1871
        %v1873 = vpop.f32.mrf.mxu0
        %v1874 = vadd.f32 %v1825, %v1873
        %1875 = vdwg.mxu0
        %1876 = vmatpush.bf16.msra.mxu0 %v1582
        %1877 = vmatpush.bf16.msra.mxu0 %v1578
        %1878 = vmatpush.bf16.msra.mxu0 %v1574
        %1879 = vmatpush.bf16.msra.mxu0 %v1570
        %1880 = vmatpush.bf16.msra.mxu0 %v1566
        %1881 = vmatpush.bf16.msra.mxu0 %v1562
        %1882 = vmatpush.bf16.msra.mxu0 %v1558
        %1883 = vmatpush.bf16.msra.mxu0 %v1554
        %1884 = vmatmul.bf16.gmra.mxu0 %v1280
        %v1885 = vpop.f32.mrf.mxu0
        %v1886 = vadd.f32 0.0, %v1885
        %v1887 = vpop.f32.mrf.mxu0
        %v1888 = vadd.f32 0.0, %v1887
        %1889 = vmatmul.bf16.gmra.mxu0 %v1282
        %v1890 = vpop.f32.mrf.mxu0
        %v1891 = vadd.f32 0.0, %v1890
        %v1892 = vpop.f32.mrf.mxu0
        %v1893 = vadd.f32 0.0, %v1892
        %1894 = vmatmul.bf16.gmra.mxu0 %v1284
        %v1895 = vpop.f32.mrf.mxu0
        %v1896 = vadd.f32 0.0, %v1895
        %v1897 = vpop.f32.mrf.mxu0
        %v1898 = vadd.f32 0.0, %v1897
        %1899 = vmatmul.bf16.gmra.mxu0 %v1286
        %v1900 = vpop.f32.mrf.mxu0
        %v1901 = vadd.f32 0.0, %v1900
        %v1902 = vpop.f32.mrf.mxu0
        %v1903 = vadd.f32 0.0, %v1902
        %1904 = vmatmul.bf16.gmra.mxu0 %v1288
        %v1905 = vpop.f32.mrf.mxu0
        %v1906 = vadd.f32 0.0, %v1905
        %v1907 = vpop.f32.mrf.mxu0
        %v1908 = vadd.f32 0.0, %v1907
        %1909 = vmatmul.bf16.gmra.mxu0 %v1290
        %v1910 = vpop.f32.mrf.mxu0
        %v1911 = vadd.f32 0.0, %v1910
        %v1912 = vpop.f32.mrf.mxu0
        %v1913 = vadd.f32 0.0, %v1912
        %1914 = vmatmul.bf16.gmra.mxu0 %v1292
        %v1915 = vpop.f32.mrf.mxu0
        %v1916 = vadd.f32 0.0, %v1915
        %v1917 = vpop.f32.mrf.mxu0
        %v1918 = vadd.f32 0.0, %v1917
        %1919 = vmatmul.bf16.gmra.mxu0 %v1294
        %v1920 = vpop.f32.mrf.mxu0
        %v1921 = vadd.f32 0.0, %v1920
        %v1922 = vpop.f32.mrf.mxu0
        %v1923 = vadd.f32 0.0, %v1922
        %1924 = vdwg.mxu0
        %1925 = vmatpush.bf16.msra.mxu0 %v1614
        %1926 = vmatpush.bf16.msra.mxu0 %v1610
        %1927 = vmatpush.bf16.msra.mxu0 %v1606
        %1928 = vmatpush.bf16.msra.mxu0 %v1602
        %1929 = vmatpush.bf16.msra.mxu0 %v1598
        %1930 = vmatpush.bf16.msra.mxu0 %v1594
        %1931 = vmatpush.bf16.msra.mxu0 %v1590
        %1932 = vmatpush.bf16.msra.mxu0 %v1586
        %1933 = vmatmul.bf16.gmra.mxu0 %v1281
        %v1934 = vpop.f32.mrf.mxu0
        %v1935 = vadd.f32 %v1886, %v1934
        %v1936 = vpop.f32.mrf.mxu0
        %v1937 = vadd.f32 %v1888, %v1936
        %1938 = vmatmul.bf16.gmra.mxu0 %v1283
        %v1939 = vpop.f32.mrf.mxu0
        %v1940 = vadd.f32 %v1891, %v1939
        %v1941 = vpop.f32.mrf.mxu0
        %v1942 = vadd.f32 %v1893, %v1941
        %1943 = vmatmul.bf16.gmra.mxu0 %v1285
        %v1944 = vpop.f32.mrf.mxu0
        %v1945 = vadd.f32 %v1896, %v1944
        %v1946 = vpop.f32.mrf.mxu0
        %v1947 = vadd.f32 %v1898, %v1946
        %1948 = vmatmul.bf16.gmra.mxu0 %v1287
        %v1949 = vpop.f32.mrf.mxu0
        %v1950 = vadd.f32 %v1901, %v1949
        %v1951 = vpop.f32.mrf.mxu0
        %v1952 = vadd.f32 %v1903, %v1951
        %1953 = vmatmul.bf16.gmra.mxu0 %v1289
        %v1954 = vpop.f32.mrf.mxu0
        %v1955 = vadd.f32 %v1906, %v1954
        %v1956 = vpop.f32.mrf.mxu0
        %v1957 = vadd.f32 %v1908, %v1956
        %1958 = vmatmul.bf16.gmra.mxu0 %v1291
        %v1959 = vpop.f32.mrf.mxu0
        %v1960 = vadd.f32 %v1911, %v1959
        %v1961 = vpop.f32.mrf.mxu0
        %v1962 = vadd.f32 %v1913, %v1961
        %1963 = vmatmul.bf16.gmra.mxu0 %v1293
        %v1964 = vpop.f32.mrf.mxu0
        %v1965 = vadd.f32 %v1916, %v1964
        %v1966 = vpop.f32.mrf.mxu0
        %v1967 = vadd.f32 %v1918, %v1966
        %1968 = vmatmul.bf16.gmra.mxu0 %v1295
        %v1969 = vpop.f32.mrf.mxu0
        %v1970 = vadd.f32 %v1921, %v1969
        %v1971 = vpop.f32.mrf.mxu0
        %v1972 = vadd.f32 %v1923, %v1971
        %1973 = vdwg.mxu0
        %1974 = vmatpush.bf16.msra.mxu0 %v1583
        %1975 = vmatpush.bf16.msra.mxu0 %v1579
        %1976 = vmatpush.bf16.msra.mxu0 %v1575
        %1977 = vmatpush.bf16.msra.mxu0 %v1571
        %1978 = vmatpush.bf16.msra.mxu0 %v1567
        %1979 = vmatpush.bf16.msra.mxu0 %v1563
        %1980 = vmatpush.bf16.msra.mxu0 %v1559
        %1981 = vmatpush.bf16.msra.mxu0 %v1555
        %1982 = vmatmul.bf16.gmra.mxu0 %v1280
        %v1983 = vpop.f32.mrf.mxu0
        %v1984 = vadd.f32 0.0, %v1983
        %v1985 = vpop.f32.mrf.mxu0
        %v1986 = vadd.f32 0.0, %v1985
        %1987 = vmatmul.bf16.gmra.mxu0 %v1282
        %v1988 = vpop.f32.mrf.mxu0
        %v1989 = vadd.f32 0.0, %v1988
        %v1990 = vpop.f32.mrf.mxu0
        %v1991 = vadd.f32 0.0, %v1990
        %1992 = vmatmul.bf16.gmra.mxu0 %v1284
        %v1993 = vpop.f32.mrf.mxu0
        %v1994 = vadd.f32 0.0, %v1993
        %v1995 = vpop.f32.mrf.mxu0
        %v1996 = vadd.f32 0.0, %v1995
        %1997 = vmatmul.bf16.gmra.mxu0 %v1286
        %v1998 = vpop.f32.mrf.mxu0
        %v1999 = vadd.f32 0.0, %v1998
        %v2000 = vpop.f32.mrf.mxu0
        %v2001 = vadd.f32 0.0, %v2000
        %2002 = vmatmul.bf16.gmra.mxu0 %v1288
        %v2003 = vpop.f32.mrf.mxu0
        %v2004 = vadd.f32 0.0, %v2003
        %v2005 = vpop.f32.mrf.mxu0
        %v2006 = vadd.f32 0.0, %v2005
        %2007 = vmatmul.bf16.gmra.mxu0 %v1290
        %v2008 = vpop.f32.mrf.mxu0
        %v2009 = vadd.f32 0.0, %v2008
        %v2010 = vpop.f32.mrf.mxu0
        %v2011 = vadd.f32 0.0, %v2010
        %2012 = vmatmul.bf16.gmra.mxu0 %v1292
        %v2013 = vpop.f32.mrf.mxu0
        %v2014 = vadd.f32 0.0, %v2013
        %v2015 = vpop.f32.mrf.mxu0
        %v2016 = vadd.f32 0.0, %v2015
        %2017 = vmatmul.bf16.gmra.mxu0 %v1294
        %v2018 = vpop.f32.mrf.mxu0
        %v2019 = vadd.f32 0.0, %v2018
        %v2020 = vpop.f32.mrf.mxu0
        %v2021 = vadd.f32 0.0, %v2020
        %2022 = vdwg.mxu0
        %2023 = vmatpush.bf16.msra.mxu0 %v1615
        %2024 = vmatpush.bf16.msra.mxu0 %v1611
        %2025 = vmatpush.bf16.msra.mxu0 %v1607
        %2026 = vmatpush.bf16.msra.mxu0 %v1603
        %2027 = vmatpush.bf16.msra.mxu0 %v1599
        %2028 = vmatpush.bf16.msra.mxu0 %v1595
        %2029 = vmatpush.bf16.msra.mxu0 %v1591
        %2030 = vmatpush.bf16.msra.mxu0 %v1587
        %2031 = vmatmul.bf16.gmra.mxu0 %v1281
        %v2032 = vpop.f32.mrf.mxu0
        %v2033 = vadd.f32 %v1984, %v2032
        %v2034 = vpop.f32.mrf.mxu0
        %v2035 = vadd.f32 %v1986, %v2034
        %2036 = vmatmul.bf16.gmra.mxu0 %v1283
        %v2037 = vpop.f32.mrf.mxu0
        %v2038 = vadd.f32 %v1989, %v2037
        %v2039 = vpop.f32.mrf.mxu0
        %v2040 = vadd.f32 %v1991, %v2039
        %2041 = vmatmul.bf16.gmra.mxu0 %v1285
        %v2042 = vpop.f32.mrf.mxu0
        %v2043 = vadd.f32 %v1994, %v2042
        %v2044 = vpop.f32.mrf.mxu0
        %v2045 = vadd.f32 %v1996, %v2044
        %2046 = vmatmul.bf16.gmra.mxu0 %v1287
        %v2047 = vpop.f32.mrf.mxu0
        %v2048 = vadd.f32 %v1999, %v2047
        %v2049 = vpop.f32.mrf.mxu0
        %v2050 = vadd.f32 %v2001, %v2049
        %2051 = vmatmul.bf16.gmra.mxu0 %v1289
        %v2052 = vpop.f32.mrf.mxu0
        %v2053 = vadd.f32 %v2004, %v2052
        %v2054 = vpop.f32.mrf.mxu0
        %v2055 = vadd.f32 %v2006, %v2054
        %2056 = vmatmul.bf16.gmra.mxu0 %v1291
        %v2057 = vpop.f32.mrf.mxu0
        %v2058 = vadd.f32 %v2009, %v2057
        %v2059 = vpop.f32.mrf.mxu0
        %v2060 = vadd.f32 %v2011, %v2059
        %2061 = vmatmul.bf16.gmra.mxu0 %v1293
        %v2062 = vpop.f32.mrf.mxu0
        %v2063 = vadd.f32 %v2014, %v2062
        %v2064 = vpop.f32.mrf.mxu0
        %v2065 = vadd.f32 %v2016, %v2064
        %2066 = vmatmul.bf16.gmra.mxu0 %v1295
        %v2067 = vpop.f32.mrf.mxu0
        %v2068 = vadd.f32 %v2019, %v2067
        %v2069 = vpop.f32.mrf.mxu0
        %v2070 = vadd.f32 %v2021, %v2069
        %2071 = vdwg.mxu0
        %v2072 = vld [vmem:[%s490] sm:$0xff]
        %v2073 = vld [vmem:[%s490 + $0x8] sm:$0xff]
        %v2074 = vld [vmem:[%s490 + $0x10] sm:$0xff]
        %v2075 = vld [vmem:[%s490 + $0x18] sm:$0xff]
        %v2076 = vld [vmem:[%s490 + $0x20] sm:$0xff]
        %v2077 = vld [vmem:[%s490 + $0x28] sm:$0xff]
        %v2078 = vld [vmem:[%s490 + $0x30] sm:$0xff]
        %v2079 = vld [vmem:[%s490 + $0x38] sm:$0xff]
        %v2080 = vld [vmem:[%s490 + $0x40] sm:$0xff]
        %v2081 = vld [vmem:[%s490 + $0x48] sm:$0xff]
        %v2082 = vld [vmem:[%s490 + $0x50] sm:$0xff]
        %v2083 = vld [vmem:[%s490 + $0x58] sm:$0xff]
        %v2084 = vld [vmem:[%s490 + $0x60] sm:$0xff]
        %v2085 = vld [vmem:[%s490 + $0x68] sm:$0xff]
        %v2086 = vld [vmem:[%s490 + $0x70] sm:$0xff]
        %v2087 = vld [vmem:[%s490 + $0x78] sm:$0xff]
        %v2088 = vunpack.c.l.bf16 %v2072
        %v2089 = vunpack.c.h.bf16 %v2072
        %v2090 = vunpack.c.l.bf16 %v2073
        %v2091 = vunpack.c.h.bf16 %v2073
        %v2092 = vunpack.c.l.bf16 %v2074
        %v2093 = vunpack.c.h.bf16 %v2074
        %v2094 = vunpack.c.l.bf16 %v2075
        %v2095 = vunpack.c.h.bf16 %v2075
        %v2096 = vunpack.c.l.bf16 %v2076
        %v2097 = vunpack.c.h.bf16 %v2076
        %v2098 = vunpack.c.l.bf16 %v2077
        %v2099 = vunpack.c.h.bf16 %v2077
        %v2100 = vunpack.c.l.bf16 %v2078
        %v2101 = vunpack.c.h.bf16 %v2078
        %v2102 = vunpack.c.l.bf16 %v2079
        %v2103 = vunpack.c.h.bf16 %v2079
        %v2104 = vunpack.c.l.bf16 %v2080
        %v2105 = vunpack.c.h.bf16 %v2080
        %v2106 = vunpack.c.l.bf16 %v2081
        %v2107 = vunpack.c.h.bf16 %v2081
        %v2108 = vunpack.c.l.bf16 %v2082
        %v2109 = vunpack.c.h.bf16 %v2082
        %v2110 = vunpack.c.l.bf16 %v2083
        %v2111 = vunpack.c.h.bf16 %v2083
        %v2112 = vunpack.c.l.bf16 %v2084
        %v2113 = vunpack.c.h.bf16 %v2084
        %v2114 = vunpack.c.l.bf16 %v2085
        %v2115 = vunpack.c.h.bf16 %v2085
        %v2116 = vunpack.c.l.bf16 %v2086
        %v2117 = vunpack.c.h.bf16 %v2086
        %v2118 = vunpack.c.l.bf16 %v2087
        %v2119 = vunpack.c.h.bf16 %v2087
        %v2120 = vadd.f32 %v1739, %v2088
        %v2121 = vadd.f32 %v1837, %v2089
        %v2122 = vadd.f32 %v1741, %v2090
        %v2123 = vadd.f32 %v1839, %v2091
        %v2124 = vadd.f32 %v1744, %v2092
        %v2125 = vadd.f32 %v1842, %v2093
        %v2126 = vadd.f32 %v1746, %v2094
        %v2127 = vadd.f32 %v1844, %v2095
        %v2128 = vadd.f32 %v1749, %v2096
        %v2129 = vadd.f32 %v1847, %v2097
        %v2130 = vadd.f32 %v1751, %v2098
        %v2131 = vadd.f32 %v1849, %v2099
        %v2132 = vadd.f32 %v1754, %v2100
        %v2133 = vadd.f32 %v1852, %v2101
        %v2134 = vadd.f32 %v1756, %v2102
        %v2135 = vadd.f32 %v1854, %v2103
        %v2136 = vadd.f32 %v1759, %v2104
        %v2137 = vadd.f32 %v1857, %v2105
        %v2138 = vadd.f32 %v1761, %v2106
        %v2139 = vadd.f32 %v1859, %v2107
        %v2140 = vadd.f32 %v1764, %v2108
        %v2141 = vadd.f32 %v1862, %v2109
        %v2142 = vadd.f32 %v1766, %v2110
        %v2143 = vadd.f32 %v1864, %v2111
        %v2144 = vadd.f32 %v1769, %v2112
        %v2145 = vadd.f32 %v1867, %v2113
        %v2146 = vadd.f32 %v1771, %v2114
        %v2147 = vadd.f32 %v1869, %v2115
        %v2148 = vadd.f32 %v1774, %v2116
        %v2149 = vadd.f32 %v1872, %v2117
        %v2150 = vadd.f32 %v1776, %v2118
        %v2151 = vadd.f32 %v1874, %v2119
        %v2152 = vpack.c.bf16 %v2121, %v2120
        %v2153 = vpack.c.bf16 %v2123, %v2122
        %v2154 = vpack.c.bf16 %v2125, %v2124
        %v2155 = vpack.c.bf16 %v2127, %v2126
        %v2156 = vpack.c.bf16 %v2129, %v2128
        %v2157 = vpack.c.bf16 %v2131, %v2130
        %v2158 = vpack.c.bf16 %v2133, %v2132
        %v2159 = vpack.c.bf16 %v2135, %v2134
        %v2160 = vpack.c.bf16 %v2137, %v2136
        %v2161 = vpack.c.bf16 %v2139, %v2138
        %v2162 = vpack.c.bf16 %v2141, %v2140
        %v2163 = vpack.c.bf16 %v2143, %v2142
        %v2164 = vpack.c.bf16 %v2145, %v2144
        %v2165 = vpack.c.bf16 %v2147, %v2146
        %v2166 = vpack.c.bf16 %v2149, %v2148
        %v2167 = vpack.c.bf16 %v2151, %v2150
        %v2168 = vpack.c.bf16 %v2033, %v1935
        %v2169 = vpack.c.bf16 %v2035, %v1937
        %v2170 = vpack.c.bf16 %v2038, %v1940
        %v2171 = vpack.c.bf16 %v2040, %v1942
        %v2172 = vpack.c.bf16 %v2043, %v1945
        %v2173 = vpack.c.bf16 %v2045, %v1947
        %v2174 = vpack.c.bf16 %v2048, %v1950
        %v2175 = vpack.c.bf16 %v2050, %v1952
        %v2176 = vpack.c.bf16 %v2053, %v1955
        %v2177 = vpack.c.bf16 %v2055, %v1957
        %v2178 = vpack.c.bf16 %v2058, %v1960
        %v2179 = vpack.c.bf16 %v2060, %v1962
        %v2180 = vpack.c.bf16 %v2063, %v1965
        %v2181 = vpack.c.bf16 %v2065, %v1967
        %v2182 = vpack.c.bf16 %v2068, %v1970
        %v2183 = vpack.c.bf16 %v2070, %v1972
        %v2200 = vrot.slane %v2152, 4
        %v2201 = vrot.slane %v2153, 4
        %v2202 = vrot.slane %v2154, 4
        %v2203 = vrot.slane %v2155, 4
        %v2204 = vrot.slane %v2156, 4
        %v2205 = vrot.slane %v2157, 4
        %v2206 = vrot.slane %v2158, 4
        %v2207 = vrot.slane %v2159, 4
        %v2208 = vrot.slane %v2160, 4
        %v2209 = vrot.slane %v2161, 4
        %v2210 = vrot.slane %v2162, 4
        %v2211 = vrot.slane %v2163, 4
        %v2212 = vrot.slane %v2164, 4
        %v2213 = vrot.slane %v2165, 4
        %v2214 = vrot.slane %v2166, 4
        %v2215 = vrot.slane %v2167, 4
        %v2232 = vrot.slane %v2168, 4
        %v2233 = vrot.slane %v2169, 4
        %v2234 = vrot.slane %v2170, 4
        %v2235 = vrot.slane %v2171, 4
        %v2236 = vrot.slane %v2172, 4
        %v2237 = vrot.slane %v2173, 4
        %v2238 = vrot.slane %v2174, 4
        %v2239 = vrot.slane %v2175, 4
        %v2240 = vrot.slane %v2176, 4
        %v2241 = vrot.slane %v2177, 4
        %v2242 = vrot.slane %v2178, 4
        %v2243 = vrot.slane %v2179, 4
        %v2244 = vrot.slane %v2180, 4
        %v2245 = vrot.slane %v2181, 4
        %v2246 = vrot.slane %v2182, 4
        %v2247 = vrot.slane %v2183, 4
        %v2248 = vld [vmem:[%s1] sm:$0xf]
        %v2249 = vld [vmem:[%s1 + $0x4] sm:$0xf]
        %v2250 = vld [vmem:[%s1 + $0x8] sm:$0xf]
        %v2251 = vld [vmem:[%s1 + $0xc] sm:$0xf]
        %v2252 = vld [vmem:[%s1 + $0x10] sm:$0xf]
        %v2253 = vld [vmem:[%s1 + $0x14] sm:$0xf]
        %v2254 = vld [vmem:[%s1 + $0x18] sm:$0xf]
        %v2255 = vld [vmem:[%s1 + $0x1c] sm:$0xf]
        %v2256 = vld [vmem:[%s1 + $0x20] sm:$0xf]
        %v2257 = vld [vmem:[%s1 + $0x24] sm:$0xf]
        %v2258 = vld [vmem:[%s1 + $0x28] sm:$0xf]
        %v2259 = vld [vmem:[%s1 + $0x2c] sm:$0xf]
        %v2260 = vld [vmem:[%s1 + $0x30] sm:$0xf]
        %v2261 = vld [vmem:[%s1 + $0x34] sm:$0xf]
        %v2262 = vld [vmem:[%s1 + $0x38] sm:$0xf]
        %v2263 = vld [vmem:[%s1 + $0x3c] sm:$0xf]
        %v2272 = vunpack.c.l.b16 %v2248
        %v2273 = vunpack.c.l.b16 %v2249
        %v2274 = vunpack.c.l.b16 %v2250
        %v2275 = vunpack.c.l.b16 %v2251
        %v2276 = vunpack.c.l.b16 %v2252
        %v2277 = vunpack.c.l.b16 %v2253
        %v2278 = vunpack.c.l.b16 %v2254
        %v2279 = vunpack.c.l.b16 %v2255
        %v2280 = vpack.c.b16 %v2273, %v2272
        %v2281 = vpack.c.b16 %v2275, %v2274
        %v2282 = vpack.c.b16 %v2277, %v2276
        %v2283 = vpack.c.b16 %v2279, %v2278
        %v2288 = vunpack.c.l.b16 %v2152
        %v2289 = vunpack.c.l.b16 %v2153
        %v2290 = vunpack.c.l.b16 %v2154
        %v2291 = vunpack.c.l.b16 %v2155
        %v2292 = vunpack.c.l.b16 %v2156
        %v2293 = vunpack.c.l.b16 %v2157
        %v2294 = vunpack.c.l.b16 %v2158
        %v2295 = vunpack.c.l.b16 %v2159
        %v2296 = vunpack.c.l.b16 %v2160
        %v2297 = vunpack.c.l.b16 %v2161
        %v2298 = vunpack.c.l.b16 %v2162
        %v2299 = vunpack.c.l.b16 %v2163
        %v2300 = vunpack.c.l.b16 %v2164
        %v2301 = vunpack.c.l.b16 %v2165
        %v2302 = vunpack.c.l.b16 %v2166
        %v2303 = vunpack.c.l.b16 %v2167
        %v2304 = vpack.c.b16 %v2289, %v2288
        %v2305 = vpack.c.b16 %v2291, %v2290
        %v2306 = vpack.c.b16 %v2293, %v2292
        %v2307 = vpack.c.b16 %v2295, %v2294
        %v2308 = vpack.c.b16 %v2297, %v2296
        %v2309 = vpack.c.b16 %v2299, %v2298
        %v2310 = vpack.c.b16 %v2301, %v2300
        %v2311 = vpack.c.b16 %v2303, %v2302
        %2320 = vmatpush.bf16.xpose.msra.mxu0 %v2311
        %2321 = vmatpush.bf16.xpose.msra.mxu0 %v2310
        %2322 = vmatpush.bf16.xpose.msra.mxu0 %v2309
        %2323 = vmatpush.bf16.xpose.msra.mxu0 %v2308
        %2324 = vmatpush.bf16.xpose.msra.mxu0 %v2307
        %2325 = vmatpush.bf16.xpose.msra.mxu0 %v2306
        %2326 = vmatpush.bf16.xpose.msra.mxu0 %v2305
        %2327 = vmatpush.bf16.xpose.msra.mxu0 %v2304
        %2328 = vmatmul.bf16.gmra.mxu0 %v2280
        %v2329 = vpop.f32.mrf.mxu0
        %v2330 = vadd.f32 0.0, %v2329
        %v2331 = vpop.f32.mrf.mxu0
        %v2332 = vadd.f32 0.0, %v2331
        %2333 = vmatmul.bf16.gmra.mxu0 %v2281
        %v2334 = vpop.f32.mrf.mxu0
        %v2335 = vadd.f32 0.0, %v2334
        %v2336 = vpop.f32.mrf.mxu0
        %v2337 = vadd.f32 0.0, %v2336
        %2338 = vmatmul.bf16.gmra.mxu0 %v2282
        %v2339 = vpop.f32.mrf.mxu0
        %v2340 = vadd.f32 0.0, %v2339
        %v2341 = vpop.f32.mrf.mxu0
        %v2342 = vadd.f32 0.0, %v2341
        %2343 = vmatmul.bf16.gmra.mxu0 %v2283
        %v2344 = vpop.f32.mrf.mxu0
        %v2345 = vadd.f32 0.0, %v2344
        %v2346 = vpop.f32.mrf.mxu0
        %v2347 = vadd.f32 0.0, %v2346
        %2348 = vdwg.mxu0
        %v2357 = vunpack.c.l.b16 %v2256
        %v2358 = vunpack.c.l.b16 %v2257
        %v2359 = vunpack.c.l.b16 %v2258
        %v2360 = vunpack.c.l.b16 %v2259
        %v2361 = vunpack.c.l.b16 %v2260
        %v2362 = vunpack.c.l.b16 %v2261
        %v2363 = vunpack.c.l.b16 %v2262
        %v2364 = vunpack.c.l.b16 %v2263
        %v2365 = vpack.c.b16 %v2358, %v2357
        %v2366 = vpack.c.b16 %v2360, %v2359
        %v2367 = vpack.c.b16 %v2362, %v2361
        %v2368 = vpack.c.b16 %v2364, %v2363
        %v2373 = vunpack.c.l.b16 %v2200
        %v2374 = vunpack.c.l.b16 %v2201
        %v2375 = vunpack.c.l.b16 %v2202
        %v2376 = vunpack.c.l.b16 %v2203
        %v2377 = vunpack.c.l.b16 %v2204
        %v2378 = vunpack.c.l.b16 %v2205
        %v2379 = vunpack.c.l.b16 %v2206
        %v2380 = vunpack.c.l.b16 %v2207
        %v2381 = vunpack.c.l.b16 %v2208
        %v2382 = vunpack.c.l.b16 %v2209
        %v2383 = vunpack.c.l.b16 %v2210
        %v2384 = vunpack.c.l.b16 %v2211
        %v2385 = vunpack.c.l.b16 %v2212
        %v2386 = vunpack.c.l.b16 %v2213
        %v2387 = vunpack.c.l.b16 %v2214
        %v2388 = vunpack.c.l.b16 %v2215
        %v2389 = vpack.c.b16 %v2374, %v2373
        %v2390 = vpack.c.b16 %v2376, %v2375
        %v2391 = vpack.c.b16 %v2378, %v2377
        %v2392 = vpack.c.b16 %v2380, %v2379
        %v2393 = vpack.c.b16 %v2382, %v2381
        %v2394 = vpack.c.b16 %v2384, %v2383
        %v2395 = vpack.c.b16 %v2386, %v2385
        %v2396 = vpack.c.b16 %v2388, %v2387
        %2405 = vmatpush.bf16.xpose.msra.mxu0 %v2396
        %2406 = vmatpush.bf16.xpose.msra.mxu0 %v2395
        %2407 = vmatpush.bf16.xpose.msra.mxu0 %v2394
        %2408 = vmatpush.bf16.xpose.msra.mxu0 %v2393
        %2409 = vmatpush.bf16.xpose.msra.mxu0 %v2392
        %2410 = vmatpush.bf16.xpose.msra.mxu0 %v2391
        %2411 = vmatpush.bf16.xpose.msra.mxu0 %v2390
        %2412 = vmatpush.bf16.xpose.msra.mxu0 %v2389
        %2413 = vmatmul.bf16.gmra.mxu0 %v2365
        %v2414 = vpop.f32.mrf.mxu0
        %v2415 = vadd.f32 0.0, %v2414
        %v2416 = vpop.f32.mrf.mxu0
        %v2417 = vadd.f32 0.0, %v2416
        %2418 = vmatmul.bf16.gmra.mxu0 %v2366
        %v2419 = vpop.f32.mrf.mxu0
        %v2420 = vadd.f32 0.0, %v2419
        %v2421 = vpop.f32.mrf.mxu0
        %v2422 = vadd.f32 0.0, %v2421
        %2423 = vmatmul.bf16.gmra.mxu0 %v2367
        %v2424 = vpop.f32.mrf.mxu0
        %v2425 = vadd.f32 0.0, %v2424
        %v2426 = vpop.f32.mrf.mxu0
        %v2427 = vadd.f32 0.0, %v2426
        %2428 = vmatmul.bf16.gmra.mxu0 %v2368
        %v2429 = vpop.f32.mrf.mxu0
        %v2430 = vadd.f32 0.0, %v2429
        %v2431 = vpop.f32.mrf.mxu0
        %v2432 = vadd.f32 0.0, %v2431
        %2433 = vdwg.mxu0
        %v2434 = vld [vmem:[#allocation2] sm:$0xff]
        %v2435 = vld [vmem:[#allocation2 + $0x8] sm:$0xff]
        %v2436 = vld [vmem:[#allocation2 + $0x10] sm:$0xff]
        %v2437 = vld [vmem:[#allocation2 + $0x18] sm:$0xff]
        %v2438 = vld [vmem:[#allocation2 + $0x20] sm:$0xff]
        %v2439 = vld [vmem:[#allocation2 + $0x28] sm:$0xff]
        %v2440 = vld [vmem:[#allocation2 + $0x30] sm:$0xff]
        %v2441 = vld [vmem:[#allocation2 + $0x38] sm:$0xff]
        %v2442 = vld [vmem:[#allocation2 + $0x40] sm:$0xff]
        %v2443 = vld [vmem:[#allocation2 + $0x48] sm:$0xff]
        %v2444 = vld [vmem:[#allocation2 + $0x50] sm:$0xff]
        %v2445 = vld [vmem:[#allocation2 + $0x58] sm:$0xff]
        %v2446 = vld [vmem:[#allocation2 + $0x60] sm:$0xff]
        %v2447 = vld [vmem:[#allocation2 + $0x68] sm:$0xff]
        %v2448 = vld [vmem:[#allocation2 + $0x70] sm:$0xff]
        %v2449 = vld [vmem:[#allocation2 + $0x78] sm:$0xff]
        %2450 = vmax.xlane.f32.xlu0 %v2330
        %v2451 = vpop.xlane.xlu0 %2450
        %2452 = vmax.xlane.f32.xlu0 %v2332
        %v2453 = vpop.xlane.xlu0 %2452
        %2454 = vmax.xlane.f32.xlu0 %v2335
        %v2455 = vpop.xlane.xlu0 %2454
        %2456 = vmax.xlane.f32.xlu0 %v2337
        %v2457 = vpop.xlane.xlu0 %2456
        %2458 = vmax.xlane.f32.xlu0 %v2340
        %v2459 = vpop.xlane.xlu0 %2458
        %2460 = vmax.xlane.f32.xlu0 %v2342
        %v2461 = vpop.xlane.xlu0 %2460
        %2462 = vmax.xlane.f32.xlu0 %v2345
        %v2463 = vpop.xlane.xlu0 %2462
        %2464 = vmax.xlane.f32.xlu0 %v2347
        %v2465 = vpop.xlane.xlu0 %2464
        %2466 = vmax.xlane.f32.xlu0 %v2415
        %v2467 = vpop.xlane.xlu0 %2466
        %2468 = vmax.xlane.f32.xlu0 %v2417
        %v2469 = vpop.xlane.xlu0 %2468
        %2470 = vmax.xlane.f32.xlu0 %v2420
        %v2471 = vpop.xlane.xlu0 %2470
        %2472 = vmax.xlane.f32.xlu0 %v2422
        %v2473 = vpop.xlane.xlu0 %2472
        %2474 = vmax.xlane.f32.xlu0 %v2425
        %v2475 = vpop.xlane.xlu0 %2474
        %2476 = vmax.xlane.f32.xlu0 %v2427
        %v2477 = vpop.xlane.xlu0 %2476
        %2478 = vmax.xlane.f32.xlu0 %v2430
        %v2479 = vpop.xlane.xlu0 %2478
        %2480 = vmax.xlane.f32.xlu0 %v2432
        %v2481 = vpop.xlane.xlu0 %2480
        %v2482 = vmax.f32 %v2434, %v2451
        %v2483 = vmax.f32 %v2435, %v2453
        %v2484 = vmax.f32 %v2436, %v2455
        %v2485 = vmax.f32 %v2437, %v2457
        %v2486 = vmax.f32 %v2438, %v2459
        %v2487 = vmax.f32 %v2439, %v2461
        %v2488 = vmax.f32 %v2440, %v2463
        %v2489 = vmax.f32 %v2441, %v2465
        %v2490 = vmax.f32 %v2442, %v2467
        %v2491 = vmax.f32 %v2443, %v2469
        %v2492 = vmax.f32 %v2444, %v2471
        %v2493 = vmax.f32 %v2445, %v2473
        %v2494 = vmax.f32 %v2446, %v2475
        %v2495 = vmax.f32 %v2447, %v2477
        %v2496 = vmax.f32 %v2448, %v2479
        %v2497 = vmax.f32 %v2449, %v2481
        %v2498 = vsub.f32 %v2434, %v2482
        %v2499 = vsub.f32 %v2435, %v2483
        %v2500 = vsub.f32 %v2436, %v2484
        %v2501 = vsub.f32 %v2437, %v2485
        %v2502 = vsub.f32 %v2438, %v2486
        %v2503 = vsub.f32 %v2439, %v2487
        %v2504 = vsub.f32 %v2440, %v2488
        %v2505 = vsub.f32 %v2441, %v2489
        %v2506 = vsub.f32 %v2442, %v2490
        %v2507 = vsub.f32 %v2443, %v2491
        %v2508 = vsub.f32 %v2444, %v2492
        %v2509 = vsub.f32 %v2445, %v2493
        %v2510 = vsub.f32 %v2446, %v2494
        %v2511 = vsub.f32 %v2447, %v2495
        %v2512 = vsub.f32 %v2448, %v2496
        %v2513 = vsub.f32 %v2449, %v2497
        %v2514 = vmul.f32 %v2498, 1.442695
        %v2515 = vpow.pop %v2514
        %v2516 = vmul.f32 %v2499, 1.442695
        %v2517 = vpow.pop %v2516
        %v2518 = vmul.f32 %v2500, 1.442695
        %v2519 = vpow.pop %v2518
        %v2520 = vmul.f32 %v2501, 1.442695
        %v2521 = vpow.pop %v2520
        %v2522 = vmul.f32 %v2502, 1.442695
        %v2523 = vpow.pop %v2522
        %v2524 = vmul.f32 %v2503, 1.442695
        %v2525 = vpow.pop %v2524
        %v2526 = vmul.f32 %v2504, 1.442695
        %v2527 = vpow.pop %v2526
        %v2528 = vmul.f32 %v2505, 1.442695
        %v2529 = vpow.pop %v2528
        %v2530 = vmul.f32 %v2506, 1.442695
        %v2531 = vpow.pop %v2530
        %v2532 = vmul.f32 %v2507, 1.442695
        %v2533 = vpow.pop %v2532
        %v2534 = vmul.f32 %v2508, 1.442695
        %v2535 = vpow.pop %v2534
        %v2536 = vmul.f32 %v2509, 1.442695
        %v2537 = vpow.pop %v2536
        %v2538 = vmul.f32 %v2510, 1.442695
        %v2539 = vpow.pop %v2538
        %v2540 = vmul.f32 %v2511, 1.442695
        %v2541 = vpow.pop %v2540
        %v2542 = vmul.f32 %v2512, 1.442695
        %v2543 = vpow.pop %v2542
        %v2544 = vmul.f32 %v2513, 1.442695
        %v2545 = vpow.pop %v2544
        %2547 = vset.pattern.permute.xlu0 0
        %2548 = vperm.xlu0 %2547, %v2482
        %v2549 = vpop.permute.xlu0 %2548
        %2552 = vset.pattern.permute.xlu0 0
        %2553 = vperm.xlu0 %2552, %v2483
        %v2554 = vpop.permute.xlu0 %2553
        %2557 = vset.pattern.permute.xlu0 0
        %2558 = vperm.xlu0 %2557, %v2484
        %v2559 = vpop.permute.xlu0 %2558
        %2562 = vset.pattern.permute.xlu0 0
        %2563 = vperm.xlu0 %2562, %v2485
        %v2564 = vpop.permute.xlu0 %2563
        %2567 = vset.pattern.permute.xlu0 0
        %2568 = vperm.xlu0 %2567, %v2486
        %v2569 = vpop.permute.xlu0 %2568
        %2572 = vset.pattern.permute.xlu0 0
        %2573 = vperm.xlu0 %2572, %v2487
        %v2574 = vpop.permute.xlu0 %2573
        %2577 = vset.pattern.permute.xlu0 0
        %2578 = vperm.xlu0 %2577, %v2488
        %v2579 = vpop.permute.xlu0 %2578
        %2582 = vset.pattern.permute.xlu0 0
        %2583 = vperm.xlu0 %2582, %v2489
        %v2584 = vpop.permute.xlu0 %2583
        %2587 = vset.pattern.permute.xlu0 0
        %2588 = vperm.xlu0 %2587, %v2490
        %v2589 = vpop.permute.xlu0 %2588
        %2592 = vset.pattern.permute.xlu0 0
        %2593 = vperm.xlu0 %2592, %v2491
        %v2594 = vpop.permute.xlu0 %2593
        %2597 = vset.pattern.permute.xlu0 0
        %2598 = vperm.xlu0 %2597, %v2492
        %v2599 = vpop.permute.xlu0 %2598
        %2602 = vset.pattern.permute.xlu0 0
        %2603 = vperm.xlu0 %2602, %v2493
        %v2604 = vpop.permute.xlu0 %2603
        %2607 = vset.pattern.permute.xlu0 0
        %2608 = vperm.xlu0 %2607, %v2494
        %v2609 = vpop.permute.xlu0 %2608
        %2612 = vset.pattern.permute.xlu0 0
        %2613 = vperm.xlu0 %2612, %v2495
        %v2614 = vpop.permute.xlu0 %2613
        %2617 = vset.pattern.permute.xlu0 0
        %2618 = vperm.xlu0 %2617, %v2496
        %v2619 = vpop.permute.xlu0 %2618
        %2622 = vset.pattern.permute.xlu0 0
        %2623 = vperm.xlu0 %2622, %v2497
        %v2624 = vpop.permute.xlu0 %2623
        %v2626 = vsub.f32 %v2330, %v2549
        %v2627 = vsub.f32 %v2332, %v2554
        %v2628 = vsub.f32 %v2335, %v2559
        %v2629 = vsub.f32 %v2337, %v2564
        %v2630 = vsub.f32 %v2340, %v2569
        %v2631 = vsub.f32 %v2342, %v2574
        %v2632 = vsub.f32 %v2345, %v2579
        %v2633 = vsub.f32 %v2347, %v2584
        %v2634 = vsub.f32 %v2415, %v2589
        %v2635 = vsub.f32 %v2417, %v2594
        %v2636 = vsub.f32 %v2420, %v2599
        %v2637 = vsub.f32 %v2422, %v2604
        %v2638 = vsub.f32 %v2425, %v2609
        %v2639 = vsub.f32 %v2427, %v2614
        %v2640 = vsub.f32 %v2430, %v2619
        %v2641 = vsub.f32 %v2432, %v2624
        %v2642 = vmul.f32 %v2626, 1.442695
        %v2643 = vpow.pop %v2642
        %v2644 = vmul.f32 %v2627, 1.442695
        %v2645 = vpow.pop %v2644
        %v2646 = vmul.f32 %v2628, 1.442695
        %v2647 = vpow.pop %v2646
        %v2648 = vmul.f32 %v2629, 1.442695
        %v2649 = vpow.pop %v2648
        %v2650 = vmul.f32 %v2630, 1.442695
        %v2651 = vpow.pop %v2650
        %v2652 = vmul.f32 %v2631, 1.442695
        %v2653 = vpow.pop %v2652
        %v2654 = vmul.f32 %v2632, 1.442695
        %v2655 = vpow.pop %v2654
        %v2656 = vmul.f32 %v2633, 1.442695
        %v2657 = vpow.pop %v2656
        %v2658 = vmul.f32 %v2634, 1.442695
        %v2659 = vpow.pop %v2658
        %v2660 = vmul.f32 %v2635, 1.442695
        %v2661 = vpow.pop %v2660
        %v2662 = vmul.f32 %v2636, 1.442695
        %v2663 = vpow.pop %v2662
        %v2664 = vmul.f32 %v2637, 1.442695
        %v2665 = vpow.pop %v2664
        %v2666 = vmul.f32 %v2638, 1.442695
        %v2667 = vpow.pop %v2666
        %v2668 = vmul.f32 %v2639, 1.442695
        %v2669 = vpow.pop %v2668
        %v2670 = vmul.f32 %v2640, 1.442695
        %v2671 = vpow.pop %v2670
        %v2672 = vmul.f32 %v2641, 1.442695
        %v2673 = vpow.pop %v2672
        %v2674 = vld [vmem:[#allocation3] sm:$0xff]
        %v2675 = vld [vmem:[#allocation3 + $0x8] sm:$0xff]
        %v2676 = vld [vmem:[#allocation3 + $0x10] sm:$0xff]
        %v2677 = vld [vmem:[#allocation3 + $0x18] sm:$0xff]
        %v2678 = vld [vmem:[#allocation3 + $0x20] sm:$0xff]
        %v2679 = vld [vmem:[#allocation3 + $0x28] sm:$0xff]
        %v2680 = vld [vmem:[#allocation3 + $0x30] sm:$0xff]
        %v2681 = vld [vmem:[#allocation3 + $0x38] sm:$0xff]
        %v2682 = vld [vmem:[#allocation3 + $0x40] sm:$0xff]
        %v2683 = vld [vmem:[#allocation3 + $0x48] sm:$0xff]
        %v2684 = vld [vmem:[#allocation3 + $0x50] sm:$0xff]
        %v2685 = vld [vmem:[#allocation3 + $0x58] sm:$0xff]
        %v2686 = vld [vmem:[#allocation3 + $0x60] sm:$0xff]
        %v2687 = vld [vmem:[#allocation3 + $0x68] sm:$0xff]
        %v2688 = vld [vmem:[#allocation3 + $0x70] sm:$0xff]
        %v2689 = vld [vmem:[#allocation3 + $0x78] sm:$0xff]
        %v2690 = vmul.f32 %v2515, %v2674
        %v2691 = vmul.f32 %v2517, %v2675
        %v2692 = vmul.f32 %v2519, %v2676
        %v2693 = vmul.f32 %v2521, %v2677
        %v2694 = vmul.f32 %v2523, %v2678
        %v2695 = vmul.f32 %v2525, %v2679
        %v2696 = vmul.f32 %v2527, %v2680
        %v2697 = vmul.f32 %v2529, %v2681
        %v2698 = vmul.f32 %v2531, %v2682
        %v2699 = vmul.f32 %v2533, %v2683
        %v2700 = vmul.f32 %v2535, %v2684
        %v2701 = vmul.f32 %v2537, %v2685
        %v2702 = vmul.f32 %v2539, %v2686
        %v2703 = vmul.f32 %v2541, %v2687
        %v2704 = vmul.f32 %v2543, %v2688
        %v2705 = vmul.f32 %v2545, %v2689
        %2706 = vadd.xlane.f32.xlu0 %v2643
        %v2707 = vpop.xlane.xlu0 %2706
        %2708 = vadd.xlane.f32.xlu0 %v2645
        %v2709 = vpop.xlane.xlu0 %2708
        %2710 = vadd.xlane.f32.xlu0 %v2647
        %v2711 = vpop.xlane.xlu0 %2710
        %2712 = vadd.xlane.f32.xlu0 %v2649
        %v2713 = vpop.xlane.xlu0 %2712
        %2714 = vadd.xlane.f32.xlu0 %v2651
        %v2715 = vpop.xlane.xlu0 %2714
        %2716 = vadd.xlane.f32.xlu0 %v2653
        %v2717 = vpop.xlane.xlu0 %2716
        %2718 = vadd.xlane.f32.xlu0 %v2655
        %v2719 = vpop.xlane.xlu0 %2718
        %2720 = vadd.xlane.f32.xlu0 %v2657
        %v2721 = vpop.xlane.xlu0 %2720
        %2722 = vadd.xlane.f32.xlu0 %v2659
        %v2723 = vpop.xlane.xlu0 %2722
        %2724 = vadd.xlane.f32.xlu0 %v2661
        %v2725 = vpop.xlane.xlu0 %2724
        %2726 = vadd.xlane.f32.xlu0 %v2663
        %v2727 = vpop.xlane.xlu0 %2726
        %2728 = vadd.xlane.f32.xlu0 %v2665
        %v2729 = vpop.xlane.xlu0 %2728
        %2730 = vadd.xlane.f32.xlu0 %v2667
        %v2731 = vpop.xlane.xlu0 %2730
        %2732 = vadd.xlane.f32.xlu0 %v2669
        %v2733 = vpop.xlane.xlu0 %2732
        %2734 = vadd.xlane.f32.xlu0 %v2671
        %v2735 = vpop.xlane.xlu0 %2734
        %2736 = vadd.xlane.f32.xlu0 %v2673
        %v2737 = vpop.xlane.xlu0 %2736
        %v2738 = vadd.f32 %v2690, %v2707
        %v2739 = vadd.f32 %v2691, %v2709
        %v2740 = vadd.f32 %v2692, %v2711
        %v2741 = vadd.f32 %v2693, %v2713
        %v2742 = vadd.f32 %v2694, %v2715
        %v2743 = vadd.f32 %v2695, %v2717
        %v2744 = vadd.f32 %v2696, %v2719
        %v2745 = vadd.f32 %v2697, %v2721
        %v2746 = vadd.f32 %v2698, %v2723
        %v2747 = vadd.f32 %v2699, %v2725
        %v2748 = vadd.f32 %v2700, %v2727
        %v2749 = vadd.f32 %v2701, %v2729
        %v2750 = vadd.f32 %v2702, %v2731
        %v2751 = vadd.f32 %v2703, %v2733
        %v2752 = vadd.f32 %v2704, %v2735
        %v2753 = vadd.f32 %v2705, %v2737
        %vm2754 = vcmask 7168
        %2755 = vst.msk [vmem:[#allocation3] sm:$0xff] %vm2754, %v2738
        %2756 = vst.msk [vmem:[#allocation3 + $0x8] sm:$0xff] %vm2754, %v2739
        %2757 = vst.msk [vmem:[#allocation3 + $0x10] sm:$0xff] %vm2754, %v2740
        %2758 = vst.msk [vmem:[#allocation3 + $0x18] sm:$0xff] %vm2754, %v2741
        %2759 = vst.msk [vmem:[#allocation3 + $0x20] sm:$0xff] %vm2754, %v2742
        %2760 = vst.msk [vmem:[#allocation3 + $0x28] sm:$0xff] %vm2754, %v2743
        %2761 = vst.msk [vmem:[#allocation3 + $0x30] sm:$0xff] %vm2754, %v2744
        %2762 = vst.msk [vmem:[#allocation3 + $0x38] sm:$0xff] %vm2754, %v2745
        %2763 = vst.msk [vmem:[#allocation3 + $0x40] sm:$0xff] %vm2754, %v2746
        %2764 = vst.msk [vmem:[#allocation3 + $0x48] sm:$0xff] %vm2754, %v2747
        %2765 = vst.msk [vmem:[#allocation3 + $0x50] sm:$0xff] %vm2754, %v2748
        %2766 = vst.msk [vmem:[#allocation3 + $0x58] sm:$0xff] %vm2754, %v2749
        %2767 = vst.msk [vmem:[#allocation3 + $0x60] sm:$0xff] %vm2754, %v2750
        %2768 = vst.msk [vmem:[#allocation3 + $0x68] sm:$0xff] %vm2754, %v2751
        %2769 = vst.msk [vmem:[#allocation3 + $0x70] sm:$0xff] %vm2754, %v2752
        %2770 = vst.msk [vmem:[#allocation3 + $0x78] sm:$0xff] %vm2754, %v2753
        %v2771 = vld [vmem:[#allocation4] sm:$0xff]
        %v2772 = vld [vmem:[#allocation4 + $0x8] sm:$0xff]
        %v2773 = vld [vmem:[#allocation4 + $0x10] sm:$0xff]
        %v2774 = vld [vmem:[#allocation4 + $0x18] sm:$0xff]
        %v2775 = vld [vmem:[#allocation4 + $0x20] sm:$0xff]
        %v2776 = vld [vmem:[#allocation4 + $0x28] sm:$0xff]
        %v2777 = vld [vmem:[#allocation4 + $0x30] sm:$0xff]
        %v2778 = vld [vmem:[#allocation4 + $0x38] sm:$0xff]
        %v2779 = vld [vmem:[#allocation4 + $0x40] sm:$0xff]
        %v2780 = vld [vmem:[#allocation4 + $0x48] sm:$0xff]
        %v2781 = vld [vmem:[#allocation4 + $0x50] sm:$0xff]
        %v2782 = vld [vmem:[#allocation4 + $0x58] sm:$0xff]
        %v2783 = vld [vmem:[#allocation4 + $0x60] sm:$0xff]
        %v2784 = vld [vmem:[#allocation4 + $0x68] sm:$0xff]
        %v2785 = vld [vmem:[#allocation4 + $0x70] sm:$0xff]
        %v2786 = vld [vmem:[#allocation4 + $0x78] sm:$0xff]
        %2788 = vset.pattern.permute.xlu0 0
        %2789 = vperm.xlu0 %2788, %v2515
        %v2790 = vpop.permute.xlu0 %2789
        %2793 = vset.pattern.permute.xlu0 0
        %2794 = vperm.xlu0 %2793, %v2517
        %v2795 = vpop.permute.xlu0 %2794
        %2798 = vset.pattern.permute.xlu0 0
        %2799 = vperm.xlu0 %2798, %v2519
        %v2800 = vpop.permute.xlu0 %2799
        %2803 = vset.pattern.permute.xlu0 0
        %2804 = vperm.xlu0 %2803, %v2521
        %v2805 = vpop.permute.xlu0 %2804
        %2808 = vset.pattern.permute.xlu0 0
        %2809 = vperm.xlu0 %2808, %v2523
        %v2810 = vpop.permute.xlu0 %2809
        %2813 = vset.pattern.permute.xlu0 0
        %2814 = vperm.xlu0 %2813, %v2525
        %v2815 = vpop.permute.xlu0 %2814
        %2818 = vset.pattern.permute.xlu0 0
        %2819 = vperm.xlu0 %2818, %v2527
        %v2820 = vpop.permute.xlu0 %2819
        %2823 = vset.pattern.permute.xlu0 0
        %2824 = vperm.xlu0 %2823, %v2529
        %v2825 = vpop.permute.xlu0 %2824
        %2828 = vset.pattern.permute.xlu0 0
        %2829 = vperm.xlu0 %2828, %v2531
        %v2830 = vpop.permute.xlu0 %2829
        %2833 = vset.pattern.permute.xlu0 0
        %2834 = vperm.xlu0 %2833, %v2533
        %v2835 = vpop.permute.xlu0 %2834
        %2838 = vset.pattern.permute.xlu0 0
        %2839 = vperm.xlu0 %2838, %v2535
        %v2840 = vpop.permute.xlu0 %2839
        %2843 = vset.pattern.permute.xlu0 0
        %2844 = vperm.xlu0 %2843, %v2537
        %v2845 = vpop.permute.xlu0 %2844
        %2848 = vset.pattern.permute.xlu0 0
        %2849 = vperm.xlu0 %2848, %v2539
        %v2850 = vpop.permute.xlu0 %2849
        %2853 = vset.pattern.permute.xlu0 0
        %2854 = vperm.xlu0 %2853, %v2541
        %v2855 = vpop.permute.xlu0 %2854
        %2858 = vset.pattern.permute.xlu0 0
        %2859 = vperm.xlu0 %2858, %v2543
        %v2860 = vpop.permute.xlu0 %2859
        %2863 = vset.pattern.permute.xlu0 0
        %2864 = vperm.xlu0 %2863, %v2545
        %v2865 = vpop.permute.xlu0 %2864
        %v2867 = vmul.f32 %v2790, %v2771
        %v2868 = vmul.f32 %v2795, %v2772
        %v2869 = vmul.f32 %v2800, %v2773
        %v2870 = vmul.f32 %v2805, %v2774
        %v2871 = vmul.f32 %v2810, %v2775
        %v2872 = vmul.f32 %v2815, %v2776
        %v2873 = vmul.f32 %v2820, %v2777
        %v2874 = vmul.f32 %v2825, %v2778
        %v2875 = vmul.f32 %v2830, %v2779
        %v2876 = vmul.f32 %v2835, %v2780
        %v2877 = vmul.f32 %v2840, %v2781
        %v2878 = vmul.f32 %v2845, %v2782
        %v2879 = vmul.f32 %v2850, %v2783
        %v2880 = vmul.f32 %v2855, %v2784
        %v2881 = vmul.f32 %v2860, %v2785
        %v2882 = vmul.f32 %v2865, %v2786
        %v2883 = vpack.c.bf16 %v2643, %v2643
        %v2884 = vpack.c.bf16 %v2645, %v2645
        %v2885 = vpack.c.bf16 %v2647, %v2647
        %v2886 = vpack.c.bf16 %v2649, %v2649
        %v2887 = vpack.c.bf16 %v2651, %v2651
        %v2888 = vpack.c.bf16 %v2653, %v2653
        %v2889 = vpack.c.bf16 %v2655, %v2655
        %v2890 = vpack.c.bf16 %v2657, %v2657
        %v2891 = vpack.c.bf16 %v2659, %v2659
        %v2892 = vpack.c.bf16 %v2661, %v2661
        %v2893 = vpack.c.bf16 %v2663, %v2663
        %v2894 = vpack.c.bf16 %v2665, %v2665
        %v2895 = vpack.c.bf16 %v2667, %v2667
        %v2896 = vpack.c.bf16 %v2669, %v2669
        %v2897 = vpack.c.bf16 %v2671, %v2671
        %v2898 = vpack.c.bf16 %v2673, %v2673
        %v2907 = vunpack.c.l.b16 %v2883
        %v2908 = vunpack.c.l.b16 %v2884
        %v2909 = vunpack.c.l.b16 %v2885
        %v2910 = vunpack.c.l.b16 %v2886
        %v2911 = vunpack.c.l.b16 %v2887
        %v2912 = vunpack.c.l.b16 %v2888
        %v2913 = vunpack.c.l.b16 %v2889
        %v2914 = vunpack.c.l.b16 %v2890
        %v2915 = vpack.c.b16 %v2908, %v2907
        %v2916 = vpack.c.b16 %v2910, %v2909
        %v2917 = vpack.c.b16 %v2912, %v2911
        %v2918 = vpack.c.b16 %v2914, %v2913
        %v2923 = vunpack.c.l.b16 %v2168
        %v2924 = vunpack.c.l.b16 %v2169
        %v2925 = vunpack.c.l.b16 %v2170
        %v2926 = vunpack.c.l.b16 %v2171
        %v2927 = vunpack.c.l.b16 %v2172
        %v2928 = vunpack.c.l.b16 %v2173
        %v2929 = vunpack.c.l.b16 %v2174
        %v2930 = vunpack.c.l.b16 %v2175
        %v2931 = vunpack.c.l.b16 %v2176
        %v2932 = vunpack.c.l.b16 %v2177
        %v2933 = vunpack.c.l.b16 %v2178
        %v2934 = vunpack.c.l.b16 %v2179
        %v2935 = vunpack.c.l.b16 %v2180
        %v2936 = vunpack.c.l.b16 %v2181
        %v2937 = vunpack.c.l.b16 %v2182
        %v2938 = vunpack.c.l.b16 %v2183
        %v2939 = vpack.c.b16 %v2924, %v2923
        %v2940 = vpack.c.b16 %v2926, %v2925
        %v2941 = vpack.c.b16 %v2928, %v2927
        %v2942 = vpack.c.b16 %v2930, %v2929
        %v2943 = vpack.c.b16 %v2932, %v2931
        %v2944 = vpack.c.b16 %v2934, %v2933
        %v2945 = vpack.c.b16 %v2936, %v2935
        %v2946 = vpack.c.b16 %v2938, %v2937
        %2955 = vmatpush.bf16.msra.mxu0 %v2946
        %2956 = vmatpush.bf16.msra.mxu0 %v2945
        %2957 = vmatpush.bf16.msra.mxu0 %v2944
        %2958 = vmatpush.bf16.msra.mxu0 %v2943
        %2959 = vmatpush.bf16.msra.mxu0 %v2942
        %2960 = vmatpush.bf16.msra.mxu0 %v2941
        %2961 = vmatpush.bf16.msra.mxu0 %v2940
        %2962 = vmatpush.bf16.msra.mxu0 %v2939
        %2963 = vmatmul.bf16.gmra.mxu0 %v2915
        %v2964 = vpop.f32.mrf.mxu0
        %v2965 = vadd.f32 0.0, %v2964
        %v2966 = vpop.f32.mrf.mxu0
        %v2967 = vadd.f32 0.0, %v2966
        %2968 = vmatmul.bf16.gmra.mxu0 %v2916
        %v2969 = vpop.f32.mrf.mxu0
        %v2970 = vadd.f32 0.0, %v2969
        %v2971 = vpop.f32.mrf.mxu0
        %v2972 = vadd.f32 0.0, %v2971
        %2973 = vmatmul.bf16.gmra.mxu0 %v2917
        %v2974 = vpop.f32.mrf.mxu0
        %v2975 = vadd.f32 0.0, %v2974
        %v2976 = vpop.f32.mrf.mxu0
        %v2977 = vadd.f32 0.0, %v2976
        %2978 = vmatmul.bf16.gmra.mxu0 %v2918
        %v2979 = vpop.f32.mrf.mxu0
        %v2980 = vadd.f32 0.0, %v2979
        %v2981 = vpop.f32.mrf.mxu0
        %v2982 = vadd.f32 0.0, %v2981
        %2983 = vdwg.mxu0
        %v2992 = vunpack.c.l.b16 %v2891
        %v2993 = vunpack.c.l.b16 %v2892
        %v2994 = vunpack.c.l.b16 %v2893
        %v2995 = vunpack.c.l.b16 %v2894
        %v2996 = vunpack.c.l.b16 %v2895
        %v2997 = vunpack.c.l.b16 %v2896
        %v2998 = vunpack.c.l.b16 %v2897
        %v2999 = vunpack.c.l.b16 %v2898
        %v3000 = vpack.c.b16 %v2993, %v2992
        %v3001 = vpack.c.b16 %v2995, %v2994
        %v3002 = vpack.c.b16 %v2997, %v2996
        %v3003 = vpack.c.b16 %v2999, %v2998
        %v3008 = vunpack.c.l.b16 %v2232
        %v3009 = vunpack.c.l.b16 %v2233
        %v3010 = vunpack.c.l.b16 %v2234
        %v3011 = vunpack.c.l.b16 %v2235
        %v3012 = vunpack.c.l.b16 %v2236
        %v3013 = vunpack.c.l.b16 %v2237
        %v3014 = vunpack.c.l.b16 %v2238
        %v3015 = vunpack.c.l.b16 %v2239
        %v3016 = vunpack.c.l.b16 %v2240
        %v3017 = vunpack.c.l.b16 %v2241
        %v3018 = vunpack.c.l.b16 %v2242
        %v3019 = vunpack.c.l.b16 %v2243
        %v3020 = vunpack.c.l.b16 %v2244
        %v3021 = vunpack.c.l.b16 %v2245
        %v3022 = vunpack.c.l.b16 %v2246
        %v3023 = vunpack.c.l.b16 %v2247
        %v3024 = vpack.c.b16 %v3009, %v3008
        %v3025 = vpack.c.b16 %v3011, %v3010
        %v3026 = vpack.c.b16 %v3013, %v3012
        %v3027 = vpack.c.b16 %v3015, %v3014
        %v3028 = vpack.c.b16 %v3017, %v3016
        %v3029 = vpack.c.b16 %v3019, %v3018
        %v3030 = vpack.c.b16 %v3021, %v3020
        %v3031 = vpack.c.b16 %v3023, %v3022
        %3040 = vmatpush.bf16.msra.mxu0 %v3031
        %3041 = vmatpush.bf16.msra.mxu0 %v3030
        %3042 = vmatpush.bf16.msra.mxu0 %v3029
        %3043 = vmatpush.bf16.msra.mxu0 %v3028
        %3044 = vmatpush.bf16.msra.mxu0 %v3027
        %3045 = vmatpush.bf16.msra.mxu0 %v3026
        %3046 = vmatpush.bf16.msra.mxu0 %v3025
        %3047 = vmatpush.bf16.msra.mxu0 %v3024
        %3048 = vmatmul.bf16.gmra.mxu0 %v3000
        %v3049 = vpop.f32.mrf.mxu0
        %v3050 = vadd.f32 0.0, %v3049
        %v3051 = vpop.f32.mrf.mxu0
        %v3052 = vadd.f32 0.0, %v3051
        %3053 = vmatmul.bf16.gmra.mxu0 %v3001
        %v3054 = vpop.f32.mrf.mxu0
        %v3055 = vadd.f32 0.0, %v3054
        %v3056 = vpop.f32.mrf.mxu0
        %v3057 = vadd.f32 0.0, %v3056
        %3058 = vmatmul.bf16.gmra.mxu0 %v3002
        %v3059 = vpop.f32.mrf.mxu0
        %v3060 = vadd.f32 0.0, %v3059
        %v3061 = vpop.f32.mrf.mxu0
        %v3062 = vadd.f32 0.0, %v3061
        %3063 = vmatmul.bf16.gmra.mxu0 %v3003
        %v3064 = vpop.f32.mrf.mxu0
        %v3065 = vadd.f32 0.0, %v3064
        %v3066 = vpop.f32.mrf.mxu0
        %v3067 = vadd.f32 0.0, %v3066
        %3068 = vdwg.mxu0
        %v3069 = vadd.f32 %v2867, %v2965
        %v3070 = vadd.f32 %v2868, %v2967
        %v3071 = vadd.f32 %v2869, %v2970
        %v3072 = vadd.f32 %v2870, %v2972
        %v3073 = vadd.f32 %v2871, %v2975
        %v3074 = vadd.f32 %v2872, %v2977
        %v3075 = vadd.f32 %v2873, %v2980
        %v3076 = vadd.f32 %v2874, %v2982
        %v3077 = vadd.f32 %v2875, %v3050
        %v3078 = vadd.f32 %v2876, %v3052
        %v3079 = vadd.f32 %v2877, %v3055
        %v3080 = vadd.f32 %v2878, %v3057
        %v3081 = vadd.f32 %v2879, %v3060
        %v3082 = vadd.f32 %v2880, %v3062
        %v3083 = vadd.f32 %v2881, %v3065
        %v3084 = vadd.f32 %v2882, %v3067
        %3085 = vst [vmem:[#allocation4] sm:$0xff] %v3069
        %3086 = vst [vmem:[#allocation4 + $0x8] sm:$0xff] %v3070
        %3087 = vst [vmem:[#allocation4 + $0x10] sm:$0xff] %v3071
        %3088 = vst [vmem:[#allocation4 + $0x18] sm:$0xff] %v3072
        %3089 = vst [vmem:[#allocation4 + $0x20] sm:$0xff] %v3073
        %3090 = vst [vmem:[#allocation4 + $0x28] sm:$0xff] %v3074
        %3091 = vst [vmem:[#allocation4 + $0x30] sm:$0xff] %v3075
        %3092 = vst [vmem:[#allocation4 + $0x38] sm:$0xff] %v3076
        %3093 = vst [vmem:[#allocation4 + $0x40] sm:$0xff] %v3077
        %3094 = vst [vmem:[#allocation4 + $0x48] sm:$0xff] %v3078
        %3095 = vst [vmem:[#allocation4 + $0x50] sm:$0xff] %v3079
        %3096 = vst [vmem:[#allocation4 + $0x58] sm:$0xff] %v3080
        %3097 = vst [vmem:[#allocation4 + $0x60] sm:$0xff] %v3081
        %3098 = vst [vmem:[#allocation4 + $0x68] sm:$0xff] %v3082
        %3099 = vst [vmem:[#allocation4 + $0x70] sm:$0xff] %v3083
        %3100 = vst [vmem:[#allocation4 + $0x78] sm:$0xff] %v3084
        %3101 = vst.msk [vmem:[#allocation2] sm:$0xff] %vm2754, %v2482
        %3102 = vst.msk [vmem:[#allocation2 + $0x8] sm:$0xff] %vm2754, %v2483
        %3103 = vst.msk [vmem:[#allocation2 + $0x10] sm:$0xff] %vm2754, %v2484
        %3104 = vst.msk [vmem:[#allocation2 + $0x18] sm:$0xff] %vm2754, %v2485
        %3105 = vst.msk [vmem:[#allocation2 + $0x20] sm:$0xff] %vm2754, %v2486
        %3106 = vst.msk [vmem:[#allocation2 + $0x28] sm:$0xff] %vm2754, %v2487
        %3107 = vst.msk [vmem:[#allocation2 + $0x30] sm:$0xff] %vm2754, %v2488
        %3108 = vst.msk [vmem:[#allocation2 + $0x38] sm:$0xff] %vm2754, %v2489
        %3109 = vst.msk [vmem:[#allocation2 + $0x40] sm:$0xff] %vm2754, %v2490
        %3110 = vst.msk [vmem:[#allocation2 + $0x48] sm:$0xff] %vm2754, %v2491
        %3111 = vst.msk [vmem:[#allocation2 + $0x50] sm:$0xff] %vm2754, %v2492
        %3112 = vst.msk [vmem:[#allocation2 + $0x58] sm:$0xff] %vm2754, %v2493
        %3113 = vst.msk [vmem:[#allocation2 + $0x60] sm:$0xff] %vm2754, %v2494
        %3114 = vst.msk [vmem:[#allocation2 + $0x68] sm:$0xff] %vm2754, %v2495
        %3115 = vst.msk [vmem:[#allocation2 + $0x70] sm:$0xff] %vm2754, %v2496
        %3116 = vst.msk [vmem:[#allocation2 + $0x78] sm:$0xff] %vm2754, %v2497
        %p3117 = scmp.eq.s32.totalorder %s32, 1
        // Predicated region
        $region77: #{resampler_forward.1} parent=71 // pred_check
          %p3118 = pneg %p3117
        $region78: #{resampler_forward.1} parent=71 // pred_check_branch
          %3120 = sbr.rel (%p3118) target = $region80
        $region79: #{resampler_forward.1} parent=71 // pred_region
          %v3121 = vld [vmem:[#allocation4] sm:$0xff]
          %v3122 = vld [vmem:[#allocation4 + $0x8] sm:$0xff]
          %v3123 = vld [vmem:[#allocation4 + $0x10] sm:$0xff]
          %v3124 = vld [vmem:[#allocation4 + $0x18] sm:$0xff]
          %v3125 = vld [vmem:[#allocation4 + $0x20] sm:$0xff]
          %v3126 = vld [vmem:[#allocation4 + $0x28] sm:$0xff]
          %v3127 = vld [vmem:[#allocation4 + $0x30] sm:$0xff]
          %v3128 = vld [vmem:[#allocation4 + $0x38] sm:$0xff]
          %v3129 = vld [vmem:[#allocation4 + $0x40] sm:$0xff]
          %v3130 = vld [vmem:[#allocation4 + $0x48] sm:$0xff]
          %v3131 = vld [vmem:[#allocation4 + $0x50] sm:$0xff]
          %v3132 = vld [vmem:[#allocation4 + $0x58] sm:$0xff]
          %v3133 = vld [vmem:[#allocation4 + $0x60] sm:$0xff]
          %v3134 = vld [vmem:[#allocation4 + $0x68] sm:$0xff]
          %v3135 = vld [vmem:[#allocation4 + $0x70] sm:$0xff]
          %v3136 = vld [vmem:[#allocation4 + $0x78] sm:$0xff]
          %v3137 = vld [vmem:[#allocation3] sm:$0xff]
          %v3138 = vld [vmem:[#allocation3 + $0x8] sm:$0xff]
          %v3139 = vld [vmem:[#allocation3 + $0x10] sm:$0xff]
          %v3140 = vld [vmem:[#allocation3 + $0x18] sm:$0xff]
          %v3141 = vld [vmem:[#allocation3 + $0x20] sm:$0xff]
          %v3142 = vld [vmem:[#allocation3 + $0x28] sm:$0xff]
          %v3143 = vld [vmem:[#allocation3 + $0x30] sm:$0xff]
          %v3144 = vld [vmem:[#allocation3 + $0x38] sm:$0xff]
          %v3145 = vld [vmem:[#allocation3 + $0x40] sm:$0xff]
          %v3146 = vld [vmem:[#allocation3 + $0x48] sm:$0xff]
          %v3147 = vld [vmem:[#allocation3 + $0x50] sm:$0xff]
          %v3148 = vld [vmem:[#allocation3 + $0x58] sm:$0xff]
          %v3149 = vld [vmem:[#allocation3 + $0x60] sm:$0xff]
          %v3150 = vld [vmem:[#allocation3 + $0x68] sm:$0xff]
          %v3151 = vld [vmem:[#allocation3 + $0x70] sm:$0xff]
          %v3152 = vld [vmem:[#allocation3 + $0x78] sm:$0xff]
          %v3153 = vrcp.pop %v3137
          %v3154 = vrcp.pop %v3138
          %v3155 = vrcp.pop %v3139
          %v3156 = vrcp.pop %v3140
          %v3157 = vrcp.pop %v3141
          %v3158 = vrcp.pop %v3142
          %v3159 = vrcp.pop %v3143
          %v3160 = vrcp.pop %v3144
          %v3161 = vrcp.pop %v3145
          %v3162 = vrcp.pop %v3146
          %v3163 = vrcp.pop %v3147
          %v3164 = vrcp.pop %v3148
          %v3165 = vrcp.pop %v3149
          %v3166 = vrcp.pop %v3150
          %v3167 = vrcp.pop %v3151
          %v3168 = vrcp.pop %v3152
          %3170 = vset.pattern.permute.xlu0 0
          %3171 = vperm.xlu0 %3170, %v3153
          %v3172 = vpop.permute.xlu0 %3171
          %3175 = vset.pattern.permute.xlu0 0
          %3176 = vperm.xlu0 %3175, %v3154
          %v3177 = vpop.permute.xlu0 %3176
          %3180 = vset.pattern.permute.xlu0 0
          %3181 = vperm.xlu0 %3180, %v3155
          %v3182 = vpop.permute.xlu0 %3181
          %3185 = vset.pattern.permute.xlu0 0
          %3186 = vperm.xlu0 %3185, %v3156
          %v3187 = vpop.permute.xlu0 %3186
          %3190 = vset.pattern.permute.xlu0 0
          %3191 = vperm.xlu0 %3190, %v3157
          %v3192 = vpop.permute.xlu0 %3191
          %3195 = vset.pattern.permute.xlu0 0
          %3196 = vperm.xlu0 %3195, %v3158
          %v3197 = vpop.permute.xlu0 %3196
          %3200 = vset.pattern.permute.xlu0 0
          %3201 = vperm.xlu0 %3200, %v3159
          %v3202 = vpop.permute.xlu0 %3201
          %3205 = vset.pattern.permute.xlu0 0
          %3206 = vperm.xlu0 %3205, %v3160
          %v3207 = vpop.permute.xlu0 %3206
          %3210 = vset.pattern.permute.xlu0 0
          %3211 = vperm.xlu0 %3210, %v3161
          %v3212 = vpop.permute.xlu0 %3211
          %3215 = vset.pattern.permute.xlu0 0
          %3216 = vperm.xlu0 %3215, %v3162
          %v3217 = vpop.permute.xlu0 %3216
          %3220 = vset.pattern.permute.xlu0 0
          %3221 = vperm.xlu0 %3220, %v3163
          %v3222 = vpop.permute.xlu0 %3221
          %3225 = vset.pattern.permute.xlu0 0
          %3226 = vperm.xlu0 %3225, %v3164
          %v3227 = vpop.permute.xlu0 %3226
          %3230 = vset.pattern.permute.xlu0 0
          %3231 = vperm.xlu0 %3230, %v3165
          %v3232 = vpop.permute.xlu0 %3231
          %3235 = vset.pattern.permute.xlu0 0
          %3236 = vperm.xlu0 %3235, %v3166
          %v3237 = vpop.permute.xlu0 %3236
          %3240 = vset.pattern.permute.xlu0 0
          %3241 = vperm.xlu0 %3240, %v3167
          %v3242 = vpop.permute.xlu0 %3241
          %3245 = vset.pattern.permute.xlu0 0
          %3246 = vperm.xlu0 %3245, %v3168
          %v3247 = vpop.permute.xlu0 %3246
          %v3249 = vmul.f32 %v3121, %v3172
          %v3250 = vmul.f32 %v3122, %v3177
          %v3251 = vmul.f32 %v3123, %v3182
          %v3252 = vmul.f32 %v3124, %v3187
          %v3253 = vmul.f32 %v3125, %v3192
          %v3254 = vmul.f32 %v3126, %v3197
          %v3255 = vmul.f32 %v3127, %v3202
          %v3256 = vmul.f32 %v3128, %v3207
          %v3257 = vmul.f32 %v3129, %v3212
          %v3258 = vmul.f32 %v3130, %v3217
          %v3259 = vmul.f32 %v3131, %v3222
          %v3260 = vmul.f32 %v3132, %v3227
          %v3261 = vmul.f32 %v3133, %v3232
          %v3262 = vmul.f32 %v3134, %v3237
          %v3263 = vmul.f32 %v3135, %v3242
          %v3264 = vmul.f32 %v3136, %v3247
          %v3265 = vld [vmem:[%s7] sm:$0x3]
          %v3267 = vperm.slane %v3265, 0
          %v3268 = vperm.slane %v3265, 1
          %v3271 = vadd.f32 %v3249, %v3267
          %v3272 = vadd.f32 %v3257, %v3268
          %v3273 = vadd.f32 %v3250, %v3267
          %v3274 = vadd.f32 %v3258, %v3268
          %v3275 = vadd.f32 %v3251, %v3267
          %v3276 = vadd.f32 %v3259, %v3268
          %v3277 = vadd.f32 %v3252, %v3267
          %v3278 = vadd.f32 %v3260, %v3268
          %v3279 = vadd.f32 %v3253, %v3267
          %v3280 = vadd.f32 %v3261, %v3268
          %v3281 = vadd.f32 %v3254, %v3267
          %v3282 = vadd.f32 %v3262, %v3268
          %v3283 = vadd.f32 %v3255, %v3267
          %v3284 = vadd.f32 %v3263, %v3268
          %v3285 = vadd.f32 %v3256, %v3267
          %v3286 = vadd.f32 %v3264, %v3268
          %v3287 = vpack.c.bf16 %v3273, %v3271
          %v3288 = vpack.c.bf16 %v3274, %v3272
          %v3289 = vpack.c.bf16 %v3277, %v3275
          %v3290 = vpack.c.bf16 %v3278, %v3276
          %v3291 = vpack.c.bf16 %v3281, %v3279
          %v3292 = vpack.c.bf16 %v3282, %v3280
          %v3293 = vpack.c.bf16 %v3285, %v3283
          %v3294 = vpack.c.bf16 %v3286, %v3284
          %v3295 = vld [vmem:[%s8] sm:$0xff]
          %v3296 = vld [vmem:[%s8 + $0x8] sm:$0xff]
          %v3297 = vld [vmem:[%s8 + $0x10] sm:$0xff]
          %v3298 = vld [vmem:[%s8 + $0x18] sm:$0xff]
          %v3299 = vld [vmem:[%s8 + $0x20] sm:$0xff]
          %v3300 = vld [vmem:[%s8 + $0x28] sm:$0xff]
          %v3301 = vld [vmem:[%s8 + $0x30] sm:$0xff]
          %v3302 = vld [vmem:[%s8 + $0x38] sm:$0xff]
          %v3303 = vld [vmem:[%s8 + $0x40] sm:$0xff]
          %v3304 = vld [vmem:[%s8 + $0x48] sm:$0xff]
          %v3305 = vld [vmem:[%s8 + $0x50] sm:$0xff]
          %v3306 = vld [vmem:[%s8 + $0x58] sm:$0xff]
          %v3307 = vld [vmem:[%s8 + $0x60] sm:$0xff]
          %v3308 = vld [vmem:[%s8 + $0x68] sm:$0xff]
          %v3309 = vld [vmem:[%s8 + $0x70] sm:$0xff]
          %v3310 = vld [vmem:[%s8 + $0x78] sm:$0xff]
          %v3311 = vld [vmem:[%s8 + $0x80] sm:$0xff]
          %v3312 = vld [vmem:[%s8 + $0x88] sm:$0xff]
          %v3313 = vld [vmem:[%s8 + $0x90] sm:$0xff]
          %v3314 = vld [vmem:[%s8 + $0x98] sm:$0xff]
          %v3315 = vld [vmem:[%s8 + $0xa0] sm:$0xff]
          %v3316 = vld [vmem:[%s8 + $0xa8] sm:$0xff]
          %v3317 = vld [vmem:[%s8 + $0xb0] sm:$0xff]
          %v3318 = vld [vmem:[%s8 + $0xb8] sm:$0xff]
          %v3319 = vld [vmem:[%s8 + $0xc0] sm:$0xff]
          %v3320 = vld [vmem:[%s8 + $0xc8] sm:$0xff]
          %v3321 = vld [vmem:[%s8 + $0xd0] sm:$0xff]
          %v3322 = vld [vmem:[%s8 + $0xd8] sm:$0xff]
          %v3323 = vld [vmem:[%s8 + $0xe0] sm:$0xff]
          %v3324 = vld [vmem:[%s8 + $0xe8] sm:$0xff]
          %v3325 = vld [vmem:[%s8 + $0xf0] sm:$0xff]
          %v3326 = vld [vmem:[%s8 + $0xf8] sm:$0xff]
          %v3327 = vld [vmem:[%s9] sm:$0x3]
          %v3329 = vperm.slane %v3327, 0
          %v3330 = vperm.slane %v3327, 1
          %v3365 = vunpack.c.l.b16 %v3295
          %v3366 = vunpack.c.h.b16 %v3295
          %v3367 = vunpack.c.l.b16 %v3296
          %v3368 = vunpack.c.h.b16 %v3296
          %v3369 = vunpack.c.l.b16 %v3297
          %v3370 = vunpack.c.h.b16 %v3297
          %v3371 = vunpack.c.l.b16 %v3298
          %v3372 = vunpack.c.h.b16 %v3298
          %v3373 = vunpack.c.l.b16 %v3299
          %v3374 = vunpack.c.h.b16 %v3299
          %v3375 = vunpack.c.l.b16 %v3300
          %v3376 = vunpack.c.h.b16 %v3300
          %v3377 = vunpack.c.l.b16 %v3301
          %v3378 = vunpack.c.h.b16 %v3301
          %v3379 = vunpack.c.l.b16 %v3302
          %v3380 = vunpack.c.h.b16 %v3302
          %v3381 = vunpack.c.l.b16 %v3303
          %v3382 = vunpack.c.h.b16 %v3303
          %v3383 = vunpack.c.l.b16 %v3304
          %v3384 = vunpack.c.h.b16 %v3304
          %v3385 = vunpack.c.l.b16 %v3305
          %v3386 = vunpack.c.h.b16 %v3305
          %v3387 = vunpack.c.l.b16 %v3306
          %v3388 = vunpack.c.h.b16 %v3306
          %v3389 = vunpack.c.l.b16 %v3307
          %v3390 = vunpack.c.h.b16 %v3307
          %v3391 = vunpack.c.l.b16 %v3308
          %v3392 = vunpack.c.h.b16 %v3308
          %v3393 = vunpack.c.l.b16 %v3309
          %v3394 = vunpack.c.h.b16 %v3309
          %v3395 = vunpack.c.l.b16 %v3310
          %v3396 = vunpack.c.h.b16 %v3310
          %v3397 = vunpack.c.l.b16 %v3311
          %v3398 = vunpack.c.h.b16 %v3311
          %v3399 = vunpack.c.l.b16 %v3312
          %v3400 = vunpack.c.h.b16 %v3312
          %v3401 = vunpack.c.l.b16 %v3313
          %v3402 = vunpack.c.h.b16 %v3313
          %v3403 = vunpack.c.l.b16 %v3314
          %v3404 = vunpack.c.h.b16 %v3314
          %v3405 = vunpack.c.l.b16 %v3315
          %v3406 = vunpack.c.h.b16 %v3315
          %v3407 = vunpack.c.l.b16 %v3316
          %v3408 = vunpack.c.h.b16 %v3316
          %v3409 = vunpack.c.l.b16 %v3317
          %v3410 = vunpack.c.h.b16 %v3317
          %v3411 = vunpack.c.l.b16 %v3318
          %v3412 = vunpack.c.h.b16 %v3318
          %v3413 = vunpack.c.l.b16 %v3319
          %v3414 = vunpack.c.h.b16 %v3319
          %v3415 = vunpack.c.l.b16 %v3320
          %v3416 = vunpack.c.h.b16 %v3320
          %v3417 = vunpack.c.l.b16 %v3321
          %v3418 = vunpack.c.h.b16 %v3321
          %v3419 = vunpack.c.l.b16 %v3322
          %v3420 = vunpack.c.h.b16 %v3322
          %v3421 = vunpack.c.l.b16 %v3323
          %v3422 = vunpack.c.h.b16 %v3323
          %v3423 = vunpack.c.l.b16 %v3324
          %v3424 = vunpack.c.h.b16 %v3324
          %v3425 = vunpack.c.l.b16 %v3325
          %v3426 = vunpack.c.h.b16 %v3325
          %v3427 = vunpack.c.l.b16 %v3326
          %v3428 = vunpack.c.h.b16 %v3326
          %v3429 = vpack.c.b16 %v3367, %v3365
          %v3430 = vpack.c.b16 %v3368, %v3366
          %v3431 = vpack.c.b16 %v3371, %v3369
          %v3432 = vpack.c.b16 %v3372, %v3370
          %v3433 = vpack.c.b16 %v3375, %v3373
          %v3434 = vpack.c.b16 %v3376, %v3374
          %v3435 = vpack.c.b16 %v3379, %v3377
          %v3436 = vpack.c.b16 %v3380, %v3378
          %v3437 = vpack.c.b16 %v3383, %v3381
          %v3438 = vpack.c.b16 %v3384, %v3382
          %v3439 = vpack.c.b16 %v3387, %v3385
          %v3440 = vpack.c.b16 %v3388, %v3386
          %v3441 = vpack.c.b16 %v3391, %v3389
          %v3442 = vpack.c.b16 %v3392, %v3390
          %v3443 = vpack.c.b16 %v3395, %v3393
          %v3444 = vpack.c.b16 %v3396, %v3394
          %v3445 = vpack.c.b16 %v3399, %v3397
          %v3446 = vpack.c.b16 %v3400, %v3398
          %v3447 = vpack.c.b16 %v3403, %v3401
          %v3448 = vpack.c.b16 %v3404, %v3402
          %v3449 = vpack.c.b16 %v3407, %v3405
          %v3450 = vpack.c.b16 %v3408, %v3406
          %v3451 = vpack.c.b16 %v3411, %v3409
          %v3452 = vpack.c.b16 %v3412, %v3410
          %v3453 = vpack.c.b16 %v3415, %v3413
          %v3454 = vpack.c.b16 %v3416, %v3414
          %v3455 = vpack.c.b16 %v3419, %v3417
          %v3456 = vpack.c.b16 %v3420, %v3418
          %v3457 = vpack.c.b16 %v3423, %v3421
          %v3458 = vpack.c.b16 %v3424, %v3422
          %v3459 = vpack.c.b16 %v3427, %v3425
          %v3460 = vpack.c.b16 %v3428, %v3426
          %3493 = vmatpush.bf16.msra.mxu0 %v3443
          %3494 = vmatpush.bf16.msra.mxu0 %v3441
          %3495 = vmatpush.bf16.msra.mxu0 %v3439
          %3496 = vmatpush.bf16.msra.mxu0 %v3437
          %3497 = vmatpush.bf16.msra.mxu0 %v3435
          %3498 = vmatpush.bf16.msra.mxu0 %v3433
          %3499 = vmatpush.bf16.msra.mxu0 %v3431
          %3500 = vmatpush.bf16.msra.mxu0 %v3429
          %3501 = vmatmul.bf16.gmra.mxu0 %v3287
          %v3502 = vpop.f32.mrf.mxu0
          %v3503 = vadd.f32 %v3329, %v3502
          %v3504 = vpop.f32.mrf.mxu0
          %v3505 = vadd.f32 %v3329, %v3504
          %3506 = vmatmul.bf16.gmra.mxu0 %v3289
          %v3507 = vpop.f32.mrf.mxu0
          %v3508 = vadd.f32 %v3329, %v3507
          %v3509 = vpop.f32.mrf.mxu0
          %v3510 = vadd.f32 %v3329, %v3509
          %3511 = vmatmul.bf16.gmra.mxu0 %v3291
          %v3512 = vpop.f32.mrf.mxu0
          %v3513 = vadd.f32 %v3329, %v3512
          %v3514 = vpop.f32.mrf.mxu0
          %v3515 = vadd.f32 %v3329, %v3514
          %3516 = vmatmul.bf16.gmra.mxu0 %v3293
          %v3517 = vpop.f32.mrf.mxu0
          %v3518 = vadd.f32 %v3329, %v3517
          %v3519 = vpop.f32.mrf.mxu0
          %v3520 = vadd.f32 %v3329, %v3519
          %3521 = vdwg.mxu0
          %3522 = vmatpush.bf16.msra.mxu0 %v3459
          %3523 = vmatpush.bf16.msra.mxu0 %v3457
          %3524 = vmatpush.bf16.msra.mxu0 %v3455
          %3525 = vmatpush.bf16.msra.mxu0 %v3453
          %3526 = vmatpush.bf16.msra.mxu0 %v3451
          %3527 = vmatpush.bf16.msra.mxu0 %v3449
          %3528 = vmatpush.bf16.msra.mxu0 %v3447
          %3529 = vmatpush.bf16.msra.mxu0 %v3445
          %3530 = vmatmul.bf16.gmra.mxu0 %v3288
          %v3531 = vpop.f32.mrf.mxu0
          %v3532 = vadd.f32 %v3503, %v3531
          %v3533 = vpop.f32.mrf.mxu0
          %v3534 = vadd.f32 %v3505, %v3533
          %3535 = vmatmul.bf16.gmra.mxu0 %v3290
          %v3536 = vpop.f32.mrf.mxu0
          %v3537 = vadd.f32 %v3508, %v3536
          %v3538 = vpop.f32.mrf.mxu0
          %v3539 = vadd.f32 %v3510, %v3538
          %3540 = vmatmul.bf16.gmra.mxu0 %v3292
          %v3541 = vpop.f32.mrf.mxu0
          %v3542 = vadd.f32 %v3513, %v3541
          %v3543 = vpop.f32.mrf.mxu0
          %v3544 = vadd.f32 %v3515, %v3543
          %3545 = vmatmul.bf16.gmra.mxu0 %v3294
          %v3546 = vpop.f32.mrf.mxu0
          %v3547 = vadd.f32 %v3518, %v3546
          %v3548 = vpop.f32.mrf.mxu0
          %v3549 = vadd.f32 %v3520, %v3548
          %3550 = vdwg.mxu0
          %3551 = vmatpush.bf16.msra.mxu0 %v3444
          %3552 = vmatpush.bf16.msra.mxu0 %v3442
          %3553 = vmatpush.bf16.msra.mxu0 %v3440
          %3554 = vmatpush.bf16.msra.mxu0 %v3438
          %3555 = vmatpush.bf16.msra.mxu0 %v3436
          %3556 = vmatpush.bf16.msra.mxu0 %v3434
          %3557 = vmatpush.bf16.msra.mxu0 %v3432
          %3558 = vmatpush.bf16.msra.mxu0 %v3430
          %3559 = vmatmul.bf16.gmra.mxu0 %v3287
          %v3560 = vpop.f32.mrf.mxu0
          %v3561 = vadd.f32 %v3330, %v3560
          %v3562 = vpop.f32.mrf.mxu0
          %v3563 = vadd.f32 %v3330, %v3562
          %3564 = vmatmul.bf16.gmra.mxu0 %v3289
          %v3565 = vpop.f32.mrf.mxu0
          %v3566 = vadd.f32 %v3330, %v3565
          %v3567 = vpop.f32.mrf.mxu0
          %v3568 = vadd.f32 %v3330, %v3567
          %3569 = vmatmul.bf16.gmra.mxu0 %v3291
          %v3570 = vpop.f32.mrf.mxu0
          %v3571 = vadd.f32 %v3330, %v3570
          %v3572 = vpop.f32.mrf.mxu0
          %v3573 = vadd.f32 %v3330, %v3572
          %3574 = vmatmul.bf16.gmra.mxu0 %v3293
          %v3575 = vpop.f32.mrf.mxu0
          %v3576 = vadd.f32 %v3330, %v3575
          %v3577 = vpop.f32.mrf.mxu0
          %v3578 = vadd.f32 %v3330, %v3577
          %3579 = vdwg.mxu0
          %3580 = vmatpush.bf16.msra.mxu0 %v3460
          %3581 = vmatpush.bf16.msra.mxu0 %v3458
          %3582 = vmatpush.bf16.msra.mxu0 %v3456
          %3583 = vmatpush.bf16.msra.mxu0 %v3454
          %3584 = vmatpush.bf16.msra.mxu0 %v3452
          %3585 = vmatpush.bf16.msra.mxu0 %v3450
          %3586 = vmatpush.bf16.msra.mxu0 %v3448
          %3587 = vmatpush.bf16.msra.mxu0 %v3446
          %3588 = vmatmul.bf16.gmra.mxu0 %v3288
          %v3589 = vpop.f32.mrf.mxu0
          %v3590 = vadd.f32 %v3561, %v3589
          %v3591 = vpop.f32.mrf.mxu0
          %v3592 = vadd.f32 %v3563, %v3591
          %3593 = vmatmul.bf16.gmra.mxu0 %v3290
          %v3594 = vpop.f32.mrf.mxu0
          %v3595 = vadd.f32 %v3566, %v3594
          %v3596 = vpop.f32.mrf.mxu0
          %v3597 = vadd.f32 %v3568, %v3596
          %3598 = vmatmul.bf16.gmra.mxu0 %v3292
          %v3599 = vpop.f32.mrf.mxu0
          %v3600 = vadd.f32 %v3571, %v3599
          %v3601 = vpop.f32.mrf.mxu0
          %v3602 = vadd.f32 %v3573, %v3601
          %3603 = vmatmul.bf16.gmra.mxu0 %v3294
          %v3604 = vpop.f32.mrf.mxu0
          %v3605 = vadd.f32 %v3576, %v3604
          %v3606 = vpop.f32.mrf.mxu0
          %v3607 = vadd.f32 %v3578, %v3606
          %3608 = vdwg.mxu0
          %v3609 = vld [vmem:[%s10] sm:$0x3]
          %v3610 = vld [vmem:[%s11] sm:$0x3]
          %v3611 = vadd.f32 %v3532, %v3590
          %3612 = vadd.xlane.f32.xlu0 %v3611
          %v3613 = vpop.xlane.xlu0 %3612
          %v3614 = vadd.f32 %v3534, %v3592
          %3615 = vadd.xlane.f32.xlu0 %v3614
          %v3616 = vpop.xlane.xlu0 %3615
          %v3617 = vadd.f32 %v3537, %v3595
          %3618 = vadd.xlane.f32.xlu0 %v3617
          %v3619 = vpop.xlane.xlu0 %3618
          %v3620 = vadd.f32 %v3539, %v3597
          %3621 = vadd.xlane.f32.xlu0 %v3620
          %v3622 = vpop.xlane.xlu0 %3621
          %v3623 = vadd.f32 %v3542, %v3600
          %3624 = vadd.xlane.f32.xlu0 %v3623
          %v3625 = vpop.xlane.xlu0 %3624
          %v3626 = vadd.f32 %v3544, %v3602
          %3627 = vadd.xlane.f32.xlu0 %v3626
          %v3628 = vpop.xlane.xlu0 %3627
          %v3629 = vadd.f32 %v3547, %v3605
          %3630 = vadd.xlane.f32.xlu0 %v3629
          %v3631 = vpop.xlane.xlu0 %3630
          %v3632 = vadd.f32 %v3549, %v3607
          %3633 = vadd.xlane.f32.xlu0 %v3632
          %v3634 = vpop.xlane.xlu0 %3633
          %v3635 = vmul.f32 %v3613, %v853
          %v3636 = vmul.f32 %v3616, %v853
          %v3637 = vmul.f32 %v3619, %v853
          %v3638 = vmul.f32 %v3622, %v853
          %v3639 = vmul.f32 %v3625, %v853
          %v3640 = vmul.f32 %v3628, %v853
          %v3641 = vmul.f32 %v3631, %v853
          %v3642 = vmul.f32 %v3634, %v853
          %v3643 = vsub.f32 %v3532, %v3635
          %v3644 = vsub.f32 %v3590, %v3635
          %v3645 = vsub.f32 %v3534, %v3636
          %v3646 = vsub.f32 %v3592, %v3636
          %v3647 = vsub.f32 %v3537, %v3637
          %v3648 = vsub.f32 %v3595, %v3637
          %v3649 = vsub.f32 %v3539, %v3638
          %v3650 = vsub.f32 %v3597, %v3638
          %v3651 = vsub.f32 %v3542, %v3639
          %v3652 = vsub.f32 %v3600, %v3639
          %v3653 = vsub.f32 %v3544, %v3640
          %v3654 = vsub.f32 %v3602, %v3640
          %v3655 = vsub.f32 %v3547, %v3641
          %v3656 = vsub.f32 %v3605, %v3641
          %v3657 = vsub.f32 %v3549, %v3642
          %v3658 = vsub.f32 %v3607, %v3642
          %v3659 = vmul.f32 %v3643, %v3643
          %v3660 = vmul.f32 %v3644, %v3644
          %v3661 = vmul.f32 %v3645, %v3645
          %v3662 = vmul.f32 %v3646, %v3646
          %v3663 = vmul.f32 %v3647, %v3647
          %v3664 = vmul.f32 %v3648, %v3648
          %v3665 = vmul.f32 %v3649, %v3649
          %v3666 = vmul.f32 %v3650, %v3650
          %v3667 = vmul.f32 %v3651, %v3651
          %v3668 = vmul.f32 %v3652, %v3652
          %v3669 = vmul.f32 %v3653, %v3653
          %v3670 = vmul.f32 %v3654, %v3654
          %v3671 = vmul.f32 %v3655, %v3655
          %v3672 = vmul.f32 %v3656, %v3656
          %v3673 = vmul.f32 %v3657, %v3657
          %v3674 = vmul.f32 %v3658, %v3658
          %v3675 = vadd.f32 %v3659, %v3660
          %3676 = vadd.xlane.f32.xlu0 %v3675
          %v3677 = vpop.xlane.xlu0 %3676
          %v3678 = vadd.f32 %v3661, %v3662
          %3679 = vadd.xlane.f32.xlu0 %v3678
          %v3680 = vpop.xlane.xlu0 %3679
          %v3681 = vadd.f32 %v3663, %v3664
          %3682 = vadd.xlane.f32.xlu0 %v3681
          %v3683 = vpop.xlane.xlu0 %3682
          %v3684 = vadd.f32 %v3665, %v3666
          %3685 = vadd.xlane.f32.xlu0 %v3684
          %v3686 = vpop.xlane.xlu0 %3685
          %v3687 = vadd.f32 %v3667, %v3668
          %3688 = vadd.xlane.f32.xlu0 %v3687
          %v3689 = vpop.xlane.xlu0 %3688
          %v3690 = vadd.f32 %v3669, %v3670
          %3691 = vadd.xlane.f32.xlu0 %v3690
          %v3692 = vpop.xlane.xlu0 %3691
          %v3693 = vadd.f32 %v3671, %v3672
          %3694 = vadd.xlane.f32.xlu0 %v3693
          %v3695 = vpop.xlane.xlu0 %3694
          %v3696 = vadd.f32 %v3673, %v3674
          %3697 = vadd.xlane.f32.xlu0 %v3696
          %v3698 = vpop.xlane.xlu0 %3697
          %v3699 = vmul.f32 %v3677, %v853
          %v3700 = vmul.f32 %v3680, %v853
          %v3701 = vmul.f32 %v3683, %v853
          %v3702 = vmul.f32 %v3686, %v853
          %v3703 = vmul.f32 %v3689, %v853
          %v3704 = vmul.f32 %v3692, %v853
          %v3705 = vmul.f32 %v3695, %v853
          %v3706 = vmul.f32 %v3698, %v853
          %v3707 = vadd.f32 %v3699, 1e-06
          %v3708 = vadd.f32 %v3700, 1e-06
          %v3709 = vadd.f32 %v3701, 1e-06
          %v3710 = vadd.f32 %v3702, 1e-06
          %v3711 = vadd.f32 %v3703, 1e-06
          %v3712 = vadd.f32 %v3704, 1e-06
          %v3713 = vadd.f32 %v3705, 1e-06
          %v3714 = vadd.f32 %v3706, 1e-06
          %v3715 = vrsqrt.pop %v3707
          %v3716 = vmul.f32 %v3715, %v3707
          %v3717 = vmul.f32 %v3716, %v3715
          %v3718 = vmul.f32 0.5, %v3717
          %v3719 = vsub.f32 1.5, %v3718
          %v3720 = vmul.f32 %v3715, %v3719
          %vm3721 = vweird.f32 %v3707
          %vm3722 = vweird.f32 %v3715
          %vm3723 = vmor %vm3721, %vm3722
          %v3724 = vsel %vm3723, %v3715, %v3720
          %v3725 = vrsqrt.pop %v3708
          %v3726 = vmul.f32 %v3725, %v3708
          %v3727 = vmul.f32 %v3726, %v3725
          %v3728 = vmul.f32 0.5, %v3727
          %v3729 = vsub.f32 1.5, %v3728
          %v3730 = vmul.f32 %v3725, %v3729
          %vm3731 = vweird.f32 %v3708
          %vm3732 = vweird.f32 %v3725
          %vm3733 = vmor %vm3731, %vm3732
          %v3734 = vsel %vm3733, %v3725, %v3730
          %v3735 = vrsqrt.pop %v3709
          %v3736 = vmul.f32 %v3735, %v3709
          %v3737 = vmul.f32 %v3736, %v3735
          %v3738 = vmul.f32 0.5, %v3737
          %v3739 = vsub.f32 1.5, %v3738
          %v3740 = vmul.f32 %v3735, %v3739
          %vm3741 = vweird.f32 %v3709
          %vm3742 = vweird.f32 %v3735
          %vm3743 = vmor %vm3741, %vm3742
          %v3744 = vsel %vm3743, %v3735, %v3740
          %v3745 = vrsqrt.pop %v3710
          %v3746 = vmul.f32 %v3745, %v3710
          %v3747 = vmul.f32 %v3746, %v3745
          %v3748 = vmul.f32 0.5, %v3747
          %v3749 = vsub.f32 1.5, %v3748
          %v3750 = vmul.f32 %v3745, %v3749
          %vm3751 = vweird.f32 %v3710
          %vm3752 = vweird.f32 %v3745
          %vm3753 = vmor %vm3751, %vm3752
          %v3754 = vsel %vm3753, %v3745, %v3750
          %v3755 = vrsqrt.pop %v3711
          %v3756 = vmul.f32 %v3755, %v3711
          %v3757 = vmul.f32 %v3756, %v3755
          %v3758 = vmul.f32 0.5, %v3757
          %v3759 = vsub.f32 1.5, %v3758
          %v3760 = vmul.f32 %v3755, %v3759
          %vm3761 = vweird.f32 %v3711
          %vm3762 = vweird.f32 %v3755
          %vm3763 = vmor %vm3761, %vm3762
          %v3764 = vsel %vm3763, %v3755, %v3760
          %v3765 = vrsqrt.pop %v3712
          %v3766 = vmul.f32 %v3765, %v3712
          %v3767 = vmul.f32 %v3766, %v3765
          %v3768 = vmul.f32 0.5, %v3767
          %v3769 = vsub.f32 1.5, %v3768
          %v3770 = vmul.f32 %v3765, %v3769
          %vm3771 = vweird.f32 %v3712
          %vm3772 = vweird.f32 %v3765
          %vm3773 = vmor %vm3771, %vm3772
          %v3774 = vsel %vm3773, %v3765, %v3770
          %v3775 = vrsqrt.pop %v3713
          %v3776 = vmul.f32 %v3775, %v3713
          %v3777 = vmul.f32 %v3776, %v3775
          %v3778 = vmul.f32 0.5, %v3777
          %v3779 = vsub.f32 1.5, %v3778
          %v3780 = vmul.f32 %v3775, %v3779
          %vm3781 = vweird.f32 %v3713
          %vm3782 = vweird.f32 %v3775
          %vm3783 = vmor %vm3781, %vm3782
          %v3784 = vsel %vm3783, %v3775, %v3780
          %v3785 = vrsqrt.pop %v3714
          %v3786 = vmul.f32 %v3785, %v3714
          %v3787 = vmul.f32 %v3786, %v3785
          %v3788 = vmul.f32 0.5, %v3787
          %v3789 = vsub.f32 1.5, %v3788
          %v3790 = vmul.f32 %v3785, %v3789
          %vm3791 = vweird.f32 %v3714
          %vm3792 = vweird.f32 %v3785
          %vm3793 = vmor %vm3791, %vm3792
          %v3794 = vsel %vm3793, %v3785, %v3790
          %v3795 = vmul.f32 %v3643, %v3724
          %v3796 = vmul.f32 %v3644, %v3724
          %v3797 = vmul.f32 %v3645, %v3734
          %v3798 = vmul.f32 %v3646, %v3734
          %v3799 = vmul.f32 %v3647, %v3744
          %v3800 = vmul.f32 %v3648, %v3744
          %v3801 = vmul.f32 %v3649, %v3754
          %v3802 = vmul.f32 %v3650, %v3754
          %v3803 = vmul.f32 %v3651, %v3764
          %v3804 = vmul.f32 %v3652, %v3764
          %v3805 = vmul.f32 %v3653, %v3774
          %v3806 = vmul.f32 %v3654, %v3774
          %v3807 = vmul.f32 %v3655, %v3784
          %v3808 = vmul.f32 %v3656, %v3784
          %v3809 = vmul.f32 %v3657, %v3794
          %v3810 = vmul.f32 %v3658, %v3794
          %v3812 = vperm.slane %v3609, 0
          %v3813 = vperm.slane %v3609, 1
          %v3816 = vmul.f32 %v3795, %v3812
          %v3817 = vmul.f32 %v3796, %v3813
          %v3818 = vmul.f32 %v3797, %v3812
          %v3819 = vmul.f32 %v3798, %v3813
          %v3820 = vmul.f32 %v3799, %v3812
          %v3821 = vmul.f32 %v3800, %v3813
          %v3822 = vmul.f32 %v3801, %v3812
          %v3823 = vmul.f32 %v3802, %v3813
          %v3824 = vmul.f32 %v3803, %v3812
          %v3825 = vmul.f32 %v3804, %v3813
          %v3826 = vmul.f32 %v3805, %v3812
          %v3827 = vmul.f32 %v3806, %v3813
          %v3828 = vmul.f32 %v3807, %v3812
          %v3829 = vmul.f32 %v3808, %v3813
          %v3830 = vmul.f32 %v3809, %v3812
          %v3831 = vmul.f32 %v3810, %v3813
          %v3833 = vperm.slane %v3610, 0
          %v3834 = vperm.slane %v3610, 1
          %v3837 = vadd.f32 %v3816, %v3833
          %v3838 = vadd.f32 %v3817, %v3834
          %v3839 = vadd.f32 %v3818, %v3833
          %v3840 = vadd.f32 %v3819, %v3834
          %v3841 = vadd.f32 %v3820, %v3833
          %v3842 = vadd.f32 %v3821, %v3834
          %v3843 = vadd.f32 %v3822, %v3833
          %v3844 = vadd.f32 %v3823, %v3834
          %v3845 = vadd.f32 %v3824, %v3833
          %v3846 = vadd.f32 %v3825, %v3834
          %v3847 = vadd.f32 %v3826, %v3833
          %v3848 = vadd.f32 %v3827, %v3834
          %v3849 = vadd.f32 %v3828, %v3833
          %v3850 = vadd.f32 %v3829, %v3834
          %v3851 = vadd.f32 %v3830, %v3833
          %v3852 = vadd.f32 %v3831, %v3834
          %v3853 = vpack.c.bf16 %v3839, %v3837
          %v3854 = vpack.c.bf16 %v3840, %v3838
          %v3855 = vpack.c.bf16 %v3843, %v3841
          %v3856 = vpack.c.bf16 %v3844, %v3842
          %v3857 = vpack.c.bf16 %v3847, %v3845
          %v3858 = vpack.c.bf16 %v3848, %v3846
          %v3859 = vpack.c.bf16 %v3851, %v3849
          %v3860 = vpack.c.bf16 %v3852, %v3850
          %v3861 = vld [vmem:[%s12] sm:$0xff]
          %v3862 = vld [vmem:[%s12 + $0x8] sm:$0xff]
          %v3863 = vld [vmem:[%s12 + $0x10] sm:$0xff]
          %v3864 = vld [vmem:[%s12 + $0x18] sm:$0xff]
          %v3865 = vld [vmem:[%s12 + $0x20] sm:$0xff]
          %v3866 = vld [vmem:[%s12 + $0x28] sm:$0xff]
          %v3867 = vld [vmem:[%s12 + $0x30] sm:$0xff]
          %v3868 = vld [vmem:[%s12 + $0x38] sm:$0xff]
          %v3869 = vld [vmem:[%s12 + $0x40] sm:$0xff]
          %v3870 = vld [vmem:[%s12 + $0x48] sm:$0xff]
          %v3871 = vld [vmem:[%s12 + $0x50] sm:$0xff]
          %v3872 = vld [vmem:[%s12 + $0x58] sm:$0xff]
          %v3873 = vld [vmem:[%s12 + $0x60] sm:$0xff]
          %v3874 = vld [vmem:[%s12 + $0x68] sm:$0xff]
          %v3875 = vld [vmem:[%s12 + $0x70] sm:$0xff]
          %v3876 = vld [vmem:[%s12 + $0x78] sm:$0xff]
          %v3877 = vld [vmem:[%s12 + $0x80] sm:$0xff]
          %v3878 = vld [vmem:[%s12 + $0x88] sm:$0xff]
          %v3879 = vld [vmem:[%s12 + $0x90] sm:$0xff]
          %v3880 = vld [vmem:[%s12 + $0x98] sm:$0xff]
          %v3881 = vld [vmem:[%s12 + $0xa0] sm:$0xff]
          %v3882 = vld [vmem:[%s12 + $0xa8] sm:$0xff]
          %v3883 = vld [vmem:[%s12 + $0xb0] sm:$0xff]
          %v3884 = vld [vmem:[%s12 + $0xb8] sm:$0xff]
          %v3885 = vld [vmem:[%s12 + $0xc0] sm:$0xff]
          %v3886 = vld [vmem:[%s12 + $0xc8] sm:$0xff]
          %v3887 = vld [vmem:[%s12 + $0xd0] sm:$0xff]
          %v3888 = vld [vmem:[%s12 + $0xd8] sm:$0xff]
          %v3889 = vld [vmem:[%s12 + $0xe0] sm:$0xff]
          %v3890 = vld [vmem:[%s12 + $0xe8] sm:$0xff]
          %v3891 = vld [vmem:[%s12 + $0xf0] sm:$0xff]
          %v3892 = vld [vmem:[%s12 + $0xf8] sm:$0xff]
          %v3925 = vunpack.c.l.b16 %v3861
          %v3926 = vunpack.c.h.b16 %v3861
          %v3927 = vunpack.c.l.b16 %v3862
          %v3928 = vunpack.c.h.b16 %v3862
          %v3929 = vunpack.c.l.b16 %v3863
          %v3930 = vunpack.c.h.b16 %v3863
          %v3931 = vunpack.c.l.b16 %v3864
          %v3932 = vunpack.c.h.b16 %v3864
          %v3933 = vunpack.c.l.b16 %v3865
          %v3934 = vunpack.c.h.b16 %v3865
          %v3935 = vunpack.c.l.b16 %v3866
          %v3936 = vunpack.c.h.b16 %v3866
          %v3937 = vunpack.c.l.b16 %v3867
          %v3938 = vunpack.c.h.b16 %v3867
          %v3939 = vunpack.c.l.b16 %v3868
          %v3940 = vunpack.c.h.b16 %v3868
          %v3941 = vunpack.c.l.b16 %v3869
          %v3942 = vunpack.c.h.b16 %v3869
          %v3943 = vunpack.c.l.b16 %v3870
          %v3944 = vunpack.c.h.b16 %v3870
          %v3945 = vunpack.c.l.b16 %v3871
          %v3946 = vunpack.c.h.b16 %v3871
          %v3947 = vunpack.c.l.b16 %v3872
          %v3948 = vunpack.c.h.b16 %v3872
          %v3949 = vunpack.c.l.b16 %v3873
          %v3950 = vunpack.c.h.b16 %v3873
          %v3951 = vunpack.c.l.b16 %v3874
          %v3952 = vunpack.c.h.b16 %v3874
          %v3953 = vunpack.c.l.b16 %v3875
          %v3954 = vunpack.c.h.b16 %v3875
          %v3955 = vunpack.c.l.b16 %v3876
          %v3956 = vunpack.c.h.b16 %v3876
          %v3957 = vunpack.c.l.b16 %v3877
          %v3958 = vunpack.c.h.b16 %v3877
          %v3959 = vunpack.c.l.b16 %v3878
          %v3960 = vunpack.c.h.b16 %v3878
          %v3961 = vunpack.c.l.b16 %v3879
          %v3962 = vunpack.c.h.b16 %v3879
          %v3963 = vunpack.c.l.b16 %v3880
          %v3964 = vunpack.c.h.b16 %v3880
          %v3965 = vunpack.c.l.b16 %v3881
          %v3966 = vunpack.c.h.b16 %v3881
          %v3967 = vunpack.c.l.b16 %v3882
          %v3968 = vunpack.c.h.b16 %v3882
          %v3969 = vunpack.c.l.b16 %v3883
          %v3970 = vunpack.c.h.b16 %v3883
          %v3971 = vunpack.c.l.b16 %v3884
          %v3972 = vunpack.c.h.b16 %v3884
          %v3973 = vunpack.c.l.b16 %v3885
          %v3974 = vunpack.c.h.b16 %v3885
          %v3975 = vunpack.c.l.b16 %v3886
          %v3976 = vunpack.c.h.b16 %v3886
          %v3977 = vunpack.c.l.b16 %v3887
          %v3978 = vunpack.c.h.b16 %v3887
          %v3979 = vunpack.c.l.b16 %v3888
          %v3980 = vunpack.c.h.b16 %v3888
          %v3981 = vunpack.c.l.b16 %v3889
          %v3982 = vunpack.c.h.b16 %v3889
          %v3983 = vunpack.c.l.b16 %v3890
          %v3984 = vunpack.c.h.b16 %v3890
          %v3985 = vunpack.c.l.b16 %v3891
          %v3986 = vunpack.c.h.b16 %v3891
          %v3987 = vunpack.c.l.b16 %v3892
          %v3988 = vunpack.c.h.b16 %v3892
          %v3989 = vpack.c.b16 %v3927, %v3925
          %v3990 = vpack.c.b16 %v3928, %v3926
          %v3991 = vpack.c.b16 %v3931, %v3929
          %v3992 = vpack.c.b16 %v3932, %v3930
          %v3993 = vpack.c.b16 %v3935, %v3933
          %v3994 = vpack.c.b16 %v3936, %v3934
          %v3995 = vpack.c.b16 %v3939, %v3937
          %v3996 = vpack.c.b16 %v3940, %v3938
          %v3997 = vpack.c.b16 %v3943, %v3941
          %v3998 = vpack.c.b16 %v3944, %v3942
          %v3999 = vpack.c.b16 %v3947, %v3945
          %v4000 = vpack.c.b16 %v3948, %v3946
          %v4001 = vpack.c.b16 %v3951, %v3949
          %v4002 = vpack.c.b16 %v3952, %v3950
          %v4003 = vpack.c.b16 %v3955, %v3953
          %v4004 = vpack.c.b16 %v3956, %v3954
          %v4005 = vpack.c.b16 %v3959, %v3957
          %v4006 = vpack.c.b16 %v3960, %v3958
          %v4007 = vpack.c.b16 %v3963, %v3961
          %v4008 = vpack.c.b16 %v3964, %v3962
          %v4009 = vpack.c.b16 %v3967, %v3965
          %v4010 = vpack.c.b16 %v3968, %v3966
          %v4011 = vpack.c.b16 %v3971, %v3969
          %v4012 = vpack.c.b16 %v3972, %v3970
          %v4013 = vpack.c.b16 %v3975, %v3973
          %v4014 = vpack.c.b16 %v3976, %v3974
          %v4015 = vpack.c.b16 %v3979, %v3977
          %v4016 = vpack.c.b16 %v3980, %v3978
          %v4017 = vpack.c.b16 %v3983, %v3981
          %v4018 = vpack.c.b16 %v3984, %v3982
          %v4019 = vpack.c.b16 %v3987, %v3985
          %v4020 = vpack.c.b16 %v3988, %v3986
          %4053 = vmatpush.bf16.msra.mxu0 %v4003
          %4054 = vmatpush.bf16.msra.mxu0 %v4001
          %4055 = vmatpush.bf16.msra.mxu0 %v3999
          %4056 = vmatpush.bf16.msra.mxu0 %v3997
          %4057 = vmatpush.bf16.msra.mxu0 %v3995
          %4058 = vmatpush.bf16.msra.mxu0 %v3993
          %4059 = vmatpush.bf16.msra.mxu0 %v3991
          %4060 = vmatpush.bf16.msra.mxu0 %v3989
          %4061 = vmatmul.bf16.gmra.mxu0 %v3853
          %v4062 = vpop.f32.mrf.mxu0
          %v4063 = vadd.f32 0.0, %v4062
          %v4064 = vpop.f32.mrf.mxu0
          %v4065 = vadd.f32 0.0, %v4064
          %4066 = vmatmul.bf16.gmra.mxu0 %v3855
          %v4067 = vpop.f32.mrf.mxu0
          %v4068 = vadd.f32 0.0, %v4067
          %v4069 = vpop.f32.mrf.mxu0
          %v4070 = vadd.f32 0.0, %v4069
          %4071 = vmatmul.bf16.gmra.mxu0 %v3857
          %v4072 = vpop.f32.mrf.mxu0
          %v4073 = vadd.f32 0.0, %v4072
          %v4074 = vpop.f32.mrf.mxu0
          %v4075 = vadd.f32 0.0, %v4074
          %4076 = vmatmul.bf16.gmra.mxu0 %v3859
          %v4077 = vpop.f32.mrf.mxu0
          %v4078 = vadd.f32 0.0, %v4077
          %v4079 = vpop.f32.mrf.mxu0
          %v4080 = vadd.f32 0.0, %v4079
          %4081 = vdwg.mxu0
          %4082 = vmatpush.bf16.msra.mxu0 %v4019
          %4083 = vmatpush.bf16.msra.mxu0 %v4017
          %4084 = vmatpush.bf16.msra.mxu0 %v4015
          %4085 = vmatpush.bf16.msra.mxu0 %v4013
          %4086 = vmatpush.bf16.msra.mxu0 %v4011
          %4087 = vmatpush.bf16.msra.mxu0 %v4009
          %4088 = vmatpush.bf16.msra.mxu0 %v4007
          %4089 = vmatpush.bf16.msra.mxu0 %v4005
          %4090 = vmatmul.bf16.gmra.mxu0 %v3854
          %v4091 = vpop.f32.mrf.mxu0
          %v4092 = vadd.f32 %v4063, %v4091
          %v4093 = vpop.f32.mrf.mxu0
          %v4094 = vadd.f32 %v4065, %v4093
          %4095 = vmatmul.bf16.gmra.mxu0 %v3856
          %v4096 = vpop.f32.mrf.mxu0
          %v4097 = vadd.f32 %v4068, %v4096
          %v4098 = vpop.f32.mrf.mxu0
          %v4099 = vadd.f32 %v4070, %v4098
          %4100 = vmatmul.bf16.gmra.mxu0 %v3858
          %v4101 = vpop.f32.mrf.mxu0
          %v4102 = vadd.f32 %v4073, %v4101
          %v4103 = vpop.f32.mrf.mxu0
          %v4104 = vadd.f32 %v4075, %v4103
          %4105 = vmatmul.bf16.gmra.mxu0 %v3860
          %v4106 = vpop.f32.mrf.mxu0
          %v4107 = vadd.f32 %v4078, %v4106
          %v4108 = vpop.f32.mrf.mxu0
          %v4109 = vadd.f32 %v4080, %v4108
          %4110 = vdwg.mxu0
          %4111 = vmatpush.bf16.msra.mxu0 %v4004
          %4112 = vmatpush.bf16.msra.mxu0 %v4002
          %4113 = vmatpush.bf16.msra.mxu0 %v4000
          %4114 = vmatpush.bf16.msra.mxu0 %v3998
          %4115 = vmatpush.bf16.msra.mxu0 %v3996
          %4116 = vmatpush.bf16.msra.mxu0 %v3994
          %4117 = vmatpush.bf16.msra.mxu0 %v3992
          %4118 = vmatpush.bf16.msra.mxu0 %v3990
          %4119 = vmatmul.bf16.gmra.mxu0 %v3853
          %v4120 = vpop.f32.mrf.mxu0
          %v4121 = vadd.f32 0.0, %v4120
          %v4122 = vpop.f32.mrf.mxu0
          %v4123 = vadd.f32 0.0, %v4122
          %4124 = vmatmul.bf16.gmra.mxu0 %v3855
          %v4125 = vpop.f32.mrf.mxu0
          %v4126 = vadd.f32 0.0, %v4125
          %v4127 = vpop.f32.mrf.mxu0
          %v4128 = vadd.f32 0.0, %v4127
          %4129 = vmatmul.bf16.gmra.mxu0 %v3857
          %v4130 = vpop.f32.mrf.mxu0
          %v4131 = vadd.f32 0.0, %v4130
          %v4132 = vpop.f32.mrf.mxu0
          %v4133 = vadd.f32 0.0, %v4132
          %4134 = vmatmul.bf16.gmra.mxu0 %v3859
          %v4135 = vpop.f32.mrf.mxu0
          %v4136 = vadd.f32 0.0, %v4135
          %v4137 = vpop.f32.mrf.mxu0
          %v4138 = vadd.f32 0.0, %v4137
          %4139 = vdwg.mxu0
          %4140 = vmatpush.bf16.msra.mxu0 %v4020
          %4141 = vmatpush.bf16.msra.mxu0 %v4018
          %4142 = vmatpush.bf16.msra.mxu0 %v4016
          %4143 = vmatpush.bf16.msra.mxu0 %v4014
          %4144 = vmatpush.bf16.msra.mxu0 %v4012
          %4145 = vmatpush.bf16.msra.mxu0 %v4010
          %4146 = vmatpush.bf16.msra.mxu0 %v4008
          %4147 = vmatpush.bf16.msra.mxu0 %v4006
          %4148 = vmatmul.bf16.gmra.mxu0 %v3854
          %v4149 = vpop.f32.mrf.mxu0
          %v4150 = vadd.f32 %v4121, %v4149
          %v4151 = vpop.f32.mrf.mxu0
          %v4152 = vadd.f32 %v4123, %v4151
          %4153 = vmatmul.bf16.gmra.mxu0 %v3856
          %v4154 = vpop.f32.mrf.mxu0
          %v4155 = vadd.f32 %v4126, %v4154
          %v4156 = vpop.f32.mrf.mxu0
          %v4157 = vadd.f32 %v4128, %v4156
          %4158 = vmatmul.bf16.gmra.mxu0 %v3858
          %v4159 = vpop.f32.mrf.mxu0
          %v4160 = vadd.f32 %v4131, %v4159
          %v4161 = vpop.f32.mrf.mxu0
          %v4162 = vadd.f32 %v4133, %v4161
          %4163 = vmatmul.bf16.gmra.mxu0 %v3860
          %v4164 = vpop.f32.mrf.mxu0
          %v4165 = vadd.f32 %v4136, %v4164
          %v4166 = vpop.f32.mrf.mxu0
          %v4167 = vadd.f32 %v4138, %v4166
          %4168 = vdwg.mxu0
          %4169 = vst [vmem:[%s474] sm:$0xff] %v4092
          %4170 = vst [vmem:[%s474 + $0x8] sm:$0xff] %v4150
          %4171 = vst [vmem:[%s474 + $0x10] sm:$0xff] %v4094
          %4172 = vst [vmem:[%s474 + $0x18] sm:$0xff] %v4152
          %4173 = vst [vmem:[%s474 + $0x20] sm:$0xff] %v4097
          %4174 = vst [vmem:[%s474 + $0x28] sm:$0xff] %v4155
          %4175 = vst [vmem:[%s474 + $0x30] sm:$0xff] %v4099
          %4176 = vst [vmem:[%s474 + $0x38] sm:$0xff] %v4157
          %4177 = vst [vmem:[%s474 + $0x40] sm:$0xff] %v4102
          %4178 = vst [vmem:[%s474 + $0x48] sm:$0xff] %v4160
          %4179 = vst [vmem:[%s474 + $0x50] sm:$0xff] %v4104
          %4180 = vst [vmem:[%s474 + $0x58] sm:$0xff] %v4162
          %4181 = vst [vmem:[%s474 + $0x60] sm:$0xff] %v4107
          %4182 = vst [vmem:[%s474 + $0x68] sm:$0xff] %v4165
          %4183 = vst [vmem:[%s474 + $0x70] sm:$0xff] %v4109
          %4184 = vst [vmem:[%s474 + $0x78] sm:$0xff] %v4167
        $region80: #{resampler_forward.1} parent=71 // pred_fallthru
          _
        %s4185 = sand.u32 %s332, 1
        %s4186 = scalar_lea.sflag [#allocation6], %s4185
        %s4187 = sand.u32 %s332, 1
        %s4188 = smul.addr %s4187, 128
        %s4189 = scalar_lea.vmem [#allocation5], %s4188
        // Predicated region
        $region81: #{resampler_forward.1} parent=71 // pred_check
          %p4190 = pneg %p342
        $region82: #{resampler_forward.1} parent=71 // pred_check_branch
          %4192 = sbr.rel (%p4190) target = $region84
        $region83: #{resampler_forward.1} parent=71 // pred_region
          %4194 = vsyncadd %s4186, 0
          %s4195 = smul.addr %s31, 16
          %s4196 = smul.addr %s4195, 8
          %s4197 = scalar_lea.hbm %s13, %s4196
          %s4198 = sshll.u32 %s4189, 4
          %s4199 = int_to_ptr.vmem [resolvable:$true] %s4198
          %s4200 = sshll.u32 %s4197, 4
          %s4201 = int_to_ptr.hbm [resolvable:$true] %s4200
          %4206 = dma.vmem_to_hbm [thread:$0]  %s4199, 2048, %s4201, %s4186, 256, 256, 16
        $region84: #{resampler_forward.1} parent=71 // pred_fallthru
          _
      $region72: #{resampler_forward.1} parent=5 // pred_fallthru
        _
      %p4207 = scmp.le.s32.totalorder 2, %s22
      // Predicated region
      $region85: #{resampler_forward.1} parent=5 // pred_check
        %p4208 = pneg %p4207
      $region86: #{resampler_forward.1} parent=5 // pred_check_branch
        %4210 = sbr.rel (%p4208) target = $region88
      $region87: #{resampler_forward.1} parent=5 // pred_region
        %s4211 = ssub.s32 %s22, 2
        // Predicated region
        $region89: #{resampler_forward.1} parent=87 // pred_check
          %p4212 = pneg %p348
        $region90: #{resampler_forward.1} parent=87 // pred_check_branch
          %4214 = sbr.rel (%p4212) target = $region92
        $region91: #{resampler_forward.1} parent=87 // pred_region
          %s4215 = sand.u32 %s333, 1
          %s4216 = scalar_lea.sflag [#allocation6], %s4215
          %s4217 = sand.u32 %s333, 1
          %s4218 = smul.addr %s4217, 128
          %s4219 = scalar_lea.vmem [#allocation5], %s4218
          %4221 = dma.done %s4216, 2048
        $region92: #{resampler_forward.1} parent=87 // pred_fallthru
          _
      $region88: #{resampler_forward.1} parent=5 // pred_fallthru
        _
    $region6: #{resampler_forward.1} parent=1 // loop_footer
      %s26 = sadd.s32 1, %s22
    $region7: #{resampler_forward.1} parent=1 // loop_footer_branch
      %21 = sbr.rel target = $region3
    $region8: #{resampler_forward.1} parent=1 // loop_exit
      _
    %4222 = vsyncpa [#allocation6], 1
    %s4223 = scalar_lea.sflag [#allocation6], 1
    %4224 = vsyncpa %s4223, 1

</llo_original>
